<compile_context>
chip_gen: v7x
topology: tpu7x:2x2x1
jax: 0.10.0
libtpu: 0.0.40
codegen_flags: <defaults>
</compile_context>

<pallas_src>
import functools

import jax
import jax.numpy as jnp
from jax.experimental import pallas as pl
from jax.experimental.pallas import tpu as pltpu


_VMEM_LIMIT = 32 * 1024 * 1024  # raise v5e's 16 MiB default; safe on v6e/v7x


def _round_up(x, m):
    return (x + m - 1) // m * m


def _pad2(a, rows, cols):
    r, c = a.shape
    if r == rows and c == cols:
        return a
    return jnp.pad(a, ((0, rows - r), (0, cols - c)))


# --------------------------- tiled matmul + bias ---------------------------

def _mm_kernel(x_ref, w_ref, b_ref, o_ref, acc_ref, *, activation):
    k = pl.program_id(2)

    @pl.when(k == 0)
    def _():
        acc_ref[...] = jnp.zeros_like(acc_ref)

    acc_ref[...] += jnp.dot(x_ref[...], w_ref[...],
                            preferred_element_type=jnp.float32)

    @pl.when(k == pl.num_programs(2) - 1)
    def _():
        y = acc_ref[...] + b_ref[...]
        if activation == "relu":
            y = jnp.maximum(y, 0.0)
        o_ref[...] = y.astype(o_ref.dtype)


def matmul_bias(x, w, b, activation=None, out_dtype=jnp.bfloat16,
                tm_max=256, tn_max=512, tk_max=512):
    """o = act(x @ w + b); tiled, pipelined, bf16 MXU with f32 accumulation."""
    M, K = x.shape
    K2, N = w.shape
    assert K == K2
    tm = M if M <= tm_max else tm_max
    tn = N if N <= tn_max else tn_max
    tk = K if K <= tk_max else tk_max
    Mp, Np, Kp = _round_up(M, tm), _round_up(N, tn), _round_up(K, tk)
    xp = _pad2(x, Mp, Kp)
    wp = _pad2(w, Kp, Np)
    bp = _pad2(b.reshape(1, N).astype(jnp.float32), 1, Np)
    grid = (Mp // tm, Np // tn, Kp // tk)
    bytes_acc = ((Mp * Kp + Kp * Np) * xp.dtype.itemsize
                 + Mp * Np * jnp.dtype(out_dtype).itemsize)
    out = pl.pallas_call(
        functools.partial(_mm_kernel, activation=activation),
        out_shape=jax.ShapeDtypeStruct((Mp, Np), out_dtype),
        grid=grid,
        in_specs=[
            pl.BlockSpec((tm, tk), lambda i, j, k: (i, k)),
            pl.BlockSpec((tk, tn), lambda i, j, k: (k, j)),
            pl.BlockSpec((1, tn), lambda i, j, k: (0, j)),
        ],
        out_specs=pl.BlockSpec((tm, tn), lambda i, j, k: (i, j)),
        scratch_shapes=[pltpu.VMEM((tm, tn), jnp.float32)],
        compiler_params=pltpu.CompilerParams(
            dimension_semantics=("parallel", "parallel", "arbitrary"),
            vmem_limit_bytes=_VMEM_LIMIT),
        cost_estimate=pl.CostEstimate(flops=2 * M * N * K, transcendentals=0,
                                      bytes_accessed=bytes_acc),
    )(xp, wp, bp)
    if (Mp, Np) != (M, N):
        out = out[:M, :N]
    return out


# -------------------- matmul + bias + residual + LayerNorm ------------------

def _mm_res_ln_kernel(x_ref, w_ref, b_ref, r_ref, g_ref, be_ref, o_ref,
                      acc_ref, *, eps):
    k = pl.program_id(1)

    @pl.when(k == 0)
    def _():
        acc_ref[...] = jnp.zeros_like(acc_ref)

    acc_ref[...] += jnp.dot(x_ref[...], w_ref[...],
                            preferred_element_type=jnp.float32)

    @pl.when(k == pl.num_programs(1) - 1)
    def _():
        z = acc_ref[...] + b_ref[...] + r_ref[...].astype(jnp.float32)
        mu = jnp.mean(z, axis=-1, keepdims=True)
        d = z - mu
        var = jnp.mean(d * d, axis=-1, keepdims=True)
        y = d * jax.lax.rsqrt(var + eps) * g_ref[...] + be_ref[...]
        o_ref[...] = y.astype(o_ref.dtype)


def matmul_res_layernorm(x, w, b, res, gamma, beta, eps=1e-5,
                         out_dtype=jnp.bfloat16, tm_max=256, tk_max=512):
    """out = LayerNorm(res + x @ w + b); N (=embed_dim) is one output tile."""
    M, K = x.shape
    _, N = w.shape
    tm = M if M <= tm_max else tm_max
    tk = K if K <= tk_max else tk_max
    Mp, Kp = _round_up(M, tm), _round_up(K, tk)
    xp = _pad2(x, Mp, Kp)
    wp = _pad2(w, Kp, N)
    rp = _pad2(res, Mp, N)
    grid = (Mp // tm, Kp // tk)
    out = pl.pallas_call(
        functools.partial(_mm_res_ln_kernel, eps=eps),
        out_shape=jax.ShapeDtypeStruct((Mp, N), out_dtype),
        grid=grid,
        in_specs=[
            pl.BlockSpec((tm, tk), lambda i, k: (i, k)),
            pl.BlockSpec((tk, N), lambda i, k: (k, 0)),
            pl.BlockSpec((1, N), lambda i, k: (0, 0)),
            pl.BlockSpec((tm, N), lambda i, k: (i, 0)),
            pl.BlockSpec((1, N), lambda i, k: (0, 0)),
            pl.BlockSpec((1, N), lambda i, k: (0, 0)),
        ],
        out_specs=pl.BlockSpec((tm, N), lambda i, k: (i, 0)),
        scratch_shapes=[pltpu.VMEM((tm, N), jnp.float32)],
        compiler_params=pltpu.CompilerParams(
            dimension_semantics=("parallel", "arbitrary"),
            vmem_limit_bytes=_VMEM_LIMIT),
    )(xp, wp, b.reshape(1, N).astype(jnp.float32), rp,
      gamma.reshape(1, N).astype(jnp.float32),
      beta.reshape(1, N).astype(jnp.float32))
    if Mp != M:
        out = out[:M]
    return out


# ------------- fused FFN (linear1+ReLU+linear2) + residual + LN -------------

def _ffn_kernel(x_ref, w1_ref, b1_ref, w2_ref, b2_ref, g_ref, be_ref, o_ref,
                acc_ref, *, eps):
    h = pl.program_id(1)

    @pl.when(h == 0)
    def _():
        acc_ref[...] = jnp.zeros_like(acc_ref)

    hid = jnp.dot(x_ref[...], w1_ref[...],
                  preferred_element_type=jnp.float32) + b1_ref[...]
    hid = jnp.maximum(hid, 0.0).astype(w2_ref.dtype)
    acc_ref[...] += jnp.dot(hid, w2_ref[...],
                            preferred_element_type=jnp.float32)

    @pl.when(h == pl.num_programs(1) - 1)
    def _():
        z = acc_ref[...] + b2_ref[...] + x_ref[...].astype(jnp.float32)
        mu = jnp.mean(z, axis=-1, keepdims=True)
        d = z - mu
        var = jnp.mean(d * d, axis=-1, keepdims=True)
        y = d * jax.lax.rsqrt(var + eps) * g_ref[...] + be_ref[...]
        o_ref[...] = y.astype(o_ref.dtype)


def ffn_res_layernorm(x, w1, b1, w2, b2, gamma, beta, eps=1e-5,
                      out_dtype=jnp.bfloat16, tm_max=256, tf_max=512):
    """out = LayerNorm(x + relu(x@w1+b1)@w2 + b2); FFN hidden stays in VMEM."""
    M, D = x.shape
    _, F = w1.shape
    tm = M if M <= tm_max else tm_max
    tf = F if F <= tf_max else tf_max
    Mp, Fp = _round_up(M, tm), _round_up(F, tf)
    xp = _pad2(x, Mp, D)
    w1p = _pad2(w1, D, Fp)
    b1p = _pad2(b1.reshape(1, F).astype(jnp.float32), 1, Fp)
    w2p = _pad2(w2, Fp, D)
    grid = (Mp // tm, Fp // tf)
    bytes_acc = ((Mp * D + D * Fp + Fp * D) * xp.dtype.itemsize
                 + Mp * D * jnp.dtype(out_dtype).itemsize)
    out = pl.pallas_call(
        functools.partial(_ffn_kernel, eps=eps),
        out_shape=jax.ShapeDtypeStruct((Mp, D), out_dtype),
        grid=grid,
        in_specs=[
            pl.BlockSpec((tm, D), lambda i, h: (i, 0)),
            pl.BlockSpec((D, tf), lambda i, h: (0, h)),
            pl.BlockSpec((1, tf), lambda i, h: (0, h)),
            pl.BlockSpec((tf, D), lambda i, h: (h, 0)),
            pl.BlockSpec((1, D), lambda i, h: (0, 0)),
            pl.BlockSpec((1, D), lambda i, h: (0, 0)),
            pl.BlockSpec((1, D), lambda i, h: (0, 0)),
        ],
        out_specs=pl.BlockSpec((tm, D), lambda i, h: (i, 0)),
        scratch_shapes=[pltpu.VMEM((tm, D), jnp.float32)],
        compiler_params=pltpu.CompilerParams(
            dimension_semantics=("parallel", "arbitrary"),
            vmem_limit_bytes=_VMEM_LIMIT),
        cost_estimate=pl.CostEstimate(flops=4 * M * F * D, transcendentals=0,
                                      bytes_accessed=bytes_acc),
    )(xp, w1p, b1p, w2p, b2.reshape(1, D).astype(jnp.float32),
      gamma.reshape(1, D).astype(jnp.float32),
      beta.reshape(1, D).astype(jnp.float32))
    if Mp != M:
        out = out[:M]
    return out


# ------------------------------- attention ---------------------------------

def _attn_kernel(q_ref, k_ref, v_ref, o_ref, *, scale):
    # Block is one (batch*head): shapes (1, L, hd). Scores/softmax in f32.
    s = jnp.einsum("bqd,bkd->bqk", q_ref[...], k_ref[...],
                   preferred_element_type=jnp.float32) * scale
    m = jnp.max(s, axis=-1, keepdims=True)
    p = jnp.exp(s - m)
    l = jnp.sum(p, axis=-1, keepdims=True)
    o = jnp.einsum("bqk,bkd->bqd", p.astype(v_ref.dtype), v_ref[...],
                   preferred_element_type=jnp.float32)
    o_ref[...] = (o * pl.reciprocal(l, approx=True)).astype(o_ref.dtype)


def attention_core(q, k, v, scale, out_dtype=jnp.bfloat16):
    """q,k,v: (B*num_heads, L, head_dim) -> softmax(q k^T * scale) v.

    Grid over (batch*head) so the pipeline has >=2 steps and v7x megacore can
    split heads across TensorCores. M2TR's L (patch count) is small, so the
    full (L, L) score block per head comfortably fits VMEM; no flash tiling.
    """
    BH, L, hd = q.shape
    spec = pl.BlockSpec((1, L, hd), lambda b: (b, 0, 0))
    return pl.pallas_call(
        functools.partial(_attn_kernel, scale=scale),
        out_shape=jax.ShapeDtypeStruct((BH, L, hd), out_dtype),
        grid=(BH,),
        in_specs=[spec, spec, spec],
        out_specs=spec,
        compiler_params=pltpu.CompilerParams(
            dimension_semantics=("parallel",),
            vmem_limit_bytes=_VMEM_LIMIT),
    )(q, k, v)


# ------------------------------- JAX glue -----------------------------------

def im2col(x_nhwc, ksize, stride, pad):
    B, H, W, C = x_nhwc.shape
    xp = jnp.pad(x_nhwc, ((0, 0), (pad, pad), (pad, pad), (0, 0)))
    Ho = (H + 2 * pad - ksize) // stride + 1
    Wo = (W + 2 * pad - ksize) // stride + 1
    cols = []
    for i in range(ksize):
        for j in range(ksize):
            cols.append(xp[:, i:i + stride * Ho:stride,
                           j:j + stride * Wo:stride, :])
    patches = jnp.stack(cols, axis=3)              # (B, Ho, Wo, k*k, C)
    return patches.reshape(B * Ho * Wo, ksize * ksize * C), Ho, Wo


def conv2d_relu(x_nhwc, w_oikk, bias, stride):
    """PyTorch-semantics Conv2d(k=3, pad=1) + ReLU via im2col + tiled matmul."""
    # TODO(synk): move the 3x3 shifted-window gather inside the matmul kernel
    # (halo loads via pl.ds) to remove the 9x im2col HBM expansion; at M2TR's
    # narrow conv widths the bf16 tiled matmul dominates the conv stage.
    Cout, Cin, kh, kw = w_oikk.shape
    wm = jnp.transpose(w_oikk, (2, 3, 1, 0)).reshape(kh * kw * Cin, Cout)
    cols, Ho, Wo = im2col(x_nhwc, kh, stride, 1)
    y = matmul_bias(cols, wm, bias, activation="relu")
    return y.reshape(x_nhwc.shape[0], Ho, Wo, Cout)


def transformer_layer(x2, p, num_heads, B, L):
    """One nn.TransformerEncoderLayer (post-norm, ReLU FFN, eval mode).

    x2: (B*L, D) bf16, rows ordered (batch, token).
    """
    D = x2.shape[-1]
    hd = D // num_heads
    scale = 1.0 / float(hd) ** 0.5

    qkv = matmul_bias(x2, p["in_proj_w_t"], p["in_proj_b"])       # (B*L, 3D)
    qkv = (qkv.reshape(B, L, 3, num_heads, hd)
              .transpose(2, 0, 3, 1, 4)                            # (3,B,nh,L,hd)
              .reshape(3, B * num_heads, L, hd))
    o = attention_core(qkv[0], qkv[1], qkv[2], scale)              # (B*nh,L,hd)
    o = (o.reshape(B, num_heads, L, hd)
          .transpose(0, 2, 1, 3)
          .reshape(B * L, D))

    # out-projection + residual + LayerNorm fused in one kernel.
    src1 = matmul_res_layernorm(o, p["out_proj_w_t"], p["out_proj_b"],
                                x2, p["ln1_g"], p["ln1_b"])
    # FFN (linear1+ReLU+linear2) + residual + LayerNorm fused; the 2048-wide
    # hidden activation never leaves VMEM.
    src2 = ffn_res_layernorm(src1, p["ff1_w_t"], p["ff1_b"],
                             p["ff2_w_t"], p["ff2_b"],
                             p["ln2_g"], p["ln2_b"])
    return src2


def m2tr_forward(x_nchw, params, *, patch_size, num_heads):
    # NCHW (PyTorch) -> NHWC bf16 for TPU conv compute (single cast at entry).
    x = jnp.transpose(x_nchw, (0, 2, 3, 1)).astype(jnp.bfloat16)
    x = conv2d_relu(x, params["conv1_w"], params["conv1_b"], stride=1)
    x = conv2d_relu(x, params["conv2_w"], params["conv2_b"], stride=2)

    B, H2, W2, C = x.shape
    P = patch_size
    nH, nW = H2 // P, W2 // P
    # Match PyTorch unfold/permute/view: per-patch feature order is (C, ph, pw).
    x_nchw2 = jnp.transpose(x, (0, 3, 1, 2))                       # (B,C,H2,W2)
    patches = (x_nchw2.reshape(B, C, nH, P, nW, P)
                      .transpose(0, 2, 4, 1, 3, 5)
                      .reshape(B * nH * nW, C * P * P))

    src = matmul_bias(patches, params["proj_w_t"], params["proj_b"])  # (B*N, D)
    N = nH * nW
    for lp in params["layers"]:
        src = transformer_layer(src, lp, num_heads, B, N)
    D = src.shape[-1]
    return src.reshape(B, N, D).astype(jnp.float32)                  # (B, N, D)


def init_params(key, in_channels, embed_dim, num_heads, num_layers,
                patch_size, dim_ff):
    del num_heads  # only shapes matter here
    keys = jax.random.split(key, 8 + num_layers)

    def nrm(k, shape, s=0.02, dtype=jnp.bfloat16):
        return (s * jax.random.normal(k, shape)).astype(dtype)

    c1 = embed_dim // 2
    params = {
        # matmul weights stored bf16 (cast once, halves HBM/VMEM traffic);
        # biases and LayerNorm params stay f32 for the f32 epilogues.
        "conv1_w": nrm(keys[0], (c1, in_channels, 3, 3)),
        "conv1_b": nrm(keys[1], (c1,), dtype=jnp.float32),
        "conv2_w": nrm(keys[2], (embed_dim, c1, 3, 3)),
        "conv2_b": nrm(keys[3], (embed_dim,), dtype=jnp.float32),
        # stored transposed: (in_features, out_features)
        "proj_w_t": nrm(keys[4], (patch_size * patch_size * embed_dim, embed_dim)),
        "proj_b": nrm(keys[5], (embed_dim,), dtype=jnp.float32),
        "layers": [],
    }
    for li in range(num_layers):
        lk = jax.random.split(keys[8 + li], 8)
        params["layers"].append({
            "in_proj_w_t": nrm(lk[0], (embed_dim, 3 * embed_dim)),
            "in_proj_b": nrm(lk[1], (3 * embed_dim,), dtype=jnp.float32),
            "out_proj_w_t": nrm(lk[2], (embed_dim, embed_dim)),
            "out_proj_b": nrm(lk[3], (embed_dim,), dtype=jnp.float32),
            "ff1_w_t": nrm(lk[4], (embed_dim, dim_ff)),
            "ff1_b": nrm(lk[5], (dim_ff,), dtype=jnp.float32),
            "ff2_w_t": nrm(lk[6], (dim_ff, embed_dim)),
            "ff2_b": nrm(lk[7], (embed_dim,), dtype=jnp.float32),
            "ln1_g": jnp.ones((embed_dim,), jnp.float32),
            "ln1_b": jnp.zeros((embed_dim,), jnp.float32),
            "ln2_g": jnp.ones((embed_dim,), jnp.float32),
            "ln2_b": jnp.zeros((embed_dim,), jnp.float32),
        })
    return params


if __name__ == "__main__":
    # Small config consistent with the module's constructor parameters.
    B, IN_CH, H, W = 2, 6, 16, 16
    EMBED_DIM, NUM_HEADS, NUM_LAYERS, PATCH = 32, 4, 2, 4
    DIM_FF = 2048  # nn.TransformerEncoderLayer default dim_feedforward

    key = jax.random.PRNGKey(0)
    kx, kp = jax.random.split(key)
    x = jax.random.normal(kx, (B, IN_CH, H, W), dtype=jnp.float32)  # NCHW
    params = init_params(kp, IN_CH, EMBED_DIM, NUM_HEADS, NUM_LAYERS,
                         PATCH, DIM_FF)

    fwd = jax.jit(functools.partial(m2tr_forward, patch_size=PATCH,
                                    num_heads=NUM_HEADS))
    out = fwd(x, params)
    jax.block_until_ready(out)

    n_patches = (H // 2 // PATCH) * (W // 2 // PATCH)
    assert out.shape == (B, n_patches, EMBED_DIM), out.shape
    assert bool(jnp.all(jnp.isfinite(out)))
    print("KERNEL_OK")
</pallas_src>

<mosaic_0001>
module attributes {stable_mosaic.version = 11 : i64} {
  func.func @_mm_kernel(%arg0: i32, %arg1: i32, %arg2: i32, %arg3: memref<256x54xbf16, #tpu.memory_space<vmem>>, %arg4: memref<54x16xbf16, #tpu.memory_space<vmem>>, %arg5: memref<1x16xf32, #tpu.memory_space<vmem>>, %arg6: memref<256x16xbf16, #tpu.memory_space<vmem>>, %arg7: memref<256x16xf32, #tpu.memory_space<vmem>>) attributes {dimension_semantics = [#tpu.dimension_semantics<parallel>, #tpu.dimension_semantics<parallel>, #tpu.dimension_semantics<arbitrary>], iteration_bounds = array<i64: 2, 1, 1>, scalar_prefetch = 0 : i64, scratch_operands = 1 : i64, tpu.core_type = #tpu.core_type<tc>, window_params = [{transform_indices = @transform_0, window_bounds = array<i64: 256, 54>}, {transform_indices = @transform_1, window_bounds = array<i64: 54, 16>}, {transform_indices = @transform_2, window_bounds = array<i64: 1, 16>}, {transform_indices = @transform_3, window_bounds = array<i64: 256, 16>}]} {
    %c0_i32 = arith.constant 0 : i32
    %0 = arith.cmpi eq, %arg2, %c0_i32 : i32
    %1 = arith.extui %0 : i1 to i32
    %c0_i32_0 = arith.constant 0 : i32
    %2 = arith.cmpi ne, %1, %c0_i32_0 : i32
    scf.if %2 {
      %cst_10 = arith.constant 0.000000e+00 : f32
      %12 = vector.broadcast %cst_10 : f32 to vector<256x16xf32>
      %c0_11 = arith.constant 0 : index
      %c0_12 = arith.constant 0 : index
      %13 = vector.load %arg7[%c0_11, %c0_12] : memref<256x16xf32, #tpu.memory_space<vmem>>, vector<256x16xf32>
      tpu.vector_store %arg7[%c0_11, %c0_12], %12 {strides = array<i32>} : memref<256x16xf32, #tpu.memory_space<vmem>>, vector<256x16xf32>,
    } else {
    }
    %c0 = arith.constant 0 : index
    %c0_1 = arith.constant 0 : index
    %3 = vector.load %arg7[%c0, %c0_1] : memref<256x16xf32, #tpu.memory_space<vmem>>, vector<256x16xf32>
    %c0_2 = arith.constant 0 : index
    %c0_3 = arith.constant 0 : index
    %4 = vector.load %arg3[%c0_2, %c0_3] : memref<256x54xbf16, #tpu.memory_space<vmem>>, vector<256x54xbf16>
    %c0_4 = arith.constant 0 : index
    %c0_5 = arith.constant 0 : index
    %5 = vector.load %arg4[%c0_4, %c0_5] : memref<54x16xbf16, #tpu.memory_space<vmem>>, vector<54x16xbf16>
    %cst = arith.constant dense<0.000000e+00> : vector<256x16xf32>
    %6 = tpu.matmul %4, %5, %cst {dimension_numbers = #tpu.dot_dimension_numbers<[1], [0], [0], [1], [0, 0, 1, 1], [], []>} : vector<256x54xbf16>, vector<54x16xbf16>, vector<256x16xf32> -> vector<256x16xf32>
    %7 = arith.addf %3, %6 : vector<256x16xf32>
    %c0_6 = arith.constant 0 : index
    %c0_7 = arith.constant 0 : index
    %8 = vector.load %arg7[%c0_6, %c0_7] : memref<256x16xf32, #tpu.memory_space<vmem>>, vector<256x16xf32>
    tpu.vector_store %arg7[%c0_6, %c0_7], %7 {strides = array<i32>} : memref<256x16xf32, #tpu.memory_space<vmem>>, vector<256x16xf32>,
    %c0_i32_8 = arith.constant 0 : i32
    %9 = arith.cmpi eq, %arg2, %c0_i32_8 : i32
    %10 = arith.extui %9 : i1 to i32
    %c0_i32_9 = arith.constant 0 : i32
    %11 = arith.cmpi ne, %10, %c0_i32_9 : i32
    scf.if %11 {
      %c0_10 = arith.constant 0 : index
      %c0_11 = arith.constant 0 : index
      %12 = vector.load %arg7[%c0_10, %c0_11] : memref<256x16xf32, #tpu.memory_space<vmem>>, vector<256x16xf32>
      %c0_12 = arith.constant 0 : index
      %c0_13 = arith.constant 0 : index
      %13 = vector.load %arg5[%c0_12, %c0_13] : memref<1x16xf32, #tpu.memory_space<vmem>>, vector<1x16xf32>
      %14 = vector.broadcast %13 : vector<1x16xf32> to vector<256x16xf32>
      %15 = arith.addf %12, %14 : vector<256x16xf32>
      %cst_14 = arith.constant 0.000000e+00 : f32
      %16 = vector.broadcast %cst_14 : f32 to vector<256x16xf32>
      %17 = arith.maximumf %15, %16 : vector<256x16xf32>
      %18 = arith.truncf %17 : vector<256x16xf32> to vector<256x16xbf16>
      %c0_15 = arith.constant 0 : index
      %c0_16 = arith.constant 0 : index
      %19 = vector.load %arg6[%c0_15, %c0_16] : memref<256x16xbf16, #tpu.memory_space<vmem>>, vector<256x16xbf16>
      tpu.vector_store %arg6[%c0_15, %c0_16], %18 {strides = array<i32>} : memref<256x16xbf16, #tpu.memory_space<vmem>>, vector<256x16xbf16>,
    } else {
    }
    return
  }
  func.func @transform_0(%arg0: i32, %arg1: i32, %arg2: i32) -> (i32, i32) {
    %c0_i32 = arith.constant 0 : i32
    return %arg0, %arg2 : i32, i32
  }
  func.func @transform_1(%arg0: i32, %arg1: i32, %arg2: i32) -> (i32, i32) {
    %c0_i32 = arith.constant 0 : i32
    return %arg2, %arg1 : i32, i32
  }
  func.func @transform_2(%arg0: i32, %arg1: i32, %arg2: i32) -> (i32, i32) {
    %c0_i32 = arith.constant 0 : i32
    %c0_i32_0 = arith.constant 0 : i32
    return %c0_i32, %arg1 : i32, i32
  }
  func.func @transform_3(%arg0: i32, %arg1: i32, %arg2: i32) -> (i32, i32) {
    %c0_i32 = arith.constant 0 : i32
    return %arg0, %arg1 : i32, i32
  }
}

module attributes {stable_mosaic.version = 11 : i64} {
  func.func @_mm_kernel(%arg0: i32, %arg1: i32, %arg2: i32, %arg3: memref<128x144xbf16, #tpu.memory_space<vmem>>, %arg4: memref<144x32xbf16, #tpu.memory_space<vmem>>, %arg5: memref<1x32xf32, #tpu.memory_space<vmem>>, %arg6: memref<128x32xbf16, #tpu.memory_space<vmem>>, %arg7: memref<128x32xf32, #tpu.memory_space<vmem>>) attributes {dimension_semantics = [#tpu.dimension_semantics<parallel>, #tpu.dimension_semantics<parallel>, #tpu.dimension_semantics<arbitrary>], iteration_bounds = array<i64: 1, 1, 1>, scalar_prefetch = 0 : i64, scratch_operands = 1 : i64, tpu.core_type = #tpu.core_type<tc>, window_params = [{transform_indices = @transform_0, window_bounds = array<i64: 128, 144>}, {transform_indices = @transform_1, window_bounds = array<i64: 144, 32>}, {transform_indices = @transform_2, window_bounds = array<i64: 1, 32>}, {transform_indices = @transform_3, window_bounds = array<i64: 128, 32>}]} {
    %c0_i32 = arith.constant 0 : i32
    %0 = arith.cmpi eq, %arg2, %c0_i32 : i32
    %1 = arith.extui %0 : i1 to i32
    %c0_i32_0 = arith.constant 0 : i32
    %2 = arith.cmpi ne, %1, %c0_i32_0 : i32
    scf.if %2 {
      %cst_10 = arith.constant 0.000000e+00 : f32
      %12 = vector.broadcast %cst_10 : f32 to vector<128x32xf32>
      %c0_11 = arith.constant 0 : index
      %c0_12 = arith.constant 0 : index
      %13 = vector.load %arg7[%c0_11, %c0_12] : memref<128x32xf32, #tpu.memory_space<vmem>>, vector<128x32xf32>
      tpu.vector_store %arg7[%c0_11, %c0_12], %12 {strides = array<i32>} : memref<128x32xf32, #tpu.memory_space<vmem>>, vector<128x32xf32>,
    } else {
    }
    %c0 = arith.constant 0 : index
    %c0_1 = arith.constant 0 : index
    %3 = vector.load %arg7[%c0, %c0_1] : memref<128x32xf32, #tpu.memory_space<vmem>>, vector<128x32xf32>
    %c0_2 = arith.constant 0 : index
    %c0_3 = arith.constant 0 : index
    %4 = vector.load %arg3[%c0_2, %c0_3] : memref<128x144xbf16, #tpu.memory_space<vmem>>, vector<128x144xbf16>
    %c0_4 = arith.constant 0 : index
    %c0_5 = arith.constant 0 : index
    %5 = vector.load %arg4[%c0_4, %c0_5] : memref<144x32xbf16, #tpu.memory_space<vmem>>, vector<144x32xbf16>
    %cst = arith.constant dense<0.000000e+00> : vector<128x32xf32>
    %6 = tpu.matmul %4, %5, %cst {dimension_numbers = #tpu.dot_dimension_numbers<[1], [0], [0], [1], [0, 0, 1, 1], [], []>} : vector<128x144xbf16>, vector<144x32xbf16>, vector<128x32xf32> -> vector<128x32xf32>
    %7 = arith.addf %3, %6 : vector<128x32xf32>
    %c0_6 = arith.constant 0 : index
    %c0_7 = arith.constant 0 : index
    %8 = vector.load %arg7[%c0_6, %c0_7] : memref<128x32xf32, #tpu.memory_space<vmem>>, vector<128x32xf32>
    tpu.vector_store %arg7[%c0_6, %c0_7], %7 {strides = array<i32>} : memref<128x32xf32, #tpu.memory_space<vmem>>, vector<128x32xf32>,
    %c0_i32_8 = arith.constant 0 : i32
    %9 = arith.cmpi eq, %arg2, %c0_i32_8 : i32
    %10 = arith.extui %9 : i1 to i32
    %c0_i32_9 = arith.constant 0 : i32
    %11 = arith.cmpi ne, %10, %c0_i32_9 : i32
    scf.if %11 {
      %c0_10 = arith.constant 0 : index
      %c0_11 = arith.constant 0 : index
      %12 = vector.load %arg7[%c0_10, %c0_11] : memref<128x32xf32, #tpu.memory_space<vmem>>, vector<128x32xf32>
      %c0_12 = arith.constant 0 : index
      %c0_13 = arith.constant 0 : index
      %13 = vector.load %arg5[%c0_12, %c0_13] : memref<1x32xf32, #tpu.memory_space<vmem>>, vector<1x32xf32>
      %14 = vector.broadcast %13 : vector<1x32xf32> to vector<128x32xf32>
      %15 = arith.addf %12, %14 : vector<128x32xf32>
      %cst_14 = arith.constant 0.000000e+00 : f32
      %16 = vector.broadcast %cst_14 : f32 to vector<128x32xf32>
      %17 = arith.maximumf %15, %16 : vector<128x32xf32>
      %18 = arith.truncf %17 : vector<128x32xf32> to vector<128x32xbf16>
      %c0_15 = arith.constant 0 : index
      %c0_16 = arith.constant 0 : index
      %19 = vector.load %arg6[%c0_15, %c0_16] : memref<128x32xbf16, #tpu.memory_space<vmem>>, vector<128x32xbf16>
      tpu.vector_store %arg6[%c0_15, %c0_16], %18 {strides = array<i32>} : memref<128x32xbf16, #tpu.memory_space<vmem>>, vector<128x32xbf16>,
    } else {
    }
    return
  }
  func.func @transform_0(%arg0: i32, %arg1: i32, %arg2: i32) -> (i32, i32) {
    %c0_i32 = arith.constant 0 : i32
    return %arg0, %arg2 : i32, i32
  }
  func.func @transform_1(%arg0: i32, %arg1: i32, %arg2: i32) -> (i32, i32) {
    %c0_i32 = arith.constant 0 : i32
    return %arg2, %arg1 : i32, i32
  }
  func.func @transform_2(%arg0: i32, %arg1: i32, %arg2: i32) -> (i32, i32) {
    %c0_i32 = arith.constant 0 : i32
    %c0_i32_0 = arith.constant 0 : i32
    return %c0_i32, %arg1 : i32, i32
  }
  func.func @transform_3(%arg0: i32, %arg1: i32, %arg2: i32) -> (i32, i32) {
    %c0_i32 = arith.constant 0 : i32
    return %arg0, %arg1 : i32, i32
  }
}

module attributes {stable_mosaic.version = 11 : i64} {
  func.func @_mm_kernel(%arg0: i32, %arg1: i32, %arg2: i32, %arg3: memref<8x512xbf16, #tpu.memory_space<vmem>>, %arg4: memref<512x32xbf16, #tpu.memory_space<vmem>>, %arg5: memref<1x32xf32, #tpu.memory_space<vmem>>, %arg6: memref<8x32xbf16, #tpu.memory_space<vmem>>, %arg7: memref<8x32xf32, #tpu.memory_space<vmem>>) attributes {dimension_semantics = [#tpu.dimension_semantics<parallel>, #tpu.dimension_semantics<parallel>, #tpu.dimension_semantics<arbitrary>], iteration_bounds = array<i64: 1, 1, 1>, scalar_prefetch = 0 : i64, scratch_operands = 1 : i64, tpu.core_type = #tpu.core_type<tc>, window_params = [{transform_indices = @transform_0, window_bounds = array<i64: 8, 512>}, {transform_indices = @transform_1, window_bounds = array<i64: 512, 32>}, {transform_indices = @transform_2, window_bounds = array<i64: 1, 32>}, {transform_indices = @transform_3, window_bounds = array<i64: 8, 32>}]} {
    %c0_i32 = arith.constant 0 : i32
    %0 = arith.cmpi eq, %arg2, %c0_i32 : i32
    %1 = arith.extui %0 : i1 to i32
    %c0_i32_0 = arith.constant 0 : i32
    %2 = arith.cmpi ne, %1, %c0_i32_0 : i32
    scf.if %2 {
      %cst_10 = arith.constant 0.000000e+00 : f32
      %12 = vector.broadcast %cst_10 : f32 to vector<8x32xf32>
      %c0_11 = arith.constant 0 : index
      %c0_12 = arith.constant 0 : index
      %13 = vector.load %arg7[%c0_11, %c0_12] : memref<8x32xf32, #tpu.memory_space<vmem>>, vector<8x32xf32>
      tpu.vector_store %arg7[%c0_11, %c0_12], %12 {strides = array<i32>} : memref<8x32xf32, #tpu.memory_space<vmem>>, vector<8x32xf32>,
    } else {
    }
    %c0 = arith.constant 0 : index
    %c0_1 = arith.constant 0 : index
    %3 = vector.load %arg7[%c0, %c0_1] : memref<8x32xf32, #tpu.memory_space<vmem>>, vector<8x32xf32>
    %c0_2 = arith.constant 0 : index
    %c0_3 = arith.constant 0 : index
    %4 = vector.load %arg3[%c0_2, %c0_3] : memref<8x512xbf16, #tpu.memory_space<vmem>>, vector<8x512xbf16>
    %c0_4 = arith.constant 0 : index
    %c0_5 = arith.constant 0 : index
    %5 = vector.load %arg4[%c0_4, %c0_5] : memref<512x32xbf16, #tpu.memory_space<vmem>>, vector<512x32xbf16>
    %cst = arith.constant dense<0.000000e+00> : vector<8x32xf32>
    %6 = tpu.matmul %4, %5, %cst {dimension_numbers = #tpu.dot_dimension_numbers<[1], [0], [0], [1], [0, 0, 1, 1], [], []>} : vector<8x512xbf16>, vector<512x32xbf16>, vector<8x32xf32> -> vector<8x32xf32>
    %7 = arith.addf %3, %6 : vector<8x32xf32>
    %c0_6 = arith.constant 0 : index
    %c0_7 = arith.constant 0 : index
    %8 = vector.load %arg7[%c0_6, %c0_7] : memref<8x32xf32, #tpu.memory_space<vmem>>, vector<8x32xf32>
    tpu.vector_store %arg7[%c0_6, %c0_7], %7 {strides = array<i32>} : memref<8x32xf32, #tpu.memory_space<vmem>>, vector<8x32xf32>,
    %c0_i32_8 = arith.constant 0 : i32
    %9 = arith.cmpi eq, %arg2, %c0_i32_8 : i32
    %10 = arith.extui %9 : i1 to i32
    %c0_i32_9 = arith.constant 0 : i32
    %11 = arith.cmpi ne, %10, %c0_i32_9 : i32
    scf.if %11 {
      %c0_10 = arith.constant 0 : index
      %c0_11 = arith.constant 0 : index
      %12 = vector.load %arg7[%c0_10, %c0_11] : memref<8x32xf32, #tpu.memory_space<vmem>>, vector<8x32xf32>
      %c0_12 = arith.constant 0 : index
      %c0_13 = arith.constant 0 : index
      %13 = vector.load %arg5[%c0_12, %c0_13] : memref<1x32xf32, #tpu.memory_space<vmem>>, vector<1x32xf32>
      %14 = vector.broadcast %13 : vector<1x32xf32> to vector<8x32xf32>
      %15 = arith.addf %12, %14 : vector<8x32xf32>
      %16 = arith.truncf %15 : vector<8x32xf32> to vector<8x32xbf16>
      %c0_14 = arith.constant 0 : index
      %c0_15 = arith.constant 0 : index
      %17 = vector.load %arg6[%c0_14, %c0_15] : memref<8x32xbf16, #tpu.memory_space<vmem>>, vector<8x32xbf16>
      tpu.vector_store %arg6[%c0_14, %c0_15], %16 {strides = array<i32>} : memref<8x32xbf16, #tpu.memory_space<vmem>>, vector<8x32xbf16>,
    } else {
    }
    return
  }
  func.func @transform_0(%arg0: i32, %arg1: i32, %arg2: i32) -> (i32, i32) {
    %c0_i32 = arith.constant 0 : i32
    return %arg0, %arg2 : i32, i32
  }
  func.func @transform_1(%arg0: i32, %arg1: i32, %arg2: i32) -> (i32, i32) {
    %c0_i32 = arith.constant 0 : i32
    return %arg2, %arg1 : i32, i32
  }
  func.func @transform_2(%arg0: i32, %arg1: i32, %arg2: i32) -> (i32, i32) {
    %c0_i32 = arith.constant 0 : i32
    %c0_i32_0 = arith.constant 0 : i32
    return %c0_i32, %arg1 : i32, i32
  }
  func.func @transform_3(%arg0: i32, %arg1: i32, %arg2: i32) -> (i32, i32) {
    %c0_i32 = arith.constant 0 : i32
    return %arg0, %arg1 : i32, i32
  }
}

module attributes {stable_mosaic.version = 11 : i64} {
  func.func @_mm_kernel(%arg0: i32, %arg1: i32, %arg2: i32, %arg3: memref<8x32xbf16, #tpu.memory_space<vmem>>, %arg4: memref<32x96xbf16, #tpu.memory_space<vmem>>, %arg5: memref<1x96xf32, #tpu.memory_space<vmem>>, %arg6: memref<8x96xbf16, #tpu.memory_space<vmem>>, %arg7: memref<8x96xf32, #tpu.memory_space<vmem>>) attributes {dimension_semantics = [#tpu.dimension_semantics<parallel>, #tpu.dimension_semantics<parallel>, #tpu.dimension_semantics<arbitrary>], iteration_bounds = array<i64: 1, 1, 1>, scalar_prefetch = 0 : i64, scratch_operands = 1 : i64, tpu.core_type = #tpu.core_type<tc>, window_params = [{transform_indices = @transform_0, window_bounds = array<i64: 8, 32>}, {transform_indices = @transform_1, window_bounds = array<i64: 32, 96>}, {transform_indices = @transform_2, window_bounds = array<i64: 1, 96>}, {transform_indices = @transform_3, window_bounds = array<i64: 8, 96>}]} {
    %c0_i32 = arith.constant 0 : i32
    %0 = arith.cmpi eq, %arg2, %c0_i32 : i32
    %1 = arith.extui %0 : i1 to i32
    %c0_i32_0 = arith.constant 0 : i32
    %2 = arith.cmpi ne, %1, %c0_i32_0 : i32
    scf.if %2 {
      %cst_10 = arith.constant 0.000000e+00 : f32
      %12 = vector.broadcast %cst_10 : f32 to vector<8x96xf32>
      %c0_11 = arith.constant 0 : index
      %c0_12 = arith.constant 0 : index
      %13 = vector.load %arg7[%c0_11, %c0_12] : memref<8x96xf32, #tpu.memory_space<vmem>>, vector<8x96xf32>
      tpu.vector_store %arg7[%c0_11, %c0_12], %12 {strides = array<i32>} : memref<8x96xf32, #tpu.memory_space<vmem>>, vector<8x96xf32>,
    } else {
    }
    %c0 = arith.constant 0 : index
    %c0_1 = arith.constant 0 : index
    %3 = vector.load %arg7[%c0, %c0_1] : memref<8x96xf32, #tpu.memory_space<vmem>>, vector<8x96xf32>
    %c0_2 = arith.constant 0 : index
    %c0_3 = arith.constant 0 : index
    %4 = vector.load %arg3[%c0_2, %c0_3] : memref<8x32xbf16, #tpu.memory_space<vmem>>, vector<8x32xbf16>
    %c0_4 = arith.constant 0 : index
    %c0_5 = arith.constant 0 : index
    %5 = vector.load %arg4[%c0_4, %c0_5] : memref<32x96xbf16, #tpu.memory_space<vmem>>, vector<32x96xbf16>
    %cst = arith.constant dense<0.000000e+00> : vector<8x96xf32>
    %6 = tpu.matmul %4, %5, %cst {dimension_numbers = #tpu.dot_dimension_numbers<[1], [0], [0], [1], [0, 0, 1, 1], [], []>} : vector<8x32xbf16>, vector<32x96xbf16>, vector<8x96xf32> -> vector<8x96xf32>
    %7 = arith.addf %3, %6 : vector<8x96xf32>
    %c0_6 = arith.constant 0 : index
    %c0_7 = arith.constant 0 : index
    %8 = vector.load %arg7[%c0_6, %c0_7] : memref<8x96xf32, #tpu.memory_space<vmem>>, vector<8x96xf32>
    tpu.vector_store %arg7[%c0_6, %c0_7], %7 {strides = array<i32>} : memref<8x96xf32, #tpu.memory_space<vmem>>, vector<8x96xf32>,
    %c0_i32_8 = arith.constant 0 : i32
    %9 = arith.cmpi eq, %arg2, %c0_i32_8 : i32
    %10 = arith.extui %9 : i1 to i32
    %c0_i32_9 = arith.constant 0 : i32
    %11 = arith.cmpi ne, %10, %c0_i32_9 : i32
    scf.if %11 {
      %c0_10 = arith.constant 0 : index
      %c0_11 = arith.constant 0 : index
      %12 = vector.load %arg7[%c0_10, %c0_11] : memref<8x96xf32, #tpu.memory_space<vmem>>, vector<8x96xf32>
      %c0_12 = arith.constant 0 : index
      %c0_13 = arith.constant 0 : index
      %13 = vector.load %arg5[%c0_12, %c0_13] : memref<1x96xf32, #tpu.memory_space<vmem>>, vector<1x96xf32>
      %14 = vector.broadcast %13 : vector<1x96xf32> to vector<8x96xf32>
      %15 = arith.addf %12, %14 : vector<8x96xf32>
      %16 = arith.truncf %15 : vector<8x96xf32> to vector<8x96xbf16>
      %c0_14 = arith.constant 0 : index
      %c0_15 = arith.constant 0 : index
      %17 = vector.load %arg6[%c0_14, %c0_15] : memref<8x96xbf16, #tpu.memory_space<vmem>>, vector<8x96xbf16>
      tpu.vector_store %arg6[%c0_14, %c0_15], %16 {strides = array<i32>} : memref<8x96xbf16, #tpu.memory_space<vmem>>, vector<8x96xbf16>,
    } else {
    }
    return
  }
  func.func @transform_0(%arg0: i32, %arg1: i32, %arg2: i32) -> (i32, i32) {
    %c0_i32 = arith.constant 0 : i32
    return %arg0, %arg2 : i32, i32
  }
  func.func @transform_1(%arg0: i32, %arg1: i32, %arg2: i32) -> (i32, i32) {
    %c0_i32 = arith.constant 0 : i32
    return %arg2, %arg1 : i32, i32
  }
  func.func @transform_2(%arg0: i32, %arg1: i32, %arg2: i32) -> (i32, i32) {
    %c0_i32 = arith.constant 0 : i32
    %c0_i32_0 = arith.constant 0 : i32
    return %c0_i32, %arg1 : i32, i32
  }
  func.func @transform_3(%arg0: i32, %arg1: i32, %arg2: i32) -> (i32, i32) {
    %c0_i32 = arith.constant 0 : i32
    return %arg0, %arg1 : i32, i32
  }
}

module attributes {stable_mosaic.version = 11 : i64} {
  func.func @_attn_kernel(%arg0: i32, %arg1: memref<1x4x8xbf16, #tpu.memory_space<vmem>>, %arg2: memref<1x4x8xbf16, #tpu.memory_space<vmem>>, %arg3: memref<1x4x8xbf16, #tpu.memory_space<vmem>>, %arg4: memref<1x4x8xbf16, #tpu.memory_space<vmem>>) attributes {dimension_semantics = [#tpu.dimension_semantics<parallel>], iteration_bounds = array<i64: 8>, scalar_prefetch = 0 : i64, scratch_operands = 0 : i64, tpu.core_type = #tpu.core_type<tc>, window_params = [{transform_indices = @transform_0, window_bounds = array<i64: 1, 4, 8>}, {transform_indices = @transform_1, window_bounds = array<i64: 1, 4, 8>}, {transform_indices = @transform_2, window_bounds = array<i64: 1, 4, 8>}, {transform_indices = @transform_3, window_bounds = array<i64: 1, 4, 8>}]} {
    %c0 = arith.constant 0 : index
    %c0_0 = arith.constant 0 : index
    %c0_1 = arith.constant 0 : index
    %0 = vector.load %arg1[%c0, %c0_0, %c0_1] : memref<1x4x8xbf16, #tpu.memory_space<vmem>>, vector<1x4x8xbf16>
    %c0_2 = arith.constant 0 : index
    %c0_3 = arith.constant 0 : index
    %c0_4 = arith.constant 0 : index
    %1 = vector.load %arg2[%c0_2, %c0_3, %c0_4] : memref<1x4x8xbf16, #tpu.memory_space<vmem>>, vector<1x4x8xbf16>
    "tpu.trace_start"() <{level = 10 : i32, message = "bqd,bkd->bqk"}> : () -> ()
    %cst = arith.constant dense<0.000000e+00> : vector<1x4x4xf32>
    %2 = tpu.matmul %0, %1, %cst {dimension_numbers = #tpu.dot_dimension_numbers<[2], [2], [1], [1], [0, 0, 0, 1, 1, 1], [0], [0]>} : vector<1x4x8xbf16>, vector<1x4x8xbf16>, vector<1x4x4xf32> -> vector<1x4x4xf32>
    "tpu.trace_stop"() : () -> ()
    %cst_5 = arith.constant 0.353553385 : f32
    %3 = vector.broadcast %cst_5 : f32 to vector<1x4x4xf32>
    %4 = arith.mulf %2, %3 : vector<1x4x4xf32>
    %cst_6 = arith.constant dense<0xFF800000> : vector<1x4xf32>
    %5 = vector.multi_reduction <maximumf>, %4, %cst_6 [2] : vector<1x4x4xf32> to vector<1x4xf32>
    %6 = vector.shape_cast %5 : vector<1x4xf32> to vector<1x4x1xf32>
    %7 = vector.broadcast %6 : vector<1x4x1xf32> to vector<1x4x4xf32>
    %8 = arith.subf %4, %7 : vector<1x4x4xf32>
    %9 = math.exp %8 : vector<1x4x4xf32>
    %cst_7 = arith.constant dense<0.000000e+00> : vector<1x4xf32>
    %10 = vector.multi_reduction <add>, %9, %cst_7 [2] : vector<1x4x4xf32> to vector<1x4xf32>
    %11 = vector.shape_cast %10 : vector<1x4xf32> to vector<1x4x1xf32>
    %12 = arith.truncf %9 : vector<1x4x4xf32> to vector<1x4x4xbf16>
    %c0_8 = arith.constant 0 : index
    %c0_9 = arith.constant 0 : index
    %c0_10 = arith.constant 0 : index
    %13 = vector.load %arg3[%c0_8, %c0_9, %c0_10] : memref<1x4x8xbf16, #tpu.memory_space<vmem>>, vector<1x4x8xbf16>
    "tpu.trace_start"() <{level = 10 : i32, message = "bqk,bkd->bqd"}> : () -> ()
    %cst_11 = arith.constant dense<0.000000e+00> : vector<1x4x8xf32>
    %14 = tpu.matmul %12, %13, %cst_11 {dimension_numbers = #tpu.dot_dimension_numbers<[2], [1], [1], [2], [0, 0, 0, 1, 1, 2], [0], [0]>} : vector<1x4x4xbf16>, vector<1x4x8xbf16>, vector<1x4x8xf32> -> vector<1x4x8xf32>
    "tpu.trace_stop"() : () -> ()
    %15 = tpu.reciprocal %11 {approx = true} : vector<1x4x1xf32> -> vector<1x4x1xf32>
    %16 = vector.broadcast %15 : vector<1x4x1xf32> to vector<1x4x8xf32>
    %17 = arith.mulf %14, %16 : vector<1x4x8xf32>
    %18 = arith.truncf %17 : vector<1x4x8xf32> to vector<1x4x8xbf16>
    %c0_12 = arith.constant 0 : index
    %c0_13 = arith.constant 0 : index
    %c0_14 = arith.constant 0 : index
    %19 = vector.load %arg4[%c0_12, %c0_13, %c0_14] : memref<1x4x8xbf16, #tpu.memory_space<vmem>>, vector<1x4x8xbf16>
    tpu.vector_store %arg4[%c0_12, %c0_13, %c0_14], %18 {strides = array<i32>} : memref<1x4x8xbf16, #tpu.memory_space<vmem>>, vector<1x4x8xbf16>,
    return
  }
  func.func @transform_0(%arg0: i32) -> (i32, i32, i32) {
    %c0_i32 = arith.constant 0 : i32
    %c0_i32_0 = arith.constant 0 : i32
    %c0_i32_1 = arith.constant 0 : i32
    return %arg0, %c0_i32, %c0_i32_0 : i32, i32, i32
  }
  func.func @transform_1(%arg0: i32) -> (i32, i32, i32) {
    %c0_i32 = arith.constant 0 : i32
    %c0_i32_0 = arith.constant 0 : i32
    %c0_i32_1 = arith.constant 0 : i32
    return %arg0, %c0_i32, %c0_i32_0 : i32, i32, i32
  }
  func.func @transform_2(%arg0: i32) -> (i32, i32, i32) {
    %c0_i32 = arith.constant 0 : i32
    %c0_i32_0 = arith.constant 0 : i32
    %c0_i32_1 = arith.constant 0 : i32
    return %arg0, %c0_i32, %c0_i32_0 : i32, i32, i32
  }
  func.func @transform_3(%arg0: i32) -> (i32, i32, i32) {
    %c0_i32 = arith.constant 0 : i32
    %c0_i32_0 = arith.constant 0 : i32
    %c0_i32_1 = arith.constant 0 : i32
    return %arg0, %c0_i32, %c0_i32_0 : i32, i32, i32
  }
}

module attributes {stable_mosaic.version = 11 : i64} {
  func.func @_mm_res_ln_kernel(%arg0: i32, %arg1: i32, %arg2: memref<8x32xbf16, #tpu.memory_space<vmem>>, %arg3: memref<32x32xbf16, #tpu.memory_space<vmem>>, %arg4: memref<1x32xf32, #tpu.memory_space<vmem>>, %arg5: memref<8x32xbf16, #tpu.memory_space<vmem>>, %arg6: memref<1x32xf32, #tpu.memory_space<vmem>>, %arg7: memref<1x32xf32, #tpu.memory_space<vmem>>, %arg8: memref<8x32xbf16, #tpu.memory_space<vmem>>, %arg9: memref<8x32xf32, #tpu.memory_space<vmem>>) attributes {dimension_semantics = [#tpu.dimension_semantics<parallel>, #tpu.dimension_semantics<arbitrary>], iteration_bounds = array<i64: 1, 1>, scalar_prefetch = 0 : i64, scratch_operands = 1 : i64, tpu.core_type = #tpu.core_type<tc>, window_params = [{transform_indices = @transform_0, window_bounds = array<i64: 8, 32>}, {transform_indices = @transform_1, window_bounds = array<i64: 32, 32>}, {pipeline_mode = #tpu.pipeline_mode<synchronous>, transform_indices = @transform_2, window_bounds = array<i64: 1, 32>}, {transform_indices = @transform_3, window_bounds = array<i64: 8, 32>}, {pipeline_mode = #tpu.pipeline_mode<synchronous>, transform_indices = @transform_4, window_bounds = array<i64: 1, 32>}, {pipeline_mode = #tpu.pipeline_mode<synchronous>, transform_indices = @transform_5, window_bounds = array<i64: 1, 32>}, {transform_indices = @transform_6, window_bounds = array<i64: 8, 32>}]} {
    %c0_i32 = arith.constant 0 : i32
    %0 = arith.cmpi eq, %arg1, %c0_i32 : i32
    %1 = arith.extui %0 : i1 to i32
    %c0_i32_0 = arith.constant 0 : i32
    %2 = arith.cmpi ne, %1, %c0_i32_0 : i32
    scf.if %2 {
      %cst_10 = arith.constant 0.000000e+00 : f32
      %12 = vector.broadcast %cst_10 : f32 to vector<8x32xf32>
      %c0_11 = arith.constant 0 : index
      %c0_12 = arith.constant 0 : index
      %13 = vector.load %arg9[%c0_11, %c0_12] : memref<8x32xf32, #tpu.memory_space<vmem>>, vector<8x32xf32>
      tpu.vector_store %arg9[%c0_11, %c0_12], %12 {strides = array<i32>} : memref<8x32xf32, #tpu.memory_space<vmem>>, vector<8x32xf32>,
    } else {
    }
    %c0 = arith.constant 0 : index
    %c0_1 = arith.constant 0 : index
    %3 = vector.load %arg9[%c0, %c0_1] : memref<8x32xf32, #tpu.memory_space<vmem>>, vector<8x32xf32>
    %c0_2 = arith.constant 0 : index
    %c0_3 = arith.constant 0 : index
    %4 = vector.load %arg2[%c0_2, %c0_3] : memref<8x32xbf16, #tpu.memory_space<vmem>>, vector<8x32xbf16>
    %c0_4 = arith.constant 0 : index
    %c0_5 = arith.constant 0 : index
    %5 = vector.load %arg3[%c0_4, %c0_5] : memref<32x32xbf16, #tpu.memory_space<vmem>>, vector<32x32xbf16>
    %cst = arith.constant dense<0.000000e+00> : vector<8x32xf32>
    %6 = tpu.matmul %4, %5, %cst {dimension_numbers = #tpu.dot_dimension_numbers<[1], [0], [0], [1], [0, 0, 1, 1], [], []>} : vector<8x32xbf16>, vector<32x32xbf16>, vector<8x32xf32> -> vector<8x32xf32>
    %7 = arith.addf %3, %6 : vector<8x32xf32>
    %c0_6 = arith.constant 0 : index
    %c0_7 = arith.constant 0 : index
    %8 = vector.load %arg9[%c0_6, %c0_7] : memref<8x32xf32, #tpu.memory_space<vmem>>, vector<8x32xf32>
    tpu.vector_store %arg9[%c0_6, %c0_7], %7 {strides = array<i32>} : memref<8x32xf32, #tpu.memory_space<vmem>>, vector<8x32xf32>,
    %c0_i32_8 = arith.constant 0 : i32
    %9 = arith.cmpi eq, %arg1, %c0_i32_8 : i32
    %10 = arith.extui %9 : i1 to i32
    %c0_i32_9 = arith.constant 0 : i32
    %11 = arith.cmpi ne, %10, %c0_i32_9 : i32
    scf.if %11 {
      %c0_10 = arith.constant 0 : index
      %c0_11 = arith.constant 0 : index
      %12 = vector.load %arg9[%c0_10, %c0_11] : memref<8x32xf32, #tpu.memory_space<vmem>>, vector<8x32xf32>
      %c0_12 = arith.constant 0 : index
      %c0_13 = arith.constant 0 : index
      %13 = vector.load %arg4[%c0_12, %c0_13] : memref<1x32xf32, #tpu.memory_space<vmem>>, vector<1x32xf32>
      %14 = vector.broadcast %13 : vector<1x32xf32> to vector<8x32xf32>
      %15 = arith.addf %12, %14 : vector<8x32xf32>
      %c0_14 = arith.constant 0 : index
      %c0_15 = arith.constant 0 : index
      %16 = vector.load %arg5[%c0_14, %c0_15] : memref<8x32xbf16, #tpu.memory_space<vmem>>, vector<8x32xbf16>
      %17 = arith.extf %16 : vector<8x32xbf16> to vector<8x32xf32>
      %18 = arith.addf %15, %17 : vector<8x32xf32>
      %cst_16 = arith.constant dense<0.000000e+00> : vector<8xf32>
      %19 = vector.multi_reduction <add>, %18, %cst_16 [1] : vector<8x32xf32> to vector<8xf32>
      %20 = vector.shape_cast %19 : vector<8xf32> to vector<8x1xf32>
      %cst_17 = arith.constant 3.200000e+01 : f32
      %21 = vector.broadcast %cst_17 : f32 to vector<8x1xf32>
      %22 = arith.divf %20, %21 : vector<8x1xf32>
      %23 = vector.broadcast %22 : vector<8x1xf32> to vector<8x32xf32>
      %24 = arith.subf %18, %23 : vector<8x32xf32>
      %25 = arith.mulf %24, %24 : vector<8x32xf32>
      %cst_18 = arith.constant dense<0.000000e+00> : vector<8xf32>
      %26 = vector.multi_reduction <add>, %25, %cst_18 [1] : vector<8x32xf32> to vector<8xf32>
      %27 = vector.shape_cast %26 : vector<8xf32> to vector<8x1xf32>
      %cst_19 = arith.constant 3.200000e+01 : f32
      %28 = vector.broadcast %cst_19 : f32 to vector<8x1xf32>
      %29 = arith.divf %27, %28 : vector<8x1xf32>
      %cst_20 = arith.constant 9.99999974E-6 : f32
      %30 = vector.broadcast %cst_20 : f32 to vector<8x1xf32>
      %31 = arith.addf %29, %30 : vector<8x1xf32>
      %32 = math.rsqrt %31 : vector<8x1xf32>
      %33 = vector.broadcast %32 : vector<8x1xf32> to vector<8x32xf32>
      %34 = arith.mulf %24, %33 : vector<8x32xf32>
      %c0_21 = arith.constant 0 : index
      %c0_22 = arith.constant 0 : index
      %35 = vector.load %arg6[%c0_21, %c0_22] : memref<1x32xf32, #tpu.memory_space<vmem>>, vector<1x32xf32>
      %36 = vector.broadcast %35 : vector<1x32xf32> to vector<8x32xf32>
      %37 = arith.mulf %34, %36 : vector<8x32xf32>
      %c0_23 = arith.constant 0 : index
      %c0_24 = arith.constant 0 : index
      %38 = vector.load %arg7[%c0_23, %c0_24] : memref<1x32xf32, #tpu.memory_space<vmem>>, vector<1x32xf32>
      %39 = vector.broadcast %38 : vector<1x32xf32> to vector<8x32xf32>
      %40 = arith.addf %37, %39 : vector<8x32xf32>
      %41 = arith.truncf %40 : vector<8x32xf32> to vector<8x32xbf16>
      %c0_25 = arith.constant 0 : index
      %c0_26 = arith.constant 0 : index
      %42 = vector.load %arg8[%c0_25, %c0_26] : memref<8x32xbf16, #tpu.memory_space<vmem>>, vector<8x32xbf16>
      tpu.vector_store %arg8[%c0_25, %c0_26], %41 {strides = array<i32>} : memref<8x32xbf16, #tpu.memory_space<vmem>>, vector<8x32xbf16>,
    } else {
    }
    return
  }
  func.func @transform_0(%arg0: i32, %arg1: i32) -> (i32, i32) {
    %c0_i32 = arith.constant 0 : i32
    return %arg0, %arg1 : i32, i32
  }
  func.func @transform_1(%arg0: i32, %arg1: i32) -> (i32, i32) {
    %c0_i32 = arith.constant 0 : i32
    %c0_i32_0 = arith.constant 0 : i32
    return %arg1, %c0_i32 : i32, i32
  }
  func.func @transform_2(%arg0: i32, %arg1: i32) -> (i32, i32) {
    %c0_i32 = arith.constant 0 : i32
    %c0_i32_0 = arith.constant 0 : i32
    %c0_i32_1 = arith.constant 0 : i32
    return %c0_i32, %c0_i32_0 : i32, i32
  }
  func.func @transform_3(%arg0: i32, %arg1: i32) -> (i32, i32) {
    %c0_i32 = arith.constant 0 : i32
    %c0_i32_0 = arith.constant 0 : i32
    return %arg0, %c0_i32 : i32, i32
  }
  func.func @transform_4(%arg0: i32, %arg1: i32) -> (i32, i32) {
    %c0_i32 = arith.constant 0 : i32
    %c0_i32_0 = arith.constant 0 : i32
    %c0_i32_1 = arith.constant 0 : i32
    return %c0_i32, %c0_i32_0 : i32, i32
  }
  func.func @transform_5(%arg0: i32, %arg1: i32) -> (i32, i32) {
    %c0_i32 = arith.constant 0 : i32
    %c0_i32_0 = arith.constant 0 : i32
    %c0_i32_1 = arith.constant 0 : i32
    return %c0_i32, %c0_i32_0 : i32, i32
  }
  func.func @transform_6(%arg0: i32, %arg1: i32) -> (i32, i32) {
    %c0_i32 = arith.constant 0 : i32
    %c0_i32_0 = arith.constant 0 : i32
    return %arg0, %c0_i32 : i32, i32
  }
}

module attributes {stable_mosaic.version = 11 : i64} {
  func.func @_ffn_kernel(%arg0: i32, %arg1: i32, %arg2: memref<8x32xbf16, #tpu.memory_space<vmem>>, %arg3: memref<32x512xbf16, #tpu.memory_space<vmem>>, %arg4: memref<1x512xf32, #tpu.memory_space<vmem>>, %arg5: memref<512x32xbf16, #tpu.memory_space<vmem>>, %arg6: memref<1x32xf32, #tpu.memory_space<vmem>>, %arg7: memref<1x32xf32, #tpu.memory_space<vmem>>, %arg8: memref<1x32xf32, #tpu.memory_space<vmem>>, %arg9: memref<8x32xbf16, #tpu.memory_space<vmem>>, %arg10: memref<8x32xf32, #tpu.memory_space<vmem>>) attributes {dimension_semantics = [#tpu.dimension_semantics<parallel>, #tpu.dimension_semantics<arbitrary>], iteration_bounds = array<i64: 1, 4>, scalar_prefetch = 0 : i64, scratch_operands = 1 : i64, tpu.core_type = #tpu.core_type<tc>, window_params = [{transform_indices = @transform_0, window_bounds = array<i64: 8, 32>}, {transform_indices = @transform_1, window_bounds = array<i64: 32, 512>}, {transform_indices = @transform_2, window_bounds = array<i64: 1, 512>}, {transform_indices = @transform_3, window_bounds = array<i64: 512, 32>}, {pipeline_mode = #tpu.pipeline_mode<synchronous>, transform_indices = @transform_4, window_bounds = array<i64: 1, 32>}, {pipeline_mode = #tpu.pipeline_mode<synchronous>, transform_indices = @transform_5, window_bounds = array<i64: 1, 32>}, {pipeline_mode = #tpu.pipeline_mode<synchronous>, transform_indices = @transform_6, window_bounds = array<i64: 1, 32>}, {transform_indices = @transform_7, window_bounds = array<i64: 8, 32>}]} {
    %c0_i32 = arith.constant 0 : i32
    %0 = arith.cmpi eq, %arg1, %c0_i32 : i32
    %1 = arith.extui %0 : i1 to i32
    %c0_i32_0 = arith.constant 0 : i32
    %2 = arith.cmpi ne, %1, %c0_i32_0 : i32
    scf.if %2 {
      %cst_15 = arith.constant 0.000000e+00 : f32
      %20 = vector.broadcast %cst_15 : f32 to vector<8x32xf32>
      %c0_16 = arith.constant 0 : index
      %c0_17 = arith.constant 0 : index
      %21 = vector.load %arg10[%c0_16, %c0_17] : memref<8x32xf32, #tpu.memory_space<vmem>>, vector<8x32xf32>
      tpu.vector_store %arg10[%c0_16, %c0_17], %20 {strides = array<i32>} : memref<8x32xf32, #tpu.memory_space<vmem>>, vector<8x32xf32>,
    } else {
    }
    %c0 = arith.constant 0 : index
    %c0_1 = arith.constant 0 : index
    %3 = vector.load %arg2[%c0, %c0_1] : memref<8x32xbf16, #tpu.memory_space<vmem>>, vector<8x32xbf16>
    %c0_2 = arith.constant 0 : index
    %c0_3 = arith.constant 0 : index
    %4 = vector.load %arg3[%c0_2, %c0_3] : memref<32x512xbf16, #tpu.memory_space<vmem>>, vector<32x512xbf16>
    %cst = arith.constant dense<0.000000e+00> : vector<8x512xf32>
    %5 = tpu.matmul %3, %4, %cst {dimension_numbers = #tpu.dot_dimension_numbers<[1], [0], [0], [1], [0, 0, 1, 1], [], []>} : vector<8x32xbf16>, vector<32x512xbf16>, vector<8x512xf32> -> vector<8x512xf32>
    %c0_4 = arith.constant 0 : index
    %c0_5 = arith.constant 0 : index
    %6 = vector.load %arg4[%c0_4, %c0_5] : memref<1x512xf32, #tpu.memory_space<vmem>>, vector<1x512xf32>
    %7 = vector.broadcast %6 : vector<1x512xf32> to vector<8x512xf32>
    %8 = arith.addf %5, %7 : vector<8x512xf32>
    %cst_6 = arith.constant 0.000000e+00 : f32
    %9 = vector.broadcast %cst_6 : f32 to vector<8x512xf32>
    %10 = arith.maximumf %8, %9 : vector<8x512xf32>
    %11 = arith.truncf %10 : vector<8x512xf32> to vector<8x512xbf16>
    %c0_7 = arith.constant 0 : index
    %c0_8 = arith.constant 0 : index
    %12 = vector.load %arg10[%c0_7, %c0_8] : memref<8x32xf32, #tpu.memory_space<vmem>>, vector<8x32xf32>
    %c0_9 = arith.constant 0 : index
    %c0_10 = arith.constant 0 : index
    %13 = vector.load %arg5[%c0_9, %c0_10] : memref<512x32xbf16, #tpu.memory_space<vmem>>, vector<512x32xbf16>
    %cst_11 = arith.constant dense<0.000000e+00> : vector<8x32xf32>
    %14 = tpu.matmul %11, %13, %cst_11 {dimension_numbers = #tpu.dot_dimension_numbers<[1], [0], [0], [1], [0, 0, 1, 1], [], []>} : vector<8x512xbf16>, vector<512x32xbf16>, vector<8x32xf32> -> vector<8x32xf32>
    %15 = arith.addf %12, %14 : vector<8x32xf32>
    %c0_12 = arith.constant 0 : index
    %c0_13 = arith.constant 0 : index
    %16 = vector.load %arg10[%c0_12, %c0_13] : memref<8x32xf32, #tpu.memory_space<vmem>>, vector<8x32xf32>
    tpu.vector_store %arg10[%c0_12, %c0_13], %15 {strides = array<i32>} : memref<8x32xf32, #tpu.memory_space<vmem>>, vector<8x32xf32>,
    %c3_i32 = arith.constant 3 : i32
    %17 = arith.cmpi eq, %arg1, %c3_i32 : i32
    %18 = arith.extui %17 : i1 to i32
    %c0_i32_14 = arith.constant 0 : i32
    %19 = arith.cmpi ne, %18, %c0_i32_14 : i32
    scf.if %19 {
      %c0_15 = arith.constant 0 : index
      %c0_16 = arith.constant 0 : index
      %20 = vector.load %arg10[%c0_15, %c0_16] : memref<8x32xf32, #tpu.memory_space<vmem>>, vector<8x32xf32>
      %c0_17 = arith.constant 0 : index
      %c0_18 = arith.constant 0 : index
      %21 = vector.load %arg6[%c0_17, %c0_18] : memref<1x32xf32, #tpu.memory_space<vmem>>, vector<1x32xf32>
      %22 = vector.broadcast %21 : vector<1x32xf32> to vector<8x32xf32>
      %23 = arith.addf %20, %22 : vector<8x32xf32>
      %c0_19 = arith.constant 0 : index
      %c0_20 = arith.constant 0 : index
      %24 = vector.load %arg2[%c0_19, %c0_20] : memref<8x32xbf16, #tpu.memory_space<vmem>>, vector<8x32xbf16>
      %25 = arith.extf %24 : vector<8x32xbf16> to vector<8x32xf32>
      %26 = arith.addf %23, %25 : vector<8x32xf32>
      %cst_21 = arith.constant dense<0.000000e+00> : vector<8xf32>
      %27 = vector.multi_reduction <add>, %26, %cst_21 [1] : vector<8x32xf32> to vector<8xf32>
      %28 = vector.shape_cast %27 : vector<8xf32> to vector<8x1xf32>
      %cst_22 = arith.constant 3.200000e+01 : f32
      %29 = vector.broadcast %cst_22 : f32 to vector<8x1xf32>
      %30 = arith.divf %28, %29 : vector<8x1xf32>
      %31 = vector.broadcast %30 : vector<8x1xf32> to vector<8x32xf32>
      %32 = arith.subf %26, %31 : vector<8x32xf32>
      %33 = arith.mulf %32, %32 : vector<8x32xf32>
      %cst_23 = arith.constant dense<0.000000e+00> : vector<8xf32>
      %34 = vector.multi_reduction <add>, %33, %cst_23 [1] : vector<8x32xf32> to vector<8xf32>
      %35 = vector.shape_cast %34 : vector<8xf32> to vector<8x1xf32>
      %cst_24 = arith.constant 3.200000e+01 : f32
      %36 = vector.broadcast %cst_24 : f32 to vector<8x1xf32>
      %37 = arith.divf %35, %36 : vector<8x1xf32>
      %cst_25 = arith.constant 9.99999974E-6 : f32
      %38 = vector.broadcast %cst_25 : f32 to vector<8x1xf32>
      %39 = arith.addf %37, %38 : vector<8x1xf32>
      %40 = math.rsqrt %39 : vector<8x1xf32>
      %41 = vector.broadcast %40 : vector<8x1xf32> to vector<8x32xf32>
      %42 = arith.mulf %32, %41 : vector<8x32xf32>
      %c0_26 = arith.constant 0 : index
      %c0_27 = arith.constant 0 : index
      %43 = vector.load %arg7[%c0_26, %c0_27] : memref<1x32xf32, #tpu.memory_space<vmem>>, vector<1x32xf32>
      %44 = vector.broadcast %43 : vector<1x32xf32> to vector<8x32xf32>
      %45 = arith.mulf %42, %44 : vector<8x32xf32>
      %c0_28 = arith.constant 0 : index
      %c0_29 = arith.constant 0 : index
      %46 = vector.load %arg8[%c0_28, %c0_29] : memref<1x32xf32, #tpu.memory_space<vmem>>, vector<1x32xf32>
      %47 = vector.broadcast %46 : vector<1x32xf32> to vector<8x32xf32>
      %48 = arith.addf %45, %47 : vector<8x32xf32>
      %49 = arith.truncf %48 : vector<8x32xf32> to vector<8x32xbf16>
      %c0_30 = arith.constant 0 : index
      %c0_31 = arith.constant 0 : index
      %50 = vector.load %arg9[%c0_30, %c0_31] : memref<8x32xbf16, #tpu.memory_space<vmem>>, vector<8x32xbf16>
      tpu.vector_store %arg9[%c0_30, %c0_31], %49 {strides = array<i32>} : memref<8x32xbf16, #tpu.memory_space<vmem>>, vector<8x32xbf16>,
    } else {
    }
    return
  }
  func.func @transform_0(%arg0: i32, %arg1: i32) -> (i32, i32) {
    %c0_i32 = arith.constant 0 : i32
    %c0_i32_0 = arith.constant 0 : i32
    return %arg0, %c0_i32 : i32, i32
  }
  func.func @transform_1(%arg0: i32, %arg1: i32) -> (i32, i32) {
    %c0_i32 = arith.constant 0 : i32
    %c0_i32_0 = arith.constant 0 : i32
    return %c0_i32, %arg1 : i32, i32
  }
  func.func @transform_2(%arg0: i32, %arg1: i32) -> (i32, i32) {
    %c0_i32 = arith.constant 0 : i32
    %c0_i32_0 = arith.constant 0 : i32
    return %c0_i32, %arg1 : i32, i32
  }
  func.func @transform_3(%arg0: i32, %arg1: i32) -> (i32, i32) {
    %c0_i32 = arith.constant 0 : i32
    %c0_i32_0 = arith.constant 0 : i32
    return %arg1, %c0_i32 : i32, i32
  }
  func.func @transform_4(%arg0: i32, %arg1: i32) -> (i32, i32) {
    %c0_i32 = arith.constant 0 : i32
    %c0_i32_0 = arith.constant 0 : i32
    %c0_i32_1 = arith.constant 0 : i32
    return %c0_i32, %c0_i32_0 : i32, i32
  }
  func.func @transform_5(%arg0: i32, %arg1: i32) -> (i32, i32) {
    %c0_i32 = arith.constant 0 : i32
    %c0_i32_0 = arith.constant 0 : i32
    %c0_i32_1 = arith.constant 0 : i32
    return %c0_i32, %c0_i32_0 : i32, i32
  }
  func.func @transform_6(%arg0: i32, %arg1: i32) -> (i32, i32) {
    %c0_i32 = arith.constant 0 : i32
    %c0_i32_0 = arith.constant 0 : i32
    %c0_i32_1 = arith.constant 0 : i32
    return %c0_i32, %c0_i32_0 : i32, i32
  }
  func.func @transform_7(%arg0: i32, %arg1: i32) -> (i32, i32) {
    %c0_i32 = arith.constant 0 : i32
    %c0_i32_0 = arith.constant 0 : i32
    return %arg0, %c0_i32 : i32, i32
  }
}

</mosaic_0001>

<llo_original>
// kernel: m2tr_forward.11
$region0: #{m2tr_forward.11}
  #allocation0 [shape = 'u32[]', space=smem, size = 0x4, offset = 0x4, fixed_abs, tag = 'smem constant byte address 0x4 - core index']
  #allocation1 [shape = 'u32[144,128]{1,0:T(1,128)}', space=vmem, size = 0x12000, scoped, tag = 'internal scratch']
  #allocation2 [shape = 'f32[256,16]{1,0:T(8,128)}', space=vmem, size = 0x20000, scoped, tag = 'scratch operand']
  %s0 = inlined_call_operand.vmem [shape: bf16[512,54], index: 0, kind: input, shape index: {}]
  %s1 = inlined_call_operand.vmem [shape: bf16[54,16], index: 1, kind: input, shape index: {}]
  %s2 = inlined_call_operand.vmem [shape: f32[1,16], index: 2, kind: input, shape index: {}]
  %s3 = inlined_call_operand.vmem [shape: bf16[512,16], index: 3, kind: output, shape index: {}]
  %s4 = sld [smem:[#allocation0]]
  $region53: #{m2tr_forward.11} parent=0
    _
  %s6 = ssub.s32 1, %s4
  %s7 = scalar_select 0, %s6, %s4
  loop: start=0, step=1, limit=4
  $region2: #{m2tr_forward.11} parent=0 // loop_pre_header
    _
  $region3: #{m2tr_forward.11} parent=0 // loop_header
    %s9 = sphi 0, %s13
    %p10 = scmp.ge.s32.totalorder %s9, 4
    %s16 = sphi 0, %s35
    %s17 = sphi 0, %s31
    %s18 = sphi 0, %s27
    %s19 = sphi 0, %s16
    %s20 = sphi 0, %s17
    %s21 = sphi 0, %s18
    %s22 = sphi 0, %s19
    %s23 = sphi 0, %s20
    %s24 = sphi 0, %s21
    %s40 = sphi 0, %s42
    %s43 = sphi 0, %s40
    %s44 = sphi 0, %s43
    %s60 = sphi 0, %s44
    %s68 = sphi 0, %s70
    %s71 = sphi 0, %s68
    %s72 = sphi 0, %s71
    %s88 = sphi 0, %s72
    %s94 = sphi 0, %s96
    %s97 = sphi 0, %s94
    %s98 = sphi 0, %s97
    %s114 = sphi 0, %s98
    %s122 = sphi 0, %s124
    %s125 = sphi 0, %s122
    %s126 = sphi 0, %s125
    %s142 = sphi 0, %s126
  $region4: #{m2tr_forward.11} parent=0 // loop_header_branch
    %12 = sbr.rel (%p10) target = $region8
  $region5: #{m2tr_forward.11} parent=0 // loop_body
    %s14 = ssub.s32 %s9, 1
    %s15 = ssub.s32 %s9, 2
    %s25 = sadd.s32 1, %s18
    %p26 = scmp.ge.s32.totalorder %s25, 1
    %s27 = scalar_select %p26, 0, %s25
    %s28 = sadd.s32 1, %s17
    %s29 = scalar_select %p26, %s28, %s17
    %p30 = scmp.ge.s32.totalorder %s29, 1
    %s31 = scalar_select %p30, 0, %s29
    %s32 = sadd.s32 1, %s16
    %s33 = scalar_select %p30, %s32, %s16
    %p34 = scmp.ge.s32.totalorder %s33, 2
    %s35 = scalar_select %p34, 0, %s33
    %s36 = ssub.s32 %s16, %s35
    %s37 = ssub.s32 %s18, %s27
    %s38 = sor.u32 %s36, %s37
    %p39 = scmp.eq.s32.totalorder %s38, 0
    %s41 = sadd.s32 %s40, 1
    %s42 = scalar_select %p39, %s40, %s41
    %p45 = pneg %p39
    %p46 = scmp.eq.s32.totalorder %s9, 1
    %p47 = por %p45, %p46
    %p48 = scmp.ne.s32.totalorder %s40, %s43
    %p49 = scmp.eq.s32.totalorder %s9, 0
    %p50 = por %p48, %p49
    %p51 = scmp.ne.s32.totalorder %s40, %s43
    %p52 = scmp.eq.s32.totalorder %s14, 1
    %p53 = por %p51, %p52
    %p54 = scmp.ne.s32.totalorder %s43, %s44
    %p55 = scmp.eq.s32.totalorder %s14, 0
    %p56 = por %p54, %p55
    %p57 = scmp.ne.s32.totalorder %s43, %s44
    %p58 = scmp.eq.s32.totalorder %s15, 1
    %p59 = por %p57, %p58
    %p61 = scmp.ne.s32.totalorder %s44, %s60
    %p62 = scmp.eq.s32.totalorder %s15, 0
    %p63 = por %p61, %p62
    %s64 = ssub.s32 %s18, %s27
    %s65 = ssub.s32 %s17, %s31
    %s66 = sor.u32 %s64, %s65
    %p67 = scmp.eq.s32.totalorder %s66, 0
    %s69 = sadd.s32 %s68, 1
    %s70 = scalar_select %p67, %s68, %s69
    %p73 = pneg %p67
    %p74 = scmp.eq.s32.totalorder %s9, 1
    %p75 = por %p73, %p74
    %p76 = scmp.ne.s32.totalorder %s68, %s71
    %p77 = scmp.eq.s32.totalorder %s9, 0
    %p78 = por %p76, %p77
    %p79 = scmp.ne.s32.totalorder %s68, %s71
    %p80 = scmp.eq.s32.totalorder %s14, 1
    %p81 = por %p79, %p80
    %p82 = scmp.ne.s32.totalorder %s71, %s72
    %p83 = scmp.eq.s32.totalorder %s14, 0
    %p84 = por %p82, %p83
    %p85 = scmp.ne.s32.totalorder %s71, %s72
    %p86 = scmp.eq.s32.totalorder %s15, 1
    %p87 = por %p85, %p86
    %p89 = scmp.ne.s32.totalorder %s72, %s88
    %p90 = scmp.eq.s32.totalorder %s15, 0
    %p91 = por %p89, %p90
    %s92 = ssub.s32 %s17, %s31
    %p93 = scmp.eq.s32.totalorder %s92, 0
    %s95 = sadd.s32 %s94, 1
    %s96 = scalar_select %p93, %s94, %s95
    %p99 = pneg %p93
    %p100 = scmp.eq.s32.totalorder %s9, 1
    %p101 = por %p99, %p100
    %p102 = scmp.ne.s32.totalorder %s94, %s97
    %p103 = scmp.eq.s32.totalorder %s9, 0
    %p104 = por %p102, %p103
    %p105 = scmp.ne.s32.totalorder %s94, %s97
    %p106 = scmp.eq.s32.totalorder %s14, 1
    %p107 = por %p105, %p106
    %p108 = scmp.ne.s32.totalorder %s97, %s98
    %p109 = scmp.eq.s32.totalorder %s14, 0
    %p110 = por %p108, %p109
    %p111 = scmp.ne.s32.totalorder %s97, %s98
    %p112 = scmp.eq.s32.totalorder %s15, 1
    %p113 = por %p111, %p112
    %p115 = scmp.ne.s32.totalorder %s98, %s114
    %p116 = scmp.eq.s32.totalorder %s15, 0
    %p117 = por %p115, %p116
    %s118 = ssub.s32 %s16, %s35
    %s119 = ssub.s32 %s17, %s31
    %s120 = sor.u32 %s118, %s119
    %p121 = scmp.eq.s32.totalorder %s120, 0
    %s123 = sadd.s32 %s122, 1
    %s124 = scalar_select %p121, %s122, %s123
    %p127 = pneg %p121
    %p128 = scmp.eq.s32.totalorder %s9, 1
    %p129 = por %p127, %p128
    %p130 = scmp.ne.s32.totalorder %s122, %s125
    %p131 = scmp.eq.s32.totalorder %s9, 0
    %p132 = por %p130, %p131
    %p133 = scmp.ne.s32.totalorder %s122, %s125
    %p134 = scmp.eq.s32.totalorder %s14, 1
    %p135 = por %p133, %p134
    %p136 = scmp.ne.s32.totalorder %s125, %s126
    %p137 = scmp.eq.s32.totalorder %s14, 0
    %p138 = por %p136, %p137
    %p139 = scmp.ne.s32.totalorder %s125, %s126
    %p140 = scmp.eq.s32.totalorder %s15, 1
    %p141 = por %p139, %p140
    %p143 = scmp.ne.s32.totalorder %s126, %s142
    %p144 = scmp.eq.s32.totalorder %s15, 0
    %p145 = por %p143, %p144
    %p146 = scmp.le.s32.totalorder 1, %s9
    %p147 = scmp.lt.s32.totalorder %s9, 3
    %p148 = pnand %p146, %p147
    %p149 = pneg %p148
    // Predicated region
    $region9: #{m2tr_forward.11} parent=5 // pred_check
      _
    $region10: #{m2tr_forward.11} parent=5 // pred_check_branch
      %151 = sbr.rel (%p148) target = $region12
    $region11: #{m2tr_forward.11} parent=5 // pred_region
      %s152 = ssub.s32 %s9, 1
      // Predicated region
      $region13: #{m2tr_forward.11} parent=11 // pred_check
        %p153 = pneg %p84
      $region14: #{m2tr_forward.11} parent=11 // pred_check_branch
        %155 = sbr.rel (%p153) target = $region16
      $region15: #{m2tr_forward.11} parent=11 // pred_region
        %s156 = smul.u32 7, %s21
        %p157 = scmp.lt.s32.totalorder %s156, 6
        %s158 = scalar_select %p157, %s156, 6
        %p159 = scmp.lt.s32.totalorder %s20, 0
        %s160 = scalar_select %p159, %s20, 0
        %s161 = sadd.s32 %s160, %s158
        %s162 = smul.addr %s161, 4
        %s163 = scalar_lea.vmem %s1, %s162
        %s164 = smul.u32 7, %s21
      $region16: #{m2tr_forward.11} parent=11 // pred_fallthru
        _
      // Predicated region
      $region17: #{m2tr_forward.11} parent=11 // pred_check
        %p165 = pneg %p110
      $region18: #{m2tr_forward.11} parent=11 // pred_check_branch
        %167 = sbr.rel (%p165) target = $region20
      $region19: #{m2tr_forward.11} parent=11 // pred_region
        %p168 = scmp.lt.s32.totalorder %s20, 0
        %s169 = scalar_select %p168, %s20, 0
        %s170 = scalar_lea.vmem %s2, %s169
      $region20: #{m2tr_forward.11} parent=11 // pred_fallthru
        _
    $region12: #{m2tr_forward.11} parent=5 // pred_fallthru
      _
    %p171 = scmp.lt.s32.totalorder %s9, 2
    // Predicated region
    $region21: #{m2tr_forward.11} parent=5 // pred_check
      %p172 = pneg %p171
    $region22: #{m2tr_forward.11} parent=5 // pred_check_branch
      %174 = sbr.rel (%p172) target = $region24
    $region23: #{m2tr_forward.11} parent=5 // pred_region
      // Predicated region
      $region25: #{m2tr_forward.11} parent=23 // pred_check
        %p175 = pneg %p50
      $region26: #{m2tr_forward.11} parent=23 // pred_check_branch
        %177 = sbr.rel (%p175) target = $region28
      $region27: #{m2tr_forward.11} parent=23 // pred_region
        %s178 = smul.u32 32, %s16
        %p179 = scmp.lt.s32.totalorder %s178, 63
        %s180 = scalar_select %p179, %s178, 63
        %p181 = scmp.lt.s32.totalorder %s18, 0
        %s182 = scalar_select %p181, %s18, 0
        %s183 = sadd.s32 %s182, %s180
        %s184 = smul.addr %s183, 4
        %s185 = scalar_lea.vmem %s0, %s184
        %s186 = smul.u32 32, %s16
      $region28: #{m2tr_forward.11} parent=23 // pred_fallthru
        _
    $region24: #{m2tr_forward.11} parent=5 // pred_fallthru
      _
    %p187 = scmp.le.s32.totalorder 1, %s9
    %p188 = scmp.lt.s32.totalorder %s9, 3
    %p189 = pnand %p187, %p188
    %p190 = pneg %p189
    // Predicated region
    $region29: #{m2tr_forward.11} parent=5 // pred_check
      _
    $region30: #{m2tr_forward.11} parent=5 // pred_check_branch
      %192 = sbr.rel (%p189) target = $region32
    $region31: #{m2tr_forward.11} parent=5 // pred_region
      %s193 = ssub.s32 %s9, 1
      %s194 = smul.u32 32, %s19
      %p195 = scmp.lt.s32.totalorder %s194, 63
      %s196 = scalar_select %p195, %s194, 63
      %p197 = scmp.lt.s32.totalorder %s21, 0
      %s198 = scalar_select %p197, %s21, 0
      %s199 = sadd.s32 %s198, %s196
      %s200 = smul.addr %s199, 4
      %s201 = scalar_lea.vmem %s0, %s200
      %p202 = pneg %p56
      %p203 = pneg %p53
      %s204 = smul.u32 7, %s21
      %p205 = scmp.lt.s32.totalorder %s204, 6
      %s206 = scalar_select %p205, %s204, 6
      %p207 = scmp.lt.s32.totalorder %s20, 0
      %s208 = scalar_select %p207, %s20, 0
      %s209 = sadd.s32 %s208, %s206
      %s210 = smul.addr %s209, 4
      %s211 = scalar_lea.vmem %s1, %s210
      %p212 = pneg %p84
      %p213 = pneg %p81
      %p214 = scmp.lt.s32.totalorder %s20, 0
      %s215 = scalar_select %p214, %s20, 0
      %s216 = scalar_lea.vmem %s2, %s215
      %p217 = pneg %p110
      %p218 = pneg %p107
      %p219 = pneg %p138
      %p220 = pneg %p135
      %s221 = smul.u32 32, %s19
      %p222 = scmp.lt.s32.totalorder %s221, 63
      %s223 = scalar_select %p222, %s221, 63
      %p224 = scmp.lt.s32.totalorder %s20, 0
      %s225 = scalar_select %p224, %s20, 0
      %s226 = sadd.s32 %s225, %s223
      %s227 = smul.addr %s226, 4
      %s228 = scalar_lea.vmem %s3, %s227
      %s229 = smul.u32 32, %s19
      %p230 = scmp.lt.s32.totalorder %s229, 63
      %s231 = scalar_select %p230, %s229, 63
      %p232 = scmp.lt.s32.totalorder %s21, 0
      %s233 = scalar_select %p232, %s21, 0
      %s234 = sadd.s32 %s233, %s231
      %s235 = smul.addr %s234, 4
      %s236 = scalar_lea.vmem %s0, %s235
      %s237 = smul.u32 32, %s19
      %s238 = smul.u32 7, %s21
      %p239 = scmp.lt.s32.totalorder %s238, 6
      %s240 = scalar_select %p239, %s238, 6
      %p241 = scmp.lt.s32.totalorder %s20, 0
      %s242 = scalar_select %p241, %s20, 0
      %s243 = sadd.s32 %s242, %s240
      %s244 = smul.addr %s243, 4
      %s245 = scalar_lea.vmem %s1, %s244
      %s246 = smul.u32 7, %s21
      %p247 = scmp.lt.s32.totalorder %s20, 0
      %s248 = scalar_select %p247, %s20, 0
      %s249 = scalar_lea.vmem %s2, %s248
      %s250 = smul.u32 32, %s19
      %p251 = scmp.lt.s32.totalorder %s250, 63
      %s252 = scalar_select %p251, %s250, 63
      %p253 = scmp.lt.s32.totalorder %s20, 0
      %s254 = scalar_select %p253, %s20, 0
      %s255 = sadd.s32 %s254, %s252
      %s256 = smul.addr %s255, 4
      %s257 = scalar_lea.vmem %s3, %s256
      %s258 = smul.u32 32, %s19
      %p260 = scmp.eq.s32.totalorder %s21, 0
      // Predicated region
      $region33: #{m2tr_forward.11} parent=31 // pred_check
        %p261 = pneg %p260
      $region34: #{m2tr_forward.11} parent=31 // pred_check_branch
        %263 = sbr.rel (%p261) target = $region36
      $region35: #{m2tr_forward.11} parent=31 // pred_region
        %vm264 = vcmask 130048
        %265 = vst.msk [vmem:[#allocation2] sm:$0xff] %vm264, 0.0
        %266 = vst.msk [vmem:[#allocation2 + $0x8] sm:$0xff] %vm264, 0.0
        %267 = vst.msk [vmem:[#allocation2 + $0x10] sm:$0xff] %vm264, 0.0
        %268 = vst.msk [vmem:[#allocation2 + $0x18] sm:$0xff] %vm264, 0.0
        %269 = vst.msk [vmem:[#allocation2 + $0x20] sm:$0xff] %vm264, 0.0
        %270 = vst.msk [vmem:[#allocation2 + $0x28] sm:$0xff] %vm264, 0.0
        %271 = vst.msk [vmem:[#allocation2 + $0x30] sm:$0xff] %vm264, 0.0
        %272 = vst.msk [vmem:[#allocation2 + $0x38] sm:$0xff] %vm264, 0.0
        %273 = vst.msk [vmem:[#allocation2 + $0x40] sm:$0xff] %vm264, 0.0
        %274 = vst.msk [vmem:[#allocation2 + $0x48] sm:$0xff] %vm264, 0.0
        %275 = vst.msk [vmem:[#allocation2 + $0x50] sm:$0xff] %vm264, 0.0
        %276 = vst.msk [vmem:[#allocation2 + $0x58] sm:$0xff] %vm264, 0.0
        %277 = vst.msk [vmem:[#allocation2 + $0x60] sm:$0xff] %vm264, 0.0
        %278 = vst.msk [vmem:[#allocation2 + $0x68] sm:$0xff] %vm264, 0.0
        %279 = vst.msk [vmem:[#allocation2 + $0x70] sm:$0xff] %vm264, 0.0
        %280 = vst.msk [vmem:[#allocation2 + $0x78] sm:$0xff] %vm264, 0.0
        %281 = vst.msk [vmem:[#allocation2 + $0x80] sm:$0xff] %vm264, 0.0
        %282 = vst.msk [vmem:[#allocation2 + $0x88] sm:$0xff] %vm264, 0.0
        %283 = vst.msk [vmem:[#allocation2 + $0x90] sm:$0xff] %vm264, 0.0
        %284 = vst.msk [vmem:[#allocation2 + $0x98] sm:$0xff] %vm264, 0.0
        %285 = vst.msk [vmem:[#allocation2 + $0xa0] sm:$0xff] %vm264, 0.0
        %286 = vst.msk [vmem:[#allocation2 + $0xa8] sm:$0xff] %vm264, 0.0
        %287 = vst.msk [vmem:[#allocation2 + $0xb0] sm:$0xff] %vm264, 0.0
        %288 = vst.msk [vmem:[#allocation2 + $0xb8] sm:$0xff] %vm264, 0.0
        %289 = vst.msk [vmem:[#allocation2 + $0xc0] sm:$0xff] %vm264, 0.0
        %290 = vst.msk [vmem:[#allocation2 + $0xc8] sm:$0xff] %vm264, 0.0
        %291 = vst.msk [vmem:[#allocation2 + $0xd0] sm:$0xff] %vm264, 0.0
        %292 = vst.msk [vmem:[#allocation2 + $0xd8] sm:$0xff] %vm264, 0.0
        %293 = vst.msk [vmem:[#allocation2 + $0xe0] sm:$0xff] %vm264, 0.0
        %294 = vst.msk [vmem:[#allocation2 + $0xe8] sm:$0xff] %vm264, 0.0
        %295 = vst.msk [vmem:[#allocation2 + $0xf0] sm:$0xff] %vm264, 0.0
        %296 = vst.msk [vmem:[#allocation2 + $0xf8] sm:$0xff] %vm264, 0.0
      $region36: #{m2tr_forward.11} parent=31 // pred_fallthru
        _
      %v297 = vld [vmem:[#allocation2] sm:$0xff]
      %v298 = vld [vmem:[#allocation2 + $0x8] sm:$0xff]
      %v299 = vld [vmem:[#allocation2 + $0x10] sm:$0xff]
      %v300 = vld [vmem:[#allocation2 + $0x18] sm:$0xff]
      %v301 = vld [vmem:[#allocation2 + $0x20] sm:$0xff]
      %v302 = vld [vmem:[#allocation2 + $0x28] sm:$0xff]
      %v303 = vld [vmem:[#allocation2 + $0x30] sm:$0xff]
      %v304 = vld [vmem:[#allocation2 + $0x38] sm:$0xff]
      %v305 = vld [vmem:[#allocation2 + $0x40] sm:$0xff]
      %v306 = vld [vmem:[#allocation2 + $0x48] sm:$0xff]
      %v307 = vld [vmem:[#allocation2 + $0x50] sm:$0xff]
      %v308 = vld [vmem:[#allocation2 + $0x58] sm:$0xff]
      %v309 = vld [vmem:[#allocation2 + $0x60] sm:$0xff]
      %v310 = vld [vmem:[#allocation2 + $0x68] sm:$0xff]
      %v311 = vld [vmem:[#allocation2 + $0x70] sm:$0xff]
      %v312 = vld [vmem:[#allocation2 + $0x78] sm:$0xff]
      %v313 = vld [vmem:[#allocation2 + $0x80] sm:$0xff]
      %v314 = vld [vmem:[#allocation2 + $0x88] sm:$0xff]
      %v315 = vld [vmem:[#allocation2 + $0x90] sm:$0xff]
      %v316 = vld [vmem:[#allocation2 + $0x98] sm:$0xff]
      %v317 = vld [vmem:[#allocation2 + $0xa0] sm:$0xff]
      %v318 = vld [vmem:[#allocation2 + $0xa8] sm:$0xff]
      %v319 = vld [vmem:[#allocation2 + $0xb0] sm:$0xff]
      %v320 = vld [vmem:[#allocation2 + $0xb8] sm:$0xff]
      %v321 = vld [vmem:[#allocation2 + $0xc0] sm:$0xff]
      %v322 = vld [vmem:[#allocation2 + $0xc8] sm:$0xff]
      %v323 = vld [vmem:[#allocation2 + $0xd0] sm:$0xff]
      %v324 = vld [vmem:[#allocation2 + $0xd8] sm:$0xff]
      %v325 = vld [vmem:[#allocation2 + $0xe0] sm:$0xff]
      %v326 = vld [vmem:[#allocation2 + $0xe8] sm:$0xff]
      %v327 = vld [vmem:[#allocation2 + $0xf0] sm:$0xff]
      %v328 = vld [vmem:[#allocation2 + $0xf8] sm:$0xff]
      %v329 = vld [vmem:[%s236] sm:$0xf]
      %v330 = vld [vmem:[%s236 + $0x4] sm:$0xf]
      %v331 = vld [vmem:[%s236 + $0x8] sm:$0xf]
      %v332 = vld [vmem:[%s236 + $0xc] sm:$0xf]
      %v333 = vld [vmem:[%s236 + $0x10] sm:$0xf]
      %v334 = vld [vmem:[%s236 + $0x14] sm:$0xf]
      %v335 = vld [vmem:[%s236 + $0x18] sm:$0xf]
      %v336 = vld [vmem:[%s236 + $0x1c] sm:$0xf]
      %v337 = vld [vmem:[%s236 + $0x20] sm:$0xf]
      %v338 = vld [vmem:[%s236 + $0x24] sm:$0xf]
      %v339 = vld [vmem:[%s236 + $0x28] sm:$0xf]
      %v340 = vld [vmem:[%s236 + $0x2c] sm:$0xf]
      %v341 = vld [vmem:[%s236 + $0x30] sm:$0xf]
      %v342 = vld [vmem:[%s236 + $0x34] sm:$0xf]
      %v343 = vld [vmem:[%s236 + $0x38] sm:$0xf]
      %v344 = vld [vmem:[%s236 + $0x3c] sm:$0xf]
      %v345 = vld [vmem:[%s236 + $0x40] sm:$0xf]
      %v346 = vld [vmem:[%s236 + $0x44] sm:$0xf]
      %v347 = vld [vmem:[%s236 + $0x48] sm:$0xf]
      %v348 = vld [vmem:[%s236 + $0x4c] sm:$0xf]
      %v349 = vld [vmem:[%s236 + $0x50] sm:$0xf]
      %v350 = vld [vmem:[%s236 + $0x54] sm:$0xf]
      %v351 = vld [vmem:[%s236 + $0x58] sm:$0xf]
      %v352 = vld [vmem:[%s236 + $0x5c] sm:$0xf]
      %v353 = vld [vmem:[%s236 + $0x60] sm:$0xf]
      %v354 = vld [vmem:[%s236 + $0x64] sm:$0xf]
      %v355 = vld [vmem:[%s236 + $0x68] sm:$0xf]
      %v356 = vld [vmem:[%s236 + $0x6c] sm:$0xf]
      %v357 = vld [vmem:[%s236 + $0x70] sm:$0xf]
      %v358 = vld [vmem:[%s236 + $0x74] sm:$0xf]
      %v359 = vld [vmem:[%s236 + $0x78] sm:$0xf]
      %v360 = vld [vmem:[%s236 + $0x7c] sm:$0xf]
      %v361 = vld [vmem:[%s245] sm:$0xf]
      %v362 = vld [vmem:[%s245 + $0x4] sm:$0xf]
      %v363 = vld [vmem:[%s245 + $0x8] sm:$0xf]
      %v364 = vld [vmem:[%s245 + $0xc] sm:$0xf]
      %v365 = vld [vmem:[%s245 + $0x10] sm:$0xf]
      %v366 = vld [vmem:[%s245 + $0x14] sm:$0xf]
      %v367 = vld [vmem:[%s245 + $0x18] sm:$0x7]
      %v400 = vunpack.c.l.b16 %v329
      %v401 = vunpack.c.l.b16 %v330
      %v402 = vunpack.c.l.b16 %v331
      %v403 = vunpack.c.l.b16 %v332
      %v404 = vunpack.c.l.b16 %v333
      %v405 = vunpack.c.l.b16 %v334
      %v406 = vunpack.c.l.b16 %v335
      %v407 = vunpack.c.l.b16 %v336
      %v408 = vunpack.c.l.b16 %v337
      %v409 = vunpack.c.l.b16 %v338
      %v410 = vunpack.c.l.b16 %v339
      %v411 = vunpack.c.l.b16 %v340
      %v412 = vunpack.c.l.b16 %v341
      %v413 = vunpack.c.l.b16 %v342
      %v414 = vunpack.c.l.b16 %v343
      %v415 = vunpack.c.l.b16 %v344
      %v416 = vunpack.c.l.b16 %v345
      %v417 = vunpack.c.l.b16 %v346
      %v418 = vunpack.c.l.b16 %v347
      %v419 = vunpack.c.l.b16 %v348
      %v420 = vunpack.c.l.b16 %v349
      %v421 = vunpack.c.l.b16 %v350
      %v422 = vunpack.c.l.b16 %v351
      %v423 = vunpack.c.l.b16 %v352
      %v424 = vunpack.c.l.b16 %v353
      %v425 = vunpack.c.l.b16 %v354
      %v426 = vunpack.c.l.b16 %v355
      %v427 = vunpack.c.l.b16 %v356
      %v428 = vunpack.c.l.b16 %v357
      %v429 = vunpack.c.l.b16 %v358
      %v430 = vunpack.c.l.b16 %v359
      %v431 = vunpack.c.l.b16 %v360
      %v432 = vpack.c.b16 %v401, %v400
      %v433 = vpack.c.b16 %v403, %v402
      %v434 = vpack.c.b16 %v405, %v404
      %v435 = vpack.c.b16 %v407, %v406
      %v436 = vpack.c.b16 %v409, %v408
      %v437 = vpack.c.b16 %v411, %v410
      %v438 = vpack.c.b16 %v413, %v412
      %v439 = vpack.c.b16 %v415, %v414
      %v440 = vpack.c.b16 %v417, %v416
      %v441 = vpack.c.b16 %v419, %v418
      %v442 = vpack.c.b16 %v421, %v420
      %v443 = vpack.c.b16 %v423, %v422
      %v444 = vpack.c.b16 %v425, %v424
      %v445 = vpack.c.b16 %v427, %v426
      %v446 = vpack.c.b16 %v429, %v428
      %v447 = vpack.c.b16 %v431, %v430
      %v455 = vunpack.c.l.b16 %v361
      %v456 = vunpack.c.l.b16 %v362
      %v457 = vunpack.c.l.b16 %v363
      %v458 = vunpack.c.l.b16 %v364
      %v459 = vunpack.c.l.b16 %v365
      %v460 = vunpack.c.l.b16 %v366
      %v461 = vunpack.c.l.b16 %v367
      %v462 = vpack.c.b16 %v456, %v455
      %v463 = vpack.c.b16 %v458, %v457
      %v464 = vpack.c.b16 %v460, %v459
      %v465 = vpack.c.b16 %v461, %v461
      %vm469 = vcmask 441344
      %v471 = vsel %vm469, %v432, 0
      %v474 = vsel %vm469, %v433, 0
      %v477 = vsel %vm469, %v434, 0
      %v480 = vsel %vm469, %v435, 0
      %v483 = vsel %vm469, %v436, 0
      %v486 = vsel %vm469, %v437, 0
      %v489 = vsel %vm469, %v438, 0
      %v492 = vsel %vm469, %v439, 0
      %v495 = vsel %vm469, %v440, 0
      %v498 = vsel %vm469, %v441, 0
      %v501 = vsel %vm469, %v442, 0
      %v504 = vsel %vm469, %v443, 0
      %v507 = vsel %vm469, %v444, 0
      %v510 = vsel %vm469, %v445, 0
      %v513 = vsel %vm469, %v446, 0
      %v516 = vsel %vm469, %v447, 0
      %vm518 = vcmask 1042432
      %v520 = vsel %vm518, %v465, 0
      %522 = vmatprep.subr.bf16.mxu0 0
      %523 = vmatpush1.bf16.msra.mxu0 %v462
      %524 = vmatprep.subr.bf16.mxu0 0
      %525 = vmatpush1.bf16.msra.mxu0 %v463
      %526 = vmatprep.subr.bf16.mxu0 0
      %527 = vmatpush1.bf16.msra.mxu0 %v464
      %528 = vmatprep.subr.bf16.mxu0 0
      %529 = vmatpush1.bf16.msra.mxu0 %v520
      %530 = vmatprep.subr.bf16.mxu0 0
      %531 = vmatpush1.bf16.msra.mxu0 0
      %532 = vmatprep.subr.bf16.mxu0 0
      %533 = vmatpush1.bf16.msra.mxu0 0
      %534 = vmatprep.subr.bf16.mxu0 0
      %535 = vmatpush1.bf16.msra.mxu0 0
      %536 = vmatprep.subr.bf16.mxu0 0
      %537 = vmatpush1.bf16.msra.mxu0 0
      %538 = vmatprep.subr.bf16.mxu0 0
      %539 = vmatpush1.bf16.msra.mxu0 0
      %540 = vmatprep.subr.bf16.mxu0 0
      %541 = vmatpush1.bf16.msra.mxu0 0
      %542 = vmatprep.subr.bf16.mxu0 0
      %543 = vmatpush1.bf16.msra.mxu0 0
      %544 = vmatprep.subr.bf16.mxu0 0
      %545 = vmatpush1.bf16.msra.mxu0 0
      %546 = vmatprep.subr.bf16.mxu0 0
      %547 = vmatpush1.bf16.msra.mxu0 0
      %548 = vmatprep.subr.bf16.mxu0 0
      %549 = vmatpush1.bf16.msra.mxu0 0
      %550 = vmatprep.subr.bf16.mxu0 0
      %551 = vmatpush1.bf16.msra.mxu0 0
      %552 = vmatprep.subr.bf16.mxu0 0
      %553 = vmatpush1.bf16.msra.mxu0 0
      %554 = vmatprep.mubr.bf16.mxu0 0
      %555 = vmatmul.mubr.bf16.gmra.mrb[0].mxu0 %v471
      %v556 = vpop.f32.mrb[0].mxu0
      %v557 = vadd.f32 0.0, %v556
      %v558 = vpop.f32.mrb[0].mxu0
      %v559 = vpop.f32.mrb[0].mxu0
      %v560 = vadd.f32 0.0, %v559
      %v561 = vpop.f32.mrb[0].mxu0
      %562 = vmatprep.mubr.bf16.mxu0 0
      %563 = vmatmul.mubr.bf16.gmra.mrb[0].mxu0 %v474
      %v564 = vpop.f32.mrb[0].mxu0
      %v565 = vadd.f32 0.0, %v564
      %v566 = vpop.f32.mrb[0].mxu0
      %v567 = vpop.f32.mrb[0].mxu0
      %v568 = vadd.f32 0.0, %v567
      %v569 = vpop.f32.mrb[0].mxu0
      %570 = vmatprep.mubr.bf16.mxu0 0
      %571 = vmatmul.mubr.bf16.gmra.mrb[0].mxu0 %v477
      %v572 = vpop.f32.mrb[0].mxu0
      %v573 = vadd.f32 0.0, %v572
      %v574 = vpop.f32.mrb[0].mxu0
      %v575 = vpop.f32.mrb[0].mxu0
      %v576 = vadd.f32 0.0, %v575
      %v577 = vpop.f32.mrb[0].mxu0
      %578 = vmatprep.mubr.bf16.mxu0 0
      %579 = vmatmul.mubr.bf16.gmra.mrb[0].mxu0 %v480
      %v580 = vpop.f32.mrb[0].mxu0
      %v581 = vadd.f32 0.0, %v580
      %v582 = vpop.f32.mrb[0].mxu0
      %v583 = vpop.f32.mrb[0].mxu0
      %v584 = vadd.f32 0.0, %v583
      %v585 = vpop.f32.mrb[0].mxu0
      %586 = vmatprep.mubr.bf16.mxu0 0
      %587 = vmatmul.mubr.bf16.gmra.mrb[0].mxu0 %v483
      %v588 = vpop.f32.mrb[0].mxu0
      %v589 = vadd.f32 0.0, %v588
      %v590 = vpop.f32.mrb[0].mxu0
      %v591 = vpop.f32.mrb[0].mxu0
      %v592 = vadd.f32 0.0, %v591
      %v593 = vpop.f32.mrb[0].mxu0
      %594 = vmatprep.mubr.bf16.mxu0 0
      %595 = vmatmul.mubr.bf16.gmra.mrb[0].mxu0 %v486
      %v596 = vpop.f32.mrb[0].mxu0
      %v597 = vadd.f32 0.0, %v596
      %v598 = vpop.f32.mrb[0].mxu0
      %v599 = vpop.f32.mrb[0].mxu0
      %v600 = vadd.f32 0.0, %v599
      %v601 = vpop.f32.mrb[0].mxu0
      %602 = vmatprep.mubr.bf16.mxu0 0
      %603 = vmatmul.mubr.bf16.gmra.mrb[0].mxu0 %v489
      %v604 = vpop.f32.mrb[0].mxu0
      %v605 = vadd.f32 0.0, %v604
      %v606 = vpop.f32.mrb[0].mxu0
      %v607 = vpop.f32.mrb[0].mxu0
      %v608 = vadd.f32 0.0, %v607
      %v609 = vpop.f32.mrb[0].mxu0
      %610 = vmatprep.mubr.bf16.mxu0 0
      %611 = vmatmul.mubr.bf16.gmra.mrb[0].mxu0 %v492
      %v612 = vpop.f32.mrb[0].mxu0
      %v613 = vadd.f32 0.0, %v612
      %v614 = vpop.f32.mrb[0].mxu0
      %v615 = vpop.f32.mrb[0].mxu0
      %v616 = vadd.f32 0.0, %v615
      %v617 = vpop.f32.mrb[0].mxu0
      %618 = vmatprep.mubr.bf16.mxu0 0
      %619 = vmatmul.mubr.bf16.gmra.mrb[0].mxu0 %v495
      %v620 = vpop.f32.mrb[0].mxu0
      %v621 = vadd.f32 0.0, %v620
      %v622 = vpop.f32.mrb[0].mxu0
      %v623 = vpop.f32.mrb[0].mxu0
      %v624 = vadd.f32 0.0, %v623
      %v625 = vpop.f32.mrb[0].mxu0
      %626 = vmatprep.mubr.bf16.mxu0 0
      %627 = vmatmul.mubr.bf16.gmra.mrb[0].mxu0 %v498
      %v628 = vpop.f32.mrb[0].mxu0
      %v629 = vadd.f32 0.0, %v628
      %v630 = vpop.f32.mrb[0].mxu0
      %v631 = vpop.f32.mrb[0].mxu0
      %v632 = vadd.f32 0.0, %v631
      %v633 = vpop.f32.mrb[0].mxu0
      %634 = vmatprep.mubr.bf16.mxu0 0
      %635 = vmatmul.mubr.bf16.gmra.mrb[0].mxu0 %v501
      %v636 = vpop.f32.mrb[0].mxu0
      %v637 = vadd.f32 0.0, %v636
      %v638 = vpop.f32.mrb[0].mxu0
      %v639 = vpop.f32.mrb[0].mxu0
      %v640 = vadd.f32 0.0, %v639
      %v641 = vpop.f32.mrb[0].mxu0
      %642 = vmatprep.mubr.bf16.mxu0 0
      %643 = vmatmul.mubr.bf16.gmra.mrb[0].mxu0 %v504
      %v644 = vpop.f32.mrb[0].mxu0
      %v645 = vadd.f32 0.0, %v644
      %v646 = vpop.f32.mrb[0].mxu0
      %v647 = vpop.f32.mrb[0].mxu0
      %v648 = vadd.f32 0.0, %v647
      %v649 = vpop.f32.mrb[0].mxu0
      %650 = vmatprep.mubr.bf16.mxu0 0
      %651 = vmatmul.mubr.bf16.gmra.mrb[0].mxu0 %v507
      %v652 = vpop.f32.mrb[0].mxu0
      %v653 = vadd.f32 0.0, %v652
      %v654 = vpop.f32.mrb[0].mxu0
      %v655 = vpop.f32.mrb[0].mxu0
      %v656 = vadd.f32 0.0, %v655
      %v657 = vpop.f32.mrb[0].mxu0
      %658 = vmatprep.mubr.bf16.mxu0 0
      %659 = vmatmul.mubr.bf16.gmra.mrb[0].mxu0 %v510
      %v660 = vpop.f32.mrb[0].mxu0
      %v661 = vadd.f32 0.0, %v660
      %v662 = vpop.f32.mrb[0].mxu0
      %v663 = vpop.f32.mrb[0].mxu0
      %v664 = vadd.f32 0.0, %v663
      %v665 = vpop.f32.mrb[0].mxu0
      %666 = vmatprep.mubr.bf16.mxu0 0
      %667 = vmatmul.mubr.bf16.gmra.mrb[0].mxu0 %v513
      %v668 = vpop.f32.mrb[0].mxu0
      %v669 = vadd.f32 0.0, %v668
      %v670 = vpop.f32.mrb[0].mxu0
      %v671 = vpop.f32.mrb[0].mxu0
      %v672 = vadd.f32 0.0, %v671
      %v673 = vpop.f32.mrb[0].mxu0
      %674 = vmatprep.mubr.bf16.mxu0 0
      %675 = vmatmul.mubr.bf16.gmra.mrb[0].mxu0 %v516
      %v676 = vpop.f32.mrb[0].mxu0
      %v677 = vadd.f32 0.0, %v676
      %v678 = vpop.f32.mrb[0].mxu0
      %v679 = vpop.f32.mrb[0].mxu0
      %v680 = vadd.f32 0.0, %v679
      %v681 = vpop.f32.mrb[0].mxu0
      %682 = vdwg.mxu0
      %v683 = vadd.f32 %v297, %v557
      %v684 = vadd.f32 %v298, %v560
      %v685 = vadd.f32 %v299, %v565
      %v686 = vadd.f32 %v300, %v568
      %v687 = vadd.f32 %v301, %v573
      %v688 = vadd.f32 %v302, %v576
      %v689 = vadd.f32 %v303, %v581
      %v690 = vadd.f32 %v304, %v584
      %v691 = vadd.f32 %v305, %v589
      %v692 = vadd.f32 %v306, %v592
      %v693 = vadd.f32 %v307, %v597
      %v694 = vadd.f32 %v308, %v600
      %v695 = vadd.f32 %v309, %v605
      %v696 = vadd.f32 %v310, %v608
      %v697 = vadd.f32 %v311, %v613
      %v698 = vadd.f32 %v312, %v616
      %v699 = vadd.f32 %v313, %v621
      %v700 = vadd.f32 %v314, %v624
      %v701 = vadd.f32 %v315, %v629
      %v702 = vadd.f32 %v316, %v632
      %v703 = vadd.f32 %v317, %v637
      %v704 = vadd.f32 %v318, %v640
      %v705 = vadd.f32 %v319, %v645
      %v706 = vadd.f32 %v320, %v648
      %v707 = vadd.f32 %v321, %v653
      %v708 = vadd.f32 %v322, %v656
      %v709 = vadd.f32 %v323, %v661
      %v710 = vadd.f32 %v324, %v664
      %v711 = vadd.f32 %v325, %v669
      %v712 = vadd.f32 %v326, %v672
      %v713 = vadd.f32 %v327, %v677
      %v714 = vadd.f32 %v328, %v680
      %vm715 = vcmask 130048
      %716 = vst.msk [vmem:[#allocation2] sm:$0xff] %vm715, %v683
      %717 = vst.msk [vmem:[#allocation2 + $0x8] sm:$0xff] %vm715, %v684
      %718 = vst.msk [vmem:[#allocation2 + $0x10] sm:$0xff] %vm715, %v685
      %719 = vst.msk [vmem:[#allocation2 + $0x18] sm:$0xff] %vm715, %v686
      %720 = vst.msk [vmem:[#allocation2 + $0x20] sm:$0xff] %vm715, %v687
      %721 = vst.msk [vmem:[#allocation2 + $0x28] sm:$0xff] %vm715, %v688
      %722 = vst.msk [vmem:[#allocation2 + $0x30] sm:$0xff] %vm715, %v689
      %723 = vst.msk [vmem:[#allocation2 + $0x38] sm:$0xff] %vm715, %v690
      %724 = vst.msk [vmem:[#allocation2 + $0x40] sm:$0xff] %vm715, %v691
      %725 = vst.msk [vmem:[#allocation2 + $0x48] sm:$0xff] %vm715, %v692
      %726 = vst.msk [vmem:[#allocation2 + $0x50] sm:$0xff] %vm715, %v693
      %727 = vst.msk [vmem:[#allocation2 + $0x58] sm:$0xff] %vm715, %v694
      %728 = vst.msk [vmem:[#allocation2 + $0x60] sm:$0xff] %vm715, %v695
      %729 = vst.msk [vmem:[#allocation2 + $0x68] sm:$0xff] %vm715, %v696
      %730 = vst.msk [vmem:[#allocation2 + $0x70] sm:$0xff] %vm715, %v697
      %731 = vst.msk [vmem:[#allocation2 + $0x78] sm:$0xff] %vm715, %v698
      %732 = vst.msk [vmem:[#allocation2 + $0x80] sm:$0xff] %vm715, %v699
      %733 = vst.msk [vmem:[#allocation2 + $0x88] sm:$0xff] %vm715, %v700
      %734 = vst.msk [vmem:[#allocation2 + $0x90] sm:$0xff] %vm715, %v701
      %735 = vst.msk [vmem:[#allocation2 + $0x98] sm:$0xff] %vm715, %v702
      %736 = vst.msk [vmem:[#allocation2 + $0xa0] sm:$0xff] %vm715, %v703
      %737 = vst.msk [vmem:[#allocation2 + $0xa8] sm:$0xff] %vm715, %v704
      %738 = vst.msk [vmem:[#allocation2 + $0xb0] sm:$0xff] %vm715, %v705
      %739 = vst.msk [vmem:[#allocation2 + $0xb8] sm:$0xff] %vm715, %v706
      %740 = vst.msk [vmem:[#allocation2 + $0xc0] sm:$0xff] %vm715, %v707
      %741 = vst.msk [vmem:[#allocation2 + $0xc8] sm:$0xff] %vm715, %v708
      %742 = vst.msk [vmem:[#allocation2 + $0xd0] sm:$0xff] %vm715, %v709
      %743 = vst.msk [vmem:[#allocation2 + $0xd8] sm:$0xff] %vm715, %v710
      %744 = vst.msk [vmem:[#allocation2 + $0xe0] sm:$0xff] %vm715, %v711
      %745 = vst.msk [vmem:[#allocation2 + $0xe8] sm:$0xff] %vm715, %v712
      %746 = vst.msk [vmem:[#allocation2 + $0xf0] sm:$0xff] %vm715, %v713
      %747 = vst.msk [vmem:[#allocation2 + $0xf8] sm:$0xff] %vm715, %v714
      // Predicated region
      $region37: #{m2tr_forward.11} parent=31 // pred_check
        %p748 = pneg %p260
      $region38: #{m2tr_forward.11} parent=31 // pred_check_branch
        %750 = sbr.rel (%p748) target = $region40
      $region39: #{m2tr_forward.11} parent=31 // pred_region
        %v751 = vld [vmem:[#allocation2] sm:$0xff]
        %v752 = vld [vmem:[#allocation2 + $0x8] sm:$0xff]
        %v753 = vld [vmem:[#allocation2 + $0x10] sm:$0xff]
        %v754 = vld [vmem:[#allocation2 + $0x18] sm:$0xff]
        %v755 = vld [vmem:[#allocation2 + $0x20] sm:$0xff]
        %v756 = vld [vmem:[#allocation2 + $0x28] sm:$0xff]
        %v757 = vld [vmem:[#allocation2 + $0x30] sm:$0xff]
        %v758 = vld [vmem:[#allocation2 + $0x38] sm:$0xff]
        %v759 = vld [vmem:[#allocation2 + $0x40] sm:$0xff]
        %v760 = vld [vmem:[#allocation2 + $0x48] sm:$0xff]
        %v761 = vld [vmem:[#allocation2 + $0x50] sm:$0xff]
        %v762 = vld [vmem:[#allocation2 + $0x58] sm:$0xff]
        %v763 = vld [vmem:[#allocation2 + $0x60] sm:$0xff]
        %v764 = vld [vmem:[#allocation2 + $0x68] sm:$0xff]
        %v765 = vld [vmem:[#allocation2 + $0x70] sm:$0xff]
        %v766 = vld [vmem:[#allocation2 + $0x78] sm:$0xff]
        %v767 = vld [vmem:[#allocation2 + $0x80] sm:$0xff]
        %v768 = vld [vmem:[#allocation2 + $0x88] sm:$0xff]
        %v769 = vld [vmem:[#allocation2 + $0x90] sm:$0xff]
        %v770 = vld [vmem:[#allocation2 + $0x98] sm:$0xff]
        %v771 = vld [vmem:[#allocation2 + $0xa0] sm:$0xff]
        %v772 = vld [vmem:[#allocation2 + $0xa8] sm:$0xff]
        %v773 = vld [vmem:[#allocation2 + $0xb0] sm:$0xff]
        %v774 = vld [vmem:[#allocation2 + $0xb8] sm:$0xff]
        %v775 = vld [vmem:[#allocation2 + $0xc0] sm:$0xff]
        %v776 = vld [vmem:[#allocation2 + $0xc8] sm:$0xff]
        %v777 = vld [vmem:[#allocation2 + $0xd0] sm:$0xff]
        %v778 = vld [vmem:[#allocation2 + $0xd8] sm:$0xff]
        %v779 = vld [vmem:[#allocation2 + $0xe0] sm:$0xff]
        %v780 = vld [vmem:[#allocation2 + $0xe8] sm:$0xff]
        %v781 = vld [vmem:[#allocation2 + $0xf0] sm:$0xff]
        %v782 = vld [vmem:[#allocation2 + $0xf8] sm:$0xff]
        %v783 = vld [vmem:[%s249] sm:$0x1]
        %v785 = vlaneseq
        %v786 = vshrl.u32 %v785, 7
        %v787 = vsub.s32 0, %v786
        %v788 = vrot.slane %v783, %v787
        %v790 = vadd.f32 %v751, %v788
        %v791 = vadd.f32 %v752, %v788
        %v792 = vadd.f32 %v753, %v788
        %v793 = vadd.f32 %v754, %v788
        %v794 = vadd.f32 %v755, %v788
        %v795 = vadd.f32 %v756, %v788
        %v796 = vadd.f32 %v757, %v788
        %v797 = vadd.f32 %v758, %v788
        %v798 = vadd.f32 %v759, %v788
        %v799 = vadd.f32 %v760, %v788
        %v800 = vadd.f32 %v761, %v788
        %v801 = vadd.f32 %v762, %v788
        %v802 = vadd.f32 %v763, %v788
        %v803 = vadd.f32 %v764, %v788
        %v804 = vadd.f32 %v765, %v788
        %v805 = vadd.f32 %v766, %v788
        %v806 = vadd.f32 %v767, %v788
        %v807 = vadd.f32 %v768, %v788
        %v808 = vadd.f32 %v769, %v788
        %v809 = vadd.f32 %v770, %v788
        %v810 = vadd.f32 %v771, %v788
        %v811 = vadd.f32 %v772, %v788
        %v812 = vadd.f32 %v773, %v788
        %v813 = vadd.f32 %v774, %v788
        %v814 = vadd.f32 %v775, %v788
        %v815 = vadd.f32 %v776, %v788
        %v816 = vadd.f32 %v777, %v788
        %v817 = vadd.f32 %v778, %v788
        %v818 = vadd.f32 %v779, %v788
        %v819 = vadd.f32 %v780, %v788
        %v820 = vadd.f32 %v781, %v788
        %v821 = vadd.f32 %v782, %v788
        %v822 = vmax.f32 %v790, 0.0
        %v823 = vmax.f32 %v791, 0.0
        %v824 = vmax.f32 %v792, 0.0
        %v825 = vmax.f32 %v793, 0.0
        %v826 = vmax.f32 %v794, 0.0
        %v827 = vmax.f32 %v795, 0.0
        %v828 = vmax.f32 %v796, 0.0
        %v829 = vmax.f32 %v797, 0.0
        %v830 = vmax.f32 %v798, 0.0
        %v831 = vmax.f32 %v799, 0.0
        %v832 = vmax.f32 %v800, 0.0
        %v833 = vmax.f32 %v801, 0.0
        %v834 = vmax.f32 %v802, 0.0
        %v835 = vmax.f32 %v803, 0.0
        %v836 = vmax.f32 %v804, 0.0
        %v837 = vmax.f32 %v805, 0.0
        %v838 = vmax.f32 %v806, 0.0
        %v839 = vmax.f32 %v807, 0.0
        %v840 = vmax.f32 %v808, 0.0
        %v841 = vmax.f32 %v809, 0.0
        %v842 = vmax.f32 %v810, 0.0
        %v843 = vmax.f32 %v811, 0.0
        %v844 = vmax.f32 %v812, 0.0
        %v845 = vmax.f32 %v813, 0.0
        %v846 = vmax.f32 %v814, 0.0
        %v847 = vmax.f32 %v815, 0.0
        %v848 = vmax.f32 %v816, 0.0
        %v849 = vmax.f32 %v817, 0.0
        %v850 = vmax.f32 %v818, 0.0
        %v851 = vmax.f32 %v819, 0.0
        %v852 = vmax.f32 %v820, 0.0
        %v853 = vmax.f32 %v821, 0.0
        %v854 = vpack.c.bf16 %v823, %v822
        %v855 = vpack.c.bf16 %v825, %v824
        %v856 = vpack.c.bf16 %v827, %v826
        %v857 = vpack.c.bf16 %v829, %v828
        %v858 = vpack.c.bf16 %v831, %v830
        %v859 = vpack.c.bf16 %v833, %v832
        %v860 = vpack.c.bf16 %v835, %v834
        %v861 = vpack.c.bf16 %v837, %v836
        %v862 = vpack.c.bf16 %v839, %v838
        %v863 = vpack.c.bf16 %v841, %v840
        %v864 = vpack.c.bf16 %v843, %v842
        %v865 = vpack.c.bf16 %v845, %v844
        %v866 = vpack.c.bf16 %v847, %v846
        %v867 = vpack.c.bf16 %v849, %v848
        %v868 = vpack.c.bf16 %v851, %v850
        %v869 = vpack.c.bf16 %v853, %v852
        %v886 = vunpack.c.l.b16 %v854
        %v887 = vunpack.c.h.b16 %v854
        %v888 = vunpack.c.l.b16 %v855
        %v889 = vunpack.c.h.b16 %v855
        %v890 = vunpack.c.l.b16 %v856
        %v891 = vunpack.c.h.b16 %v856
        %v892 = vunpack.c.l.b16 %v857
        %v893 = vunpack.c.h.b16 %v857
        %v894 = vunpack.c.l.b16 %v858
        %v895 = vunpack.c.h.b16 %v858
        %v896 = vunpack.c.l.b16 %v859
        %v897 = vunpack.c.h.b16 %v859
        %v898 = vunpack.c.l.b16 %v860
        %v899 = vunpack.c.h.b16 %v860
        %v900 = vunpack.c.l.b16 %v861
        %v901 = vunpack.c.h.b16 %v861
        %v902 = vunpack.c.l.b16 %v862
        %v903 = vunpack.c.h.b16 %v862
        %v904 = vunpack.c.l.b16 %v863
        %v905 = vunpack.c.h.b16 %v863
        %v906 = vunpack.c.l.b16 %v864
        %v907 = vunpack.c.h.b16 %v864
        %v908 = vunpack.c.l.b16 %v865
        %v909 = vunpack.c.h.b16 %v865
        %v910 = vunpack.c.l.b16 %v866
        %v911 = vunpack.c.h.b16 %v866
        %v912 = vunpack.c.l.b16 %v867
        %v913 = vunpack.c.h.b16 %v867
        %v914 = vunpack.c.l.b16 %v868
        %v915 = vunpack.c.h.b16 %v868
        %v916 = vunpack.c.l.b16 %v869
        %v917 = vunpack.c.h.b16 %v869
        %v918 = vpack.c.b16 %v886, %v886
        %v919 = vpack.c.b16 %v887, %v887
        %v920 = vpack.c.b16 %v888, %v888
        %v921 = vpack.c.b16 %v889, %v889
        %v922 = vpack.c.b16 %v890, %v890
        %v923 = vpack.c.b16 %v891, %v891
        %v924 = vpack.c.b16 %v892, %v892
        %v925 = vpack.c.b16 %v893, %v893
        %v926 = vpack.c.b16 %v894, %v894
        %v927 = vpack.c.b16 %v895, %v895
        %v928 = vpack.c.b16 %v896, %v896
        %v929 = vpack.c.b16 %v897, %v897
        %v930 = vpack.c.b16 %v898, %v898
        %v931 = vpack.c.b16 %v899, %v899
        %v932 = vpack.c.b16 %v900, %v900
        %v933 = vpack.c.b16 %v901, %v901
        %v934 = vpack.c.b16 %v902, %v902
        %v935 = vpack.c.b16 %v903, %v903
        %v936 = vpack.c.b16 %v904, %v904
        %v937 = vpack.c.b16 %v905, %v905
        %v938 = vpack.c.b16 %v906, %v906
        %v939 = vpack.c.b16 %v907, %v907
        %v940 = vpack.c.b16 %v908, %v908
        %v941 = vpack.c.b16 %v909, %v909
        %v942 = vpack.c.b16 %v910, %v910
        %v943 = vpack.c.b16 %v911, %v911
        %v944 = vpack.c.b16 %v912, %v912
        %v945 = vpack.c.b16 %v913, %v913
        %v946 = vpack.c.b16 %v914, %v914
        %v947 = vpack.c.b16 %v915, %v915
        %v948 = vpack.c.b16 %v916, %v916
        %v949 = vpack.c.b16 %v917, %v917
        %vm982 = vcmask 125952
        %983 = vst.msk [vmem:[%s257] sm:$0xf] %vm982, %v918
        %984 = vst.msk [vmem:[%s257 + $0x4] sm:$0xf] %vm982, %v919
        %985 = vst.msk [vmem:[%s257 + $0x8] sm:$0xf] %vm982, %v920
        %986 = vst.msk [vmem:[%s257 + $0xc] sm:$0xf] %vm982, %v921
        %987 = vst.msk [vmem:[%s257 + $0x10] sm:$0xf] %vm982, %v922
        %988 = vst.msk [vmem:[%s257 + $0x14] sm:$0xf] %vm982, %v923
        %989 = vst.msk [vmem:[%s257 + $0x18] sm:$0xf] %vm982, %v924
        %990 = vst.msk [vmem:[%s257 + $0x1c] sm:$0xf] %vm982, %v925
        %991 = vst.msk [vmem:[%s257 + $0x20] sm:$0xf] %vm982, %v926
        %992 = vst.msk [vmem:[%s257 + $0x24] sm:$0xf] %vm982, %v927
        %993 = vst.msk [vmem:[%s257 + $0x28] sm:$0xf] %vm982, %v928
        %994 = vst.msk [vmem:[%s257 + $0x2c] sm:$0xf] %vm982, %v929
        %995 = vst.msk [vmem:[%s257 + $0x30] sm:$0xf] %vm982, %v930
        %996 = vst.msk [vmem:[%s257 + $0x34] sm:$0xf] %vm982, %v931
        %997 = vst.msk [vmem:[%s257 + $0x38] sm:$0xf] %vm982, %v932
        %998 = vst.msk [vmem:[%s257 + $0x3c] sm:$0xf] %vm982, %v933
        %999 = vst.msk [vmem:[%s257 + $0x40] sm:$0xf] %vm982, %v934
        %1000 = vst.msk [vmem:[%s257 + $0x44] sm:$0xf] %vm982, %v935
        %1001 = vst.msk [vmem:[%s257 + $0x48] sm:$0xf] %vm982, %v936
        %1002 = vst.msk [vmem:[%s257 + $0x4c] sm:$0xf] %vm982, %v937
        %1003 = vst.msk [vmem:[%s257 + $0x50] sm:$0xf] %vm982, %v938
        %1004 = vst.msk [vmem:[%s257 + $0x54] sm:$0xf] %vm982, %v939
        %1005 = vst.msk [vmem:[%s257 + $0x58] sm:$0xf] %vm982, %v940
        %1006 = vst.msk [vmem:[%s257 + $0x5c] sm:$0xf] %vm982, %v941
        %1007 = vst.msk [vmem:[%s257 + $0x60] sm:$0xf] %vm982, %v942
        %1008 = vst.msk [vmem:[%s257 + $0x64] sm:$0xf] %vm982, %v943
        %1009 = vst.msk [vmem:[%s257 + $0x68] sm:$0xf] %vm982, %v944
        %1010 = vst.msk [vmem:[%s257 + $0x6c] sm:$0xf] %vm982, %v945
        %1011 = vst.msk [vmem:[%s257 + $0x70] sm:$0xf] %vm982, %v946
        %1012 = vst.msk [vmem:[%s257 + $0x74] sm:$0xf] %vm982, %v947
        %1013 = vst.msk [vmem:[%s257 + $0x78] sm:$0xf] %vm982, %v948
        %1014 = vst.msk [vmem:[%s257 + $0x7c] sm:$0xf] %vm982, %v949
      $region40: #{m2tr_forward.11} parent=31 // pred_fallthru
        _
      %s1015 = smul.u32 32, %s19
      %p1016 = scmp.lt.s32.totalorder %s1015, 63
      %s1017 = scalar_select %p1016, %s1015, 63
      %p1018 = scmp.lt.s32.totalorder %s20, 0
      %s1019 = scalar_select %p1018, %s20, 0
      %s1020 = sadd.s32 %s1019, %s1017
      %s1021 = smul.addr %s1020, 4
      %s1022 = scalar_lea.vmem %s3, %s1021
      // Predicated region
      $region41: #{m2tr_forward.11} parent=31 // pred_check
        %p1023 = pneg %p135
      $region42: #{m2tr_forward.11} parent=31 // pred_check_branch
        %1025 = sbr.rel (%p1023) target = $region44
      $region43: #{m2tr_forward.11} parent=31 // pred_region
        %s1026 = smul.u32 32, %s19
      $region44: #{m2tr_forward.11} parent=31 // pred_fallthru
        _
    $region32: #{m2tr_forward.11} parent=5 // pred_fallthru
      _
    %p1027 = scmp.le.s32.totalorder 2, %s9
    // Predicated region
    $region45: #{m2tr_forward.11} parent=5 // pred_check
      %p1028 = pneg %p1027
    $region46: #{m2tr_forward.11} parent=5 // pred_check_branch
      %1030 = sbr.rel (%p1028) target = $region48
    $region47: #{m2tr_forward.11} parent=5 // pred_region
      %s1031 = ssub.s32 %s9, 2
      // Predicated region
      $region49: #{m2tr_forward.11} parent=47 // pred_check
        %p1032 = pneg %p141
      $region50: #{m2tr_forward.11} parent=47 // pred_check_branch
        %1034 = sbr.rel (%p1032) target = $region52
      $region51: #{m2tr_forward.11} parent=47 // pred_region
        %s1035 = smul.u32 32, %s22
        %p1036 = scmp.lt.s32.totalorder %s1035, 63
        %s1037 = scalar_select %p1036, %s1035, 63
        %p1038 = scmp.lt.s32.totalorder %s23, 0
        %s1039 = scalar_select %p1038, %s23, 0
        %s1040 = sadd.s32 %s1039, %s1037
        %s1041 = smul.addr %s1040, 4
        %s1042 = scalar_lea.vmem %s3, %s1041
      $region52: #{m2tr_forward.11} parent=47 // pred_fallthru
        _
    $region48: #{m2tr_forward.11} parent=5 // pred_fallthru
      _
  $region6: #{m2tr_forward.11} parent=0 // loop_footer
    %s13 = sadd.s32 1, %s9
  $region7: #{m2tr_forward.11} parent=0 // loop_footer_branch
    %8 = sbr.rel target = $region3
  $region8: #{m2tr_forward.11} parent=0 // loop_exit
    _

// kernel: m2tr_forward.12
$region0: #{m2tr_forward.12}
  #allocation0 [shape = 'u32[]', space=smem, size = 0x4, offset = 0x4, fixed_abs, tag = 'smem constant byte address 0x4 - core index']
  #allocation1 [shape = 'u32[144,128]{1,0:T(1,128)}', space=vmem, size = 0x12000, scoped, tag = 'internal scratch']
  #allocation2 [shape = 'f32[128,32]{1,0:T(8,128)}', space=vmem, size = 0x10000, scoped, tag = 'scratch operand']
  %s0 = inlined_call_operand.vmem [shape: bf16[128,144], index: 0, kind: input, shape index: {}]
  %s1 = inlined_call_operand.vmem [shape: bf16[144,32], index: 1, kind: input, shape index: {}]
  %s2 = inlined_call_operand.vmem [shape: f32[1,32], index: 2, kind: input, shape index: {}]
  %s3 = inlined_call_operand.vmem [shape: bf16[128,32], index: 3, kind: output, shape index: {}]
  %s4 = sld [smem:[#allocation0]]
  $region30: #{m2tr_forward.12} parent=0
    _
  %s6 = ssub.s32 1, %s4
  %s7 = scalar_select 0, %s6, %s4
  // Predicated region
  $region2: #{m2tr_forward.12} parent=0 // pred_check
    _
  $region3: #{m2tr_forward.12} parent=0 // pred_check_branch
    %9 = sbr.rel (0) target = $region5
  $region4: #{m2tr_forward.12} parent=0 // pred_region
    _
  $region5: #{m2tr_forward.12} parent=0 // pred_fallthru
    _
  // Predicated region
  $region6: #{m2tr_forward.12} parent=0 // pred_check
    _
  $region7: #{m2tr_forward.12} parent=0 // pred_check_branch
    %11 = sbr.rel (0) target = $region9
  $region8: #{m2tr_forward.12} parent=0 // pred_region
    _
  $region9: #{m2tr_forward.12} parent=0 // pred_fallthru
    _
  // Predicated region
  $region10: #{m2tr_forward.12} parent=0 // pred_check
    _
  $region11: #{m2tr_forward.12} parent=0 // pred_check_branch
    %13 = sbr.rel (0) target = $region13
  $region12: #{m2tr_forward.12} parent=0 // pred_region
    _
  $region13: #{m2tr_forward.12} parent=0 // pred_fallthru
    _
  %p15 = scmp.eq.s32.totalorder 0, 0
  // Predicated region
  $region14: #{m2tr_forward.12} parent=0 // pred_check
    %p16 = pneg %p15
  $region15: #{m2tr_forward.12} parent=0 // pred_check_branch
    %18 = sbr.rel (%p16) target = $region17
  $region16: #{m2tr_forward.12} parent=0 // pred_region
    %vm19 = vcmask 261120
    %20 = vst.msk [vmem:[#allocation2] sm:$0xff] %vm19, 0.0
    %21 = vst.msk [vmem:[#allocation2 + $0x8] sm:$0xff] %vm19, 0.0
    %22 = vst.msk [vmem:[#allocation2 + $0x10] sm:$0xff] %vm19, 0.0
    %23 = vst.msk [vmem:[#allocation2 + $0x18] sm:$0xff] %vm19, 0.0
    %24 = vst.msk [vmem:[#allocation2 + $0x20] sm:$0xff] %vm19, 0.0
    %25 = vst.msk [vmem:[#allocation2 + $0x28] sm:$0xff] %vm19, 0.0
    %26 = vst.msk [vmem:[#allocation2 + $0x30] sm:$0xff] %vm19, 0.0
    %27 = vst.msk [vmem:[#allocation2 + $0x38] sm:$0xff] %vm19, 0.0
    %28 = vst.msk [vmem:[#allocation2 + $0x40] sm:$0xff] %vm19, 0.0
    %29 = vst.msk [vmem:[#allocation2 + $0x48] sm:$0xff] %vm19, 0.0
    %30 = vst.msk [vmem:[#allocation2 + $0x50] sm:$0xff] %vm19, 0.0
    %31 = vst.msk [vmem:[#allocation2 + $0x58] sm:$0xff] %vm19, 0.0
    %32 = vst.msk [vmem:[#allocation2 + $0x60] sm:$0xff] %vm19, 0.0
    %33 = vst.msk [vmem:[#allocation2 + $0x68] sm:$0xff] %vm19, 0.0
    %34 = vst.msk [vmem:[#allocation2 + $0x70] sm:$0xff] %vm19, 0.0
    %35 = vst.msk [vmem:[#allocation2 + $0x78] sm:$0xff] %vm19, 0.0
  $region17: #{m2tr_forward.12} parent=0 // pred_fallthru
    _
  %v36 = vld [vmem:[#allocation2] sm:$0xff]
  %v37 = vld [vmem:[#allocation2 + $0x8] sm:$0xff]
  %v38 = vld [vmem:[#allocation2 + $0x10] sm:$0xff]
  %v39 = vld [vmem:[#allocation2 + $0x18] sm:$0xff]
  %v40 = vld [vmem:[#allocation2 + $0x20] sm:$0xff]
  %v41 = vld [vmem:[#allocation2 + $0x28] sm:$0xff]
  %v42 = vld [vmem:[#allocation2 + $0x30] sm:$0xff]
  %v43 = vld [vmem:[#allocation2 + $0x38] sm:$0xff]
  %v44 = vld [vmem:[#allocation2 + $0x40] sm:$0xff]
  %v45 = vld [vmem:[#allocation2 + $0x48] sm:$0xff]
  %v46 = vld [vmem:[#allocation2 + $0x50] sm:$0xff]
  %v47 = vld [vmem:[#allocation2 + $0x58] sm:$0xff]
  %v48 = vld [vmem:[#allocation2 + $0x60] sm:$0xff]
  %v49 = vld [vmem:[#allocation2 + $0x68] sm:$0xff]
  %v50 = vld [vmem:[#allocation2 + $0x70] sm:$0xff]
  %v51 = vld [vmem:[#allocation2 + $0x78] sm:$0xff]
  %v52 = vld [vmem:[%s0] sm:$0xff]
  %v53 = vld [vmem:[%s0 + $0x8] sm:$0xff]
  %v54 = vld [vmem:[%s0 + $0x10] sm:$0xff]
  %v55 = vld [vmem:[%s0 + $0x18] sm:$0xff]
  %v56 = vld [vmem:[%s0 + $0x20] sm:$0xff]
  %v57 = vld [vmem:[%s0 + $0x28] sm:$0xff]
  %v58 = vld [vmem:[%s0 + $0x30] sm:$0xff]
  %v59 = vld [vmem:[%s0 + $0x38] sm:$0xff]
  %v60 = vld [vmem:[%s0 + $0x40] sm:$0xff]
  %v61 = vld [vmem:[%s0 + $0x48] sm:$0xff]
  %v62 = vld [vmem:[%s0 + $0x50] sm:$0xff]
  %v63 = vld [vmem:[%s0 + $0x58] sm:$0xff]
  %v64 = vld [vmem:[%s0 + $0x60] sm:$0xff]
  %v65 = vld [vmem:[%s0 + $0x68] sm:$0xff]
  %v66 = vld [vmem:[%s0 + $0x70] sm:$0xff]
  %v67 = vld [vmem:[%s0 + $0x78] sm:$0xff]
  %v68 = vld [vmem:[%s1] sm:$0xf]
  %v69 = vld [vmem:[%s1 + $0x4] sm:$0xf]
  %v70 = vld [vmem:[%s1 + $0x8] sm:$0xf]
  %v71 = vld [vmem:[%s1 + $0xc] sm:$0xf]
  %v72 = vld [vmem:[%s1 + $0x10] sm:$0xf]
  %v73 = vld [vmem:[%s1 + $0x14] sm:$0xf]
  %v74 = vld [vmem:[%s1 + $0x18] sm:$0xf]
  %v75 = vld [vmem:[%s1 + $0x1c] sm:$0xf]
  %v76 = vld [vmem:[%s1 + $0x20] sm:$0xf]
  %v77 = vld [vmem:[%s1 + $0x24] sm:$0xf]
  %v78 = vld [vmem:[%s1 + $0x28] sm:$0xf]
  %v79 = vld [vmem:[%s1 + $0x2c] sm:$0xf]
  %v80 = vld [vmem:[%s1 + $0x30] sm:$0xf]
  %v81 = vld [vmem:[%s1 + $0x34] sm:$0xf]
  %v82 = vld [vmem:[%s1 + $0x38] sm:$0xf]
  %v83 = vld [vmem:[%s1 + $0x3c] sm:$0xf]
  %v84 = vld [vmem:[%s1 + $0x40] sm:$0xf]
  %v85 = vld [vmem:[%s1 + $0x44] sm:$0xf]
  %v102 = vunpack.c.l.b16 %v52
  %v103 = vunpack.c.h.b16 %v52
  %v104 = vunpack.c.l.b16 %v53
  %v105 = vunpack.c.h.b16 %v53
  %v106 = vunpack.c.l.b16 %v54
  %v107 = vunpack.c.h.b16 %v54
  %v108 = vunpack.c.l.b16 %v55
  %v109 = vunpack.c.h.b16 %v55
  %v110 = vunpack.c.l.b16 %v56
  %v111 = vunpack.c.h.b16 %v56
  %v112 = vunpack.c.l.b16 %v57
  %v113 = vunpack.c.h.b16 %v57
  %v114 = vunpack.c.l.b16 %v58
  %v115 = vunpack.c.h.b16 %v58
  %v116 = vunpack.c.l.b16 %v59
  %v117 = vunpack.c.h.b16 %v59
  %v118 = vunpack.c.l.b16 %v60
  %v119 = vunpack.c.h.b16 %v60
  %v120 = vunpack.c.l.b16 %v61
  %v121 = vunpack.c.h.b16 %v61
  %v122 = vunpack.c.l.b16 %v62
  %v123 = vunpack.c.h.b16 %v62
  %v124 = vunpack.c.l.b16 %v63
  %v125 = vunpack.c.h.b16 %v63
  %v126 = vunpack.c.l.b16 %v64
  %v127 = vunpack.c.h.b16 %v64
  %v128 = vunpack.c.l.b16 %v65
  %v129 = vunpack.c.h.b16 %v65
  %v130 = vunpack.c.l.b16 %v66
  %v131 = vunpack.c.h.b16 %v66
  %v132 = vunpack.c.l.b16 %v67
  %v133 = vunpack.c.h.b16 %v67
  %v134 = vpack.c.b16 %v104, %v102
  %v135 = vpack.c.b16 %v105, %v103
  %v136 = vpack.c.b16 %v108, %v106
  %v137 = vpack.c.b16 %v109, %v107
  %v138 = vpack.c.b16 %v112, %v110
  %v139 = vpack.c.b16 %v113, %v111
  %v140 = vpack.c.b16 %v116, %v114
  %v141 = vpack.c.b16 %v117, %v115
  %v142 = vpack.c.b16 %v120, %v118
  %v143 = vpack.c.b16 %v121, %v119
  %v144 = vpack.c.b16 %v124, %v122
  %v145 = vpack.c.b16 %v125, %v123
  %v146 = vpack.c.b16 %v128, %v126
  %v147 = vpack.c.b16 %v129, %v127
  %v148 = vpack.c.b16 %v132, %v130
  %v149 = vpack.c.b16 %v133, %v131
  %v176 = vunpack.c.l.b16 %v68
  %v177 = vunpack.c.l.b16 %v69
  %v178 = vunpack.c.l.b16 %v70
  %v179 = vunpack.c.l.b16 %v71
  %v180 = vunpack.c.l.b16 %v72
  %v181 = vunpack.c.l.b16 %v73
  %v182 = vunpack.c.l.b16 %v74
  %v183 = vunpack.c.l.b16 %v75
  %v184 = vunpack.c.l.b16 %v76
  %v185 = vunpack.c.l.b16 %v77
  %v186 = vunpack.c.l.b16 %v78
  %v187 = vunpack.c.l.b16 %v79
  %v188 = vunpack.c.l.b16 %v80
  %v189 = vunpack.c.l.b16 %v81
  %v190 = vunpack.c.l.b16 %v82
  %v191 = vunpack.c.l.b16 %v83
  %v192 = vunpack.c.l.b16 %v84
  %v193 = vunpack.c.l.b16 %v85
  %v194 = vpack.c.b16 %v177, %v176
  %v195 = vpack.c.b16 %v179, %v178
  %v196 = vpack.c.b16 %v181, %v180
  %v197 = vpack.c.b16 %v183, %v182
  %v198 = vpack.c.b16 %v185, %v184
  %v199 = vpack.c.b16 %v187, %v186
  %v200 = vpack.c.b16 %v189, %v188
  %v201 = vpack.c.b16 %v191, %v190
  %v202 = vpack.c.b16 %v193, %v192
  %vm212 = vcmask 130048
  %v214 = vsel %vm212, %v135, 0
  %v217 = vsel %vm212, %v137, 0
  %v220 = vsel %vm212, %v139, 0
  %v223 = vsel %vm212, %v141, 0
  %v226 = vsel %vm212, %v143, 0
  %v229 = vsel %vm212, %v145, 0
  %v232 = vsel %vm212, %v147, 0
  %v235 = vsel %vm212, %v149, 0
  %237 = vmatprep.subr.bf16.mxu0 0
  %238 = vmatpush1.bf16.msra.mxu0 %v194
  %239 = vmatprep.subr.bf16.mxu0 0
  %240 = vmatpush1.bf16.msra.mxu0 %v195
  %241 = vmatprep.subr.bf16.mxu0 0
  %242 = vmatpush1.bf16.msra.mxu0 %v196
  %243 = vmatprep.subr.bf16.mxu0 0
  %244 = vmatpush1.bf16.msra.mxu0 %v197
  %245 = vmatprep.subr.bf16.mxu0 0
  %246 = vmatpush1.bf16.msra.mxu0 %v198
  %247 = vmatprep.subr.bf16.mxu0 0
  %248 = vmatpush1.bf16.msra.mxu0 %v199
  %249 = vmatprep.subr.bf16.mxu0 0
  %250 = vmatpush1.bf16.msra.mxu0 %v200
  %251 = vmatprep.subr.bf16.mxu0 0
  %252 = vmatpush1.bf16.msra.mxu0 %v201
  %253 = vmatprep.subr.bf16.mxu0 0
  %254 = vmatpush1.bf16.msra.mxu0 %v202
  %255 = vmatprep.subr.bf16.mxu0 0
  %256 = vmatpush1.bf16.msra.mxu0 0
  %257 = vmatprep.subr.bf16.mxu0 0
  %258 = vmatpush1.bf16.msra.mxu0 0
  %259 = vmatprep.subr.bf16.mxu0 0
  %260 = vmatpush1.bf16.msra.mxu0 0
  %261 = vmatprep.subr.bf16.mxu0 0
  %262 = vmatpush1.bf16.msra.mxu0 0
  %263 = vmatprep.subr.bf16.mxu0 0
  %264 = vmatpush1.bf16.msra.mxu0 0
  %265 = vmatprep.subr.bf16.mxu0 0
  %266 = vmatpush1.bf16.msra.mxu0 0
  %267 = vmatprep.subr.bf16.mxu0 0
  %268 = vmatpush1.bf16.msra.mxu0 0
  %269 = vmatprep.mubr.bf16.mxu0 %v214
  %270 = vmatmul.mubr.bf16.gmra.mrb[0].mxu0 %v134
  %v271 = vpop.f32.mrb[0].mxu0
  %v272 = vadd.f32 0.0, %v271
  %v273 = vpop.f32.mrb[0].mxu0
  %v274 = vpop.f32.mrb[0].mxu0
  %v275 = vadd.f32 0.0, %v274
  %v276 = vpop.f32.mrb[0].mxu0
  %277 = vmatprep.mubr.bf16.mxu0 %v217
  %278 = vmatmul.mubr.bf16.gmra.mrb[0].mxu0 %v136
  %v279 = vpop.f32.mrb[0].mxu0
  %v280 = vadd.f32 0.0, %v279
  %v281 = vpop.f32.mrb[0].mxu0
  %v282 = vpop.f32.mrb[0].mxu0
  %v283 = vadd.f32 0.0, %v282
  %v284 = vpop.f32.mrb[0].mxu0
  %285 = vmatprep.mubr.bf16.mxu0 %v220
  %286 = vmatmul.mubr.bf16.gmra.mrb[0].mxu0 %v138
  %v287 = vpop.f32.mrb[0].mxu0
  %v288 = vadd.f32 0.0, %v287
  %v289 = vpop.f32.mrb[0].mxu0
  %v290 = vpop.f32.mrb[0].mxu0
  %v291 = vadd.f32 0.0, %v290
  %v292 = vpop.f32.mrb[0].mxu0
  %293 = vmatprep.mubr.bf16.mxu0 %v223
  %294 = vmatmul.mubr.bf16.gmra.mrb[0].mxu0 %v140
  %v295 = vpop.f32.mrb[0].mxu0
  %v296 = vadd.f32 0.0, %v295
  %v297 = vpop.f32.mrb[0].mxu0
  %v298 = vpop.f32.mrb[0].mxu0
  %v299 = vadd.f32 0.0, %v298
  %v300 = vpop.f32.mrb[0].mxu0
  %301 = vmatprep.mubr.bf16.mxu0 %v226
  %302 = vmatmul.mubr.bf16.gmra.mrb[0].mxu0 %v142
  %v303 = vpop.f32.mrb[0].mxu0
  %v304 = vadd.f32 0.0, %v303
  %v305 = vpop.f32.mrb[0].mxu0
  %v306 = vpop.f32.mrb[0].mxu0
  %v307 = vadd.f32 0.0, %v306
  %v308 = vpop.f32.mrb[0].mxu0
  %309 = vmatprep.mubr.bf16.mxu0 %v229
  %310 = vmatmul.mubr.bf16.gmra.mrb[0].mxu0 %v144
  %v311 = vpop.f32.mrb[0].mxu0
  %v312 = vadd.f32 0.0, %v311
  %v313 = vpop.f32.mrb[0].mxu0
  %v314 = vpop.f32.mrb[0].mxu0
  %v315 = vadd.f32 0.0, %v314
  %v316 = vpop.f32.mrb[0].mxu0
  %317 = vmatprep.mubr.bf16.mxu0 %v232
  %318 = vmatmul.mubr.bf16.gmra.mrb[0].mxu0 %v146
  %v319 = vpop.f32.mrb[0].mxu0
  %v320 = vadd.f32 0.0, %v319
  %v321 = vpop.f32.mrb[0].mxu0
  %v322 = vpop.f32.mrb[0].mxu0
  %v323 = vadd.f32 0.0, %v322
  %v324 = vpop.f32.mrb[0].mxu0
  %325 = vmatprep.mubr.bf16.mxu0 %v235
  %326 = vmatmul.mubr.bf16.gmra.mrb[0].mxu0 %v148
  %v327 = vpop.f32.mrb[0].mxu0
  %v328 = vadd.f32 0.0, %v327
  %v329 = vpop.f32.mrb[0].mxu0
  %v330 = vpop.f32.mrb[0].mxu0
  %v331 = vadd.f32 0.0, %v330
  %v332 = vpop.f32.mrb[0].mxu0
  %333 = vdwg.mxu0
  %v334 = vadd.f32 %v36, %v272
  %v335 = vadd.f32 %v37, %v275
  %v336 = vadd.f32 %v38, %v280
  %v337 = vadd.f32 %v39, %v283
  %v338 = vadd.f32 %v40, %v288
  %v339 = vadd.f32 %v41, %v291
  %v340 = vadd.f32 %v42, %v296
  %v341 = vadd.f32 %v43, %v299
  %v342 = vadd.f32 %v44, %v304
  %v343 = vadd.f32 %v45, %v307
  %v344 = vadd.f32 %v46, %v312
  %v345 = vadd.f32 %v47, %v315
  %v346 = vadd.f32 %v48, %v320
  %v347 = vadd.f32 %v49, %v323
  %v348 = vadd.f32 %v50, %v328
  %v349 = vadd.f32 %v51, %v331
  %vm350 = vcmask 261120
  %351 = vst.msk [vmem:[#allocation2] sm:$0xff] %vm350, %v334
  %352 = vst.msk [vmem:[#allocation2 + $0x8] sm:$0xff] %vm350, %v335
  %353 = vst.msk [vmem:[#allocation2 + $0x10] sm:$0xff] %vm350, %v336
  %354 = vst.msk [vmem:[#allocation2 + $0x18] sm:$0xff] %vm350, %v337
  %355 = vst.msk [vmem:[#allocation2 + $0x20] sm:$0xff] %vm350, %v338
  %356 = vst.msk [vmem:[#allocation2 + $0x28] sm:$0xff] %vm350, %v339
  %357 = vst.msk [vmem:[#allocation2 + $0x30] sm:$0xff] %vm350, %v340
  %358 = vst.msk [vmem:[#allocation2 + $0x38] sm:$0xff] %vm350, %v341
  %359 = vst.msk [vmem:[#allocation2 + $0x40] sm:$0xff] %vm350, %v342
  %360 = vst.msk [vmem:[#allocation2 + $0x48] sm:$0xff] %vm350, %v343
  %361 = vst.msk [vmem:[#allocation2 + $0x50] sm:$0xff] %vm350, %v344
  %362 = vst.msk [vmem:[#allocation2 + $0x58] sm:$0xff] %vm350, %v345
  %363 = vst.msk [vmem:[#allocation2 + $0x60] sm:$0xff] %vm350, %v346
  %364 = vst.msk [vmem:[#allocation2 + $0x68] sm:$0xff] %vm350, %v347
  %365 = vst.msk [vmem:[#allocation2 + $0x70] sm:$0xff] %vm350, %v348
  %366 = vst.msk [vmem:[#allocation2 + $0x78] sm:$0xff] %vm350, %v349
  // Predicated region
  $region18: #{m2tr_forward.12} parent=0 // pred_check
    %p367 = pneg %p15
  $region19: #{m2tr_forward.12} parent=0 // pred_check_branch
    %369 = sbr.rel (%p367) target = $region21
  $region20: #{m2tr_forward.12} parent=0 // pred_region
    %v370 = vld [vmem:[#allocation2] sm:$0xff]
    %v371 = vld [vmem:[#allocation2 + $0x8] sm:$0xff]
    %v372 = vld [vmem:[#allocation2 + $0x10] sm:$0xff]
    %v373 = vld [vmem:[#allocation2 + $0x18] sm:$0xff]
    %v374 = vld [vmem:[#allocation2 + $0x20] sm:$0xff]
    %v375 = vld [vmem:[#allocation2 + $0x28] sm:$0xff]
    %v376 = vld [vmem:[#allocation2 + $0x30] sm:$0xff]
    %v377 = vld [vmem:[#allocation2 + $0x38] sm:$0xff]
    %v378 = vld [vmem:[#allocation2 + $0x40] sm:$0xff]
    %v379 = vld [vmem:[#allocation2 + $0x48] sm:$0xff]
    %v380 = vld [vmem:[#allocation2 + $0x50] sm:$0xff]
    %v381 = vld [vmem:[#allocation2 + $0x58] sm:$0xff]
    %v382 = vld [vmem:[#allocation2 + $0x60] sm:$0xff]
    %v383 = vld [vmem:[#allocation2 + $0x68] sm:$0xff]
    %v384 = vld [vmem:[#allocation2 + $0x70] sm:$0xff]
    %v385 = vld [vmem:[#allocation2 + $0x78] sm:$0xff]
    %v386 = vld [vmem:[%s2] sm:$0x1]
    %v388 = vlaneseq
    %v389 = vshrl.u32 %v388, 7
    %v390 = vsub.s32 0, %v389
    %v391 = vrot.slane %v386, %v390
    %v393 = vadd.f32 %v370, %v391
    %v394 = vadd.f32 %v371, %v391
    %v395 = vadd.f32 %v372, %v391
    %v396 = vadd.f32 %v373, %v391
    %v397 = vadd.f32 %v374, %v391
    %v398 = vadd.f32 %v375, %v391
    %v399 = vadd.f32 %v376, %v391
    %v400 = vadd.f32 %v377, %v391
    %v401 = vadd.f32 %v378, %v391
    %v402 = vadd.f32 %v379, %v391
    %v403 = vadd.f32 %v380, %v391
    %v404 = vadd.f32 %v381, %v391
    %v405 = vadd.f32 %v382, %v391
    %v406 = vadd.f32 %v383, %v391
    %v407 = vadd.f32 %v384, %v391
    %v408 = vadd.f32 %v385, %v391
    %v409 = vmax.f32 %v393, 0.0
    %v410 = vmax.f32 %v394, 0.0
    %v411 = vmax.f32 %v395, 0.0
    %v412 = vmax.f32 %v396, 0.0
    %v413 = vmax.f32 %v397, 0.0
    %v414 = vmax.f32 %v398, 0.0
    %v415 = vmax.f32 %v399, 0.0
    %v416 = vmax.f32 %v400, 0.0
    %v417 = vmax.f32 %v401, 0.0
    %v418 = vmax.f32 %v402, 0.0
    %v419 = vmax.f32 %v403, 0.0
    %v420 = vmax.f32 %v404, 0.0
    %v421 = vmax.f32 %v405, 0.0
    %v422 = vmax.f32 %v406, 0.0
    %v423 = vmax.f32 %v407, 0.0
    %v424 = vmax.f32 %v408, 0.0
    %v425 = vpack.c.bf16 %v410, %v409
    %v426 = vpack.c.bf16 %v412, %v411
    %v427 = vpack.c.bf16 %v414, %v413
    %v428 = vpack.c.bf16 %v416, %v415
    %v429 = vpack.c.bf16 %v418, %v417
    %v430 = vpack.c.bf16 %v420, %v419
    %v431 = vpack.c.bf16 %v422, %v421
    %v432 = vpack.c.bf16 %v424, %v423
    %v441 = vunpack.c.l.b16 %v425
    %v442 = vunpack.c.h.b16 %v425
    %v443 = vunpack.c.l.b16 %v426
    %v444 = vunpack.c.h.b16 %v426
    %v445 = vunpack.c.l.b16 %v427
    %v446 = vunpack.c.h.b16 %v427
    %v447 = vunpack.c.l.b16 %v428
    %v448 = vunpack.c.h.b16 %v428
    %v449 = vunpack.c.l.b16 %v429
    %v450 = vunpack.c.h.b16 %v429
    %v451 = vunpack.c.l.b16 %v430
    %v452 = vunpack.c.h.b16 %v430
    %v453 = vunpack.c.l.b16 %v431
    %v454 = vunpack.c.h.b16 %v431
    %v455 = vunpack.c.l.b16 %v432
    %v456 = vunpack.c.h.b16 %v432
    %v457 = vpack.c.b16 %v441, %v441
    %v458 = vpack.c.b16 %v442, %v442
    %v459 = vpack.c.b16 %v443, %v443
    %v460 = vpack.c.b16 %v444, %v444
    %v461 = vpack.c.b16 %v445, %v445
    %v462 = vpack.c.b16 %v446, %v446
    %v463 = vpack.c.b16 %v447, %v447
    %v464 = vpack.c.b16 %v448, %v448
    %v465 = vpack.c.b16 %v449, %v449
    %v466 = vpack.c.b16 %v450, %v450
    %v467 = vpack.c.b16 %v451, %v451
    %v468 = vpack.c.b16 %v452, %v452
    %v469 = vpack.c.b16 %v453, %v453
    %v470 = vpack.c.b16 %v454, %v454
    %v471 = vpack.c.b16 %v455, %v455
    %v472 = vpack.c.b16 %v456, %v456
    %vm489 = vcmask 257024
    %490 = vst.msk [vmem:[%s3] sm:$0xf] %vm489, %v457
    %491 = vst.msk [vmem:[%s3 + $0x4] sm:$0xf] %vm489, %v458
    %492 = vst.msk [vmem:[%s3 + $0x8] sm:$0xf] %vm489, %v459
    %493 = vst.msk [vmem:[%s3 + $0xc] sm:$0xf] %vm489, %v460
    %494 = vst.msk [vmem:[%s3 + $0x10] sm:$0xf] %vm489, %v461
    %495 = vst.msk [vmem:[%s3 + $0x14] sm:$0xf] %vm489, %v462
    %496 = vst.msk [vmem:[%s3 + $0x18] sm:$0xf] %vm489, %v463
    %497 = vst.msk [vmem:[%s3 + $0x1c] sm:$0xf] %vm489, %v464
    %498 = vst.msk [vmem:[%s3 + $0x20] sm:$0xf] %vm489, %v465
    %499 = vst.msk [vmem:[%s3 + $0x24] sm:$0xf] %vm489, %v466
    %500 = vst.msk [vmem:[%s3 + $0x28] sm:$0xf] %vm489, %v467
    %501 = vst.msk [vmem:[%s3 + $0x2c] sm:$0xf] %vm489, %v468
    %502 = vst.msk [vmem:[%s3 + $0x30] sm:$0xf] %vm489, %v469
    %503 = vst.msk [vmem:[%s3 + $0x34] sm:$0xf] %vm489, %v470
    %504 = vst.msk [vmem:[%s3 + $0x38] sm:$0xf] %vm489, %v471
    %505 = vst.msk [vmem:[%s3 + $0x3c] sm:$0xf] %vm489, %v472
  $region21: #{m2tr_forward.12} parent=0 // pred_fallthru
    _
  // Predicated region
  $region22: #{m2tr_forward.12} parent=0 // pred_check
    _
  $region23: #{m2tr_forward.12} parent=0 // pred_check_branch
    %507 = sbr.rel (0) target = $region25
  $region24: #{m2tr_forward.12} parent=0 // pred_region
    _
  $region25: #{m2tr_forward.12} parent=0 // pred_fallthru
    _
  // Predicated region
  $region26: #{m2tr_forward.12} parent=0 // pred_check
    _
  $region27: #{m2tr_forward.12} parent=0 // pred_check_branch
    %509 = sbr.rel (0) target = $region29
  $region28: #{m2tr_forward.12} parent=0 // pred_region
    _
  $region29: #{m2tr_forward.12} parent=0 // pred_fallthru
    _

// kernel: m2tr_forward.14
$region0: #{m2tr_forward.14}
  #allocation0 [shape = 'u32[]', space=smem, size = 0x4, offset = 0x4, fixed_abs, tag = 'smem constant byte address 0x4 - core index']
  #allocation1 [shape = 'u32[144,128]{1,0:T(1,128)}', space=vmem, size = 0x12000, scoped, tag = 'internal scratch']
  #allocation2 [shape = 'f32[8,96]{1,0:T(8,128)}', space=vmem, size = 0x1000, scoped, tag = 'scratch operand']
  %s0 = inlined_call_operand.vmem [shape: bf16[8,32], index: 0, kind: input, shape index: {}]
  %s1 = inlined_call_operand.vmem [shape: bf16[32,96], index: 1, kind: input, shape index: {}]
  %s2 = inlined_call_operand.vmem [shape: f32[1,96], index: 2, kind: input, shape index: {}]
  %s3 = inlined_call_operand.vmem [shape: bf16[8,96], index: 3, kind: output, shape index: {}]
  %s4 = sld [smem:[#allocation0]]
  $region30: #{m2tr_forward.14} parent=0
    _
  %s6 = ssub.s32 1, %s4
  %s7 = scalar_select 0, %s6, %s4
  // Predicated region
  $region2: #{m2tr_forward.14} parent=0 // pred_check
    _
  $region3: #{m2tr_forward.14} parent=0 // pred_check_branch
    %9 = sbr.rel (0) target = $region5
  $region4: #{m2tr_forward.14} parent=0 // pred_region
    _
  $region5: #{m2tr_forward.14} parent=0 // pred_fallthru
    _
  // Predicated region
  $region6: #{m2tr_forward.14} parent=0 // pred_check
    _
  $region7: #{m2tr_forward.14} parent=0 // pred_check_branch
    %11 = sbr.rel (0) target = $region9
  $region8: #{m2tr_forward.14} parent=0 // pred_region
    _
  $region9: #{m2tr_forward.14} parent=0 // pred_fallthru
    _
  // Predicated region
  $region10: #{m2tr_forward.14} parent=0 // pred_check
    _
  $region11: #{m2tr_forward.14} parent=0 // pred_check_branch
    %13 = sbr.rel (0) target = $region13
  $region12: #{m2tr_forward.14} parent=0 // pred_region
    _
  $region13: #{m2tr_forward.14} parent=0 // pred_fallthru
    _
  %p15 = scmp.eq.s32.totalorder 0, 0
  // Predicated region
  $region14: #{m2tr_forward.14} parent=0 // pred_check
    %p16 = pneg %p15
  $region15: #{m2tr_forward.14} parent=0 // pred_check_branch
    %18 = sbr.rel (%p16) target = $region17
  $region16: #{m2tr_forward.14} parent=0 // pred_region
    %vm19 = vcmask 785408
    %20 = vst.msk [vmem:[#allocation2] sm:$0xff] %vm19, 0.0
  $region17: #{m2tr_forward.14} parent=0 // pred_fallthru
    _
  %v21 = vld [vmem:[#allocation2] sm:$0xff]
  %v22 = vld [vmem:[%s0] sm:$0xf]
  %v23 = vld [vmem:[%s1] sm:$0xf]
  %v24 = vld [vmem:[%s1 + $0x4] sm:$0xf]
  %v25 = vld [vmem:[%s1 + $0x8] sm:$0xf]
  %v26 = vld [vmem:[%s1 + $0xc] sm:$0xf]
  %v31 = vunpack.c.l.b16 %v23
  %v32 = vunpack.c.l.b16 %v24
  %v33 = vunpack.c.l.b16 %v25
  %v34 = vunpack.c.l.b16 %v26
  %v35 = vpack.c.b16 %v32, %v31
  %v36 = vpack.c.b16 %v34, %v33
  %vm39 = vcmask 261120
  %v41 = vsel %vm39, %v22, 0
  %43 = vmatprep.subr.bf16.mxu0 0
  %44 = vmatpush1.bf16.msra.mxu0 %v35
  %45 = vmatprep.subr.bf16.mxu0 0
  %46 = vmatpush1.bf16.msra.mxu0 %v36
  %47 = vmatprep.subr.bf16.mxu0 0
  %48 = vmatpush1.bf16.msra.mxu0 0
  %49 = vmatprep.subr.bf16.mxu0 0
  %50 = vmatpush1.bf16.msra.mxu0 0
  %51 = vmatprep.subr.bf16.mxu0 0
  %52 = vmatpush1.bf16.msra.mxu0 0
  %53 = vmatprep.subr.bf16.mxu0 0
  %54 = vmatpush1.bf16.msra.mxu0 0
  %55 = vmatprep.subr.bf16.mxu0 0
  %56 = vmatpush1.bf16.msra.mxu0 0
  %57 = vmatprep.subr.bf16.mxu0 0
  %58 = vmatpush1.bf16.msra.mxu0 0
  %59 = vmatprep.subr.bf16.mxu0 0
  %60 = vmatpush1.bf16.msra.mxu0 0
  %61 = vmatprep.subr.bf16.mxu0 0
  %62 = vmatpush1.bf16.msra.mxu0 0
  %63 = vmatprep.subr.bf16.mxu0 0
  %64 = vmatpush1.bf16.msra.mxu0 0
  %65 = vmatprep.subr.bf16.mxu0 0
  %66 = vmatpush1.bf16.msra.mxu0 0
  %67 = vmatprep.subr.bf16.mxu0 0
  %68 = vmatpush1.bf16.msra.mxu0 0
  %69 = vmatprep.subr.bf16.mxu0 0
  %70 = vmatpush1.bf16.msra.mxu0 0
  %71 = vmatprep.subr.bf16.mxu0 0
  %72 = vmatpush1.bf16.msra.mxu0 0
  %73 = vmatprep.subr.bf16.mxu0 0
  %74 = vmatpush1.bf16.msra.mxu0 0
  %75 = vmatprep.mubr.bf16.mxu0 0
  %76 = vmatmul.mubr.bf16.gmra.mrb[0].mxu0 %v41
  %v77 = vpop.f32.mrb[0].mxu0
  %v78 = vadd.f32 0.0, %v77
  %v79 = vpop.f32.mrb[0].mxu0
  %v80 = vpop.f32.mrb[0].mxu0
  %v81 = vpop.f32.mrb[0].mxu0
  %82 = vdwg.mxu0
  %v83 = vadd.f32 %v21, %v78
  %vm84 = vcmask 785408
  %85 = vst.msk [vmem:[#allocation2] sm:$0xff] %vm84, %v83
  // Predicated region
  $region18: #{m2tr_forward.14} parent=0 // pred_check
    %p86 = pneg %p15
  $region19: #{m2tr_forward.14} parent=0 // pred_check_branch
    %88 = sbr.rel (%p86) target = $region21
  $region20: #{m2tr_forward.14} parent=0 // pred_region
    %v89 = vld [vmem:[#allocation2] sm:$0xff]
    %v90 = vld [vmem:[%s2] sm:$0x1]
    %v92 = vlaneseq
    %v93 = vshrl.u32 %v92, 7
    %v94 = vsub.s32 0, %v93
    %v95 = vrot.slane %v90, %v94
    %v97 = vadd.f32 %v89, %v95
    %v98 = vpack.c.bf16 %v97, %v97
    %vm99 = vcmask 781312
    %100 = vst.msk [vmem:[%s3] sm:$0xf] %vm99, %v98
  $region21: #{m2tr_forward.14} parent=0 // pred_fallthru
    _
  // Predicated region
  $region22: #{m2tr_forward.14} parent=0 // pred_check
    _
  $region23: #{m2tr_forward.14} parent=0 // pred_check_branch
    %102 = sbr.rel (0) target = $region25
  $region24: #{m2tr_forward.14} parent=0 // pred_region
    _
  $region25: #{m2tr_forward.14} parent=0 // pred_fallthru
    _
  // Predicated region
  $region26: #{m2tr_forward.14} parent=0 // pred_check
    _
  $region27: #{m2tr_forward.14} parent=0 // pred_check_branch
    %104 = sbr.rel (0) target = $region29
  $region28: #{m2tr_forward.14} parent=0 // pred_region
    _
  $region29: #{m2tr_forward.14} parent=0 // pred_fallthru
    _

// kernel: m2tr_forward.13
$region0: #{m2tr_forward.13}
  #allocation0 [shape = 'u32[]', space=smem, size = 0x4, offset = 0x4, fixed_abs, tag = 'smem constant byte address 0x4 - core index']
  #allocation1 [shape = 'u32[144,128]{1,0:T(1,128)}', space=vmem, size = 0x12000, scoped, tag = 'internal scratch']
  #allocation2 [shape = 'f32[8,32]{1,0:T(8,128)}', space=vmem, size = 0x1000, scoped, tag = 'scratch operand']
  %s0 = inlined_call_operand.vmem [shape: bf16[8,512], index: 0, kind: input, shape index: {}]
  %s1 = inlined_call_operand.vmem [shape: bf16[512,32], index: 1, kind: input, shape index: {}]
  %s2 = inlined_call_operand.vmem [shape: f32[1,32], index: 2, kind: input, shape index: {}]
  %s3 = inlined_call_operand.vmem [shape: bf16[8,32], index: 3, kind: output, shape index: {}]
  %s4 = sld [smem:[#allocation0]]
  $region30: #{m2tr_forward.13} parent=0
    _
  %s6 = ssub.s32 1, %s4
  %s7 = scalar_select 0, %s6, %s4
  // Predicated region
  $region2: #{m2tr_forward.13} parent=0 // pred_check
    _
  $region3: #{m2tr_forward.13} parent=0 // pred_check_branch
    %9 = sbr.rel (0) target = $region5
  $region4: #{m2tr_forward.13} parent=0 // pred_region
    _
  $region5: #{m2tr_forward.13} parent=0 // pred_fallthru
    _
  // Predicated region
  $region6: #{m2tr_forward.13} parent=0 // pred_check
    _
  $region7: #{m2tr_forward.13} parent=0 // pred_check_branch
    %11 = sbr.rel (0) target = $region9
  $region8: #{m2tr_forward.13} parent=0 // pred_region
    _
  $region9: #{m2tr_forward.13} parent=0 // pred_fallthru
    _
  // Predicated region
  $region10: #{m2tr_forward.13} parent=0 // pred_check
    _
  $region11: #{m2tr_forward.13} parent=0 // pred_check_branch
    %13 = sbr.rel (0) target = $region13
  $region12: #{m2tr_forward.13} parent=0 // pred_region
    _
  $region13: #{m2tr_forward.13} parent=0 // pred_fallthru
    _
  %p15 = scmp.eq.s32.totalorder 0, 0
  // Predicated region
  $region14: #{m2tr_forward.13} parent=0 // pred_check
    %p16 = pneg %p15
  $region15: #{m2tr_forward.13} parent=0 // pred_check_branch
    %18 = sbr.rel (%p16) target = $region17
  $region16: #{m2tr_forward.13} parent=0 // pred_region
    %vm19 = vcmask 261120
    %20 = vst.msk [vmem:[#allocation2] sm:$0xff] %vm19, 0.0
  $region17: #{m2tr_forward.13} parent=0 // pred_fallthru
    _
  %v21 = vld [vmem:[#allocation2] sm:$0xff]
  %v22 = vld [vmem:[%s0] sm:$0xff]
  %v23 = vld [vmem:[%s0 + $0x8] sm:$0xff]
  %v24 = vld [vmem:[%s1] sm:$0xf]
  %v25 = vld [vmem:[%s1 + $0x4] sm:$0xf]
  %v26 = vld [vmem:[%s1 + $0x8] sm:$0xf]
  %v27 = vld [vmem:[%s1 + $0xc] sm:$0xf]
  %v28 = vld [vmem:[%s1 + $0x10] sm:$0xf]
  %v29 = vld [vmem:[%s1 + $0x14] sm:$0xf]
  %v30 = vld [vmem:[%s1 + $0x18] sm:$0xf]
  %v31 = vld [vmem:[%s1 + $0x1c] sm:$0xf]
  %v32 = vld [vmem:[%s1 + $0x20] sm:$0xf]
  %v33 = vld [vmem:[%s1 + $0x24] sm:$0xf]
  %v34 = vld [vmem:[%s1 + $0x28] sm:$0xf]
  %v35 = vld [vmem:[%s1 + $0x2c] sm:$0xf]
  %v36 = vld [vmem:[%s1 + $0x30] sm:$0xf]
  %v37 = vld [vmem:[%s1 + $0x34] sm:$0xf]
  %v38 = vld [vmem:[%s1 + $0x38] sm:$0xf]
  %v39 = vld [vmem:[%s1 + $0x3c] sm:$0xf]
  %v40 = vld [vmem:[%s1 + $0x40] sm:$0xf]
  %v41 = vld [vmem:[%s1 + $0x44] sm:$0xf]
  %v42 = vld [vmem:[%s1 + $0x48] sm:$0xf]
  %v43 = vld [vmem:[%s1 + $0x4c] sm:$0xf]
  %v44 = vld [vmem:[%s1 + $0x50] sm:$0xf]
  %v45 = vld [vmem:[%s1 + $0x54] sm:$0xf]
  %v46 = vld [vmem:[%s1 + $0x58] sm:$0xf]
  %v47 = vld [vmem:[%s1 + $0x5c] sm:$0xf]
  %v48 = vld [vmem:[%s1 + $0x60] sm:$0xf]
  %v49 = vld [vmem:[%s1 + $0x64] sm:$0xf]
  %v50 = vld [vmem:[%s1 + $0x68] sm:$0xf]
  %v51 = vld [vmem:[%s1 + $0x6c] sm:$0xf]
  %v52 = vld [vmem:[%s1 + $0x70] sm:$0xf]
  %v53 = vld [vmem:[%s1 + $0x74] sm:$0xf]
  %v54 = vld [vmem:[%s1 + $0x78] sm:$0xf]
  %v55 = vld [vmem:[%s1 + $0x7c] sm:$0xf]
  %v56 = vld [vmem:[%s1 + $0x80] sm:$0xf]
  %v57 = vld [vmem:[%s1 + $0x84] sm:$0xf]
  %v58 = vld [vmem:[%s1 + $0x88] sm:$0xf]
  %v59 = vld [vmem:[%s1 + $0x8c] sm:$0xf]
  %v60 = vld [vmem:[%s1 + $0x90] sm:$0xf]
  %v61 = vld [vmem:[%s1 + $0x94] sm:$0xf]
  %v62 = vld [vmem:[%s1 + $0x98] sm:$0xf]
  %v63 = vld [vmem:[%s1 + $0x9c] sm:$0xf]
  %v64 = vld [vmem:[%s1 + $0xa0] sm:$0xf]
  %v65 = vld [vmem:[%s1 + $0xa4] sm:$0xf]
  %v66 = vld [vmem:[%s1 + $0xa8] sm:$0xf]
  %v67 = vld [vmem:[%s1 + $0xac] sm:$0xf]
  %v68 = vld [vmem:[%s1 + $0xb0] sm:$0xf]
  %v69 = vld [vmem:[%s1 + $0xb4] sm:$0xf]
  %v70 = vld [vmem:[%s1 + $0xb8] sm:$0xf]
  %v71 = vld [vmem:[%s1 + $0xbc] sm:$0xf]
  %v72 = vld [vmem:[%s1 + $0xc0] sm:$0xf]
  %v73 = vld [vmem:[%s1 + $0xc4] sm:$0xf]
  %v74 = vld [vmem:[%s1 + $0xc8] sm:$0xf]
  %v75 = vld [vmem:[%s1 + $0xcc] sm:$0xf]
  %v76 = vld [vmem:[%s1 + $0xd0] sm:$0xf]
  %v77 = vld [vmem:[%s1 + $0xd4] sm:$0xf]
  %v78 = vld [vmem:[%s1 + $0xd8] sm:$0xf]
  %v79 = vld [vmem:[%s1 + $0xdc] sm:$0xf]
  %v80 = vld [vmem:[%s1 + $0xe0] sm:$0xf]
  %v81 = vld [vmem:[%s1 + $0xe4] sm:$0xf]
  %v82 = vld [vmem:[%s1 + $0xe8] sm:$0xf]
  %v83 = vld [vmem:[%s1 + $0xec] sm:$0xf]
  %v84 = vld [vmem:[%s1 + $0xf0] sm:$0xf]
  %v85 = vld [vmem:[%s1 + $0xf4] sm:$0xf]
  %v86 = vld [vmem:[%s1 + $0xf8] sm:$0xf]
  %v87 = vld [vmem:[%s1 + $0xfc] sm:$0xf]
  %v90 = vunpack.c.l.b16 %v22
  %v91 = vunpack.c.h.b16 %v22
  %v92 = vunpack.c.l.b16 %v23
  %v93 = vunpack.c.h.b16 %v23
  %v94 = vpack.c.b16 %v90, %v90
  %v95 = vpack.c.b16 %v91, %v91
  %v96 = vpack.c.b16 %v92, %v92
  %v97 = vpack.c.b16 %v93, %v93
  %v166 = vunpack.c.l.b16 %v24
  %v167 = vunpack.c.l.b16 %v25
  %v168 = vunpack.c.l.b16 %v26
  %v169 = vunpack.c.l.b16 %v27
  %v170 = vunpack.c.l.b16 %v28
  %v171 = vunpack.c.l.b16 %v29
  %v172 = vunpack.c.l.b16 %v30
  %v173 = vunpack.c.l.b16 %v31
  %v174 = vunpack.c.l.b16 %v32
  %v175 = vunpack.c.l.b16 %v33
  %v176 = vunpack.c.l.b16 %v34
  %v177 = vunpack.c.l.b16 %v35
  %v178 = vunpack.c.l.b16 %v36
  %v179 = vunpack.c.l.b16 %v37
  %v180 = vunpack.c.l.b16 %v38
  %v181 = vunpack.c.l.b16 %v39
  %v182 = vunpack.c.l.b16 %v40
  %v183 = vunpack.c.l.b16 %v41
  %v184 = vunpack.c.l.b16 %v42
  %v185 = vunpack.c.l.b16 %v43
  %v186 = vunpack.c.l.b16 %v44
  %v187 = vunpack.c.l.b16 %v45
  %v188 = vunpack.c.l.b16 %v46
  %v189 = vunpack.c.l.b16 %v47
  %v190 = vunpack.c.l.b16 %v48
  %v191 = vunpack.c.l.b16 %v49
  %v192 = vunpack.c.l.b16 %v50
  %v193 = vunpack.c.l.b16 %v51
  %v194 = vunpack.c.l.b16 %v52
  %v195 = vunpack.c.l.b16 %v53
  %v196 = vunpack.c.l.b16 %v54
  %v197 = vunpack.c.l.b16 %v55
  %v198 = vunpack.c.l.b16 %v56
  %v199 = vunpack.c.l.b16 %v57
  %v200 = vunpack.c.l.b16 %v58
  %v201 = vunpack.c.l.b16 %v59
  %v202 = vunpack.c.l.b16 %v60
  %v203 = vunpack.c.l.b16 %v61
  %v204 = vunpack.c.l.b16 %v62
  %v205 = vunpack.c.l.b16 %v63
  %v206 = vunpack.c.l.b16 %v64
  %v207 = vunpack.c.l.b16 %v65
  %v208 = vunpack.c.l.b16 %v66
  %v209 = vunpack.c.l.b16 %v67
  %v210 = vunpack.c.l.b16 %v68
  %v211 = vunpack.c.l.b16 %v69
  %v212 = vunpack.c.l.b16 %v70
  %v213 = vunpack.c.l.b16 %v71
  %v214 = vunpack.c.l.b16 %v72
  %v215 = vunpack.c.l.b16 %v73
  %v216 = vunpack.c.l.b16 %v74
  %v217 = vunpack.c.l.b16 %v75
  %v218 = vunpack.c.l.b16 %v76
  %v219 = vunpack.c.l.b16 %v77
  %v220 = vunpack.c.l.b16 %v78
  %v221 = vunpack.c.l.b16 %v79
  %v222 = vunpack.c.l.b16 %v80
  %v223 = vunpack.c.l.b16 %v81
  %v224 = vunpack.c.l.b16 %v82
  %v225 = vunpack.c.l.b16 %v83
  %v226 = vunpack.c.l.b16 %v84
  %v227 = vunpack.c.l.b16 %v85
  %v228 = vunpack.c.l.b16 %v86
  %v229 = vunpack.c.l.b16 %v87
  %v230 = vpack.c.b16 %v167, %v166
  %v231 = vpack.c.b16 %v169, %v168
  %v232 = vpack.c.b16 %v171, %v170
  %v233 = vpack.c.b16 %v173, %v172
  %v234 = vpack.c.b16 %v175, %v174
  %v235 = vpack.c.b16 %v177, %v176
  %v236 = vpack.c.b16 %v179, %v178
  %v237 = vpack.c.b16 %v181, %v180
  %v238 = vpack.c.b16 %v183, %v182
  %v239 = vpack.c.b16 %v185, %v184
  %v240 = vpack.c.b16 %v187, %v186
  %v241 = vpack.c.b16 %v189, %v188
  %v242 = vpack.c.b16 %v191, %v190
  %v243 = vpack.c.b16 %v193, %v192
  %v244 = vpack.c.b16 %v195, %v194
  %v245 = vpack.c.b16 %v197, %v196
  %v246 = vpack.c.b16 %v199, %v198
  %v247 = vpack.c.b16 %v201, %v200
  %v248 = vpack.c.b16 %v203, %v202
  %v249 = vpack.c.b16 %v205, %v204
  %v250 = vpack.c.b16 %v207, %v206
  %v251 = vpack.c.b16 %v209, %v208
  %v252 = vpack.c.b16 %v211, %v210
  %v253 = vpack.c.b16 %v213, %v212
  %v254 = vpack.c.b16 %v215, %v214
  %v255 = vpack.c.b16 %v217, %v216
  %v256 = vpack.c.b16 %v219, %v218
  %v257 = vpack.c.b16 %v221, %v220
  %v258 = vpack.c.b16 %v223, %v222
  %v259 = vpack.c.b16 %v225, %v224
  %v260 = vpack.c.b16 %v227, %v226
  %v261 = vpack.c.b16 %v229, %v228
  %294 = vmatprep.subr.bf16.mxu0 0
  %295 = vmatpush1.bf16.msra.mxu0 %v230
  %296 = vmatprep.subr.bf16.mxu0 0
  %297 = vmatpush1.bf16.msra.mxu0 %v231
  %298 = vmatprep.subr.bf16.mxu0 0
  %299 = vmatpush1.bf16.msra.mxu0 %v232
  %300 = vmatprep.subr.bf16.mxu0 0
  %301 = vmatpush1.bf16.msra.mxu0 %v233
  %302 = vmatprep.subr.bf16.mxu0 0
  %303 = vmatpush1.bf16.msra.mxu0 %v234
  %304 = vmatprep.subr.bf16.mxu0 0
  %305 = vmatpush1.bf16.msra.mxu0 %v235
  %306 = vmatprep.subr.bf16.mxu0 0
  %307 = vmatpush1.bf16.msra.mxu0 %v236
  %308 = vmatprep.subr.bf16.mxu0 0
  %309 = vmatpush1.bf16.msra.mxu0 %v237
  %310 = vmatprep.subr.bf16.mxu0 0
  %311 = vmatpush1.bf16.msra.mxu0 %v238
  %312 = vmatprep.subr.bf16.mxu0 0
  %313 = vmatpush1.bf16.msra.mxu0 %v239
  %314 = vmatprep.subr.bf16.mxu0 0
  %315 = vmatpush1.bf16.msra.mxu0 %v240
  %316 = vmatprep.subr.bf16.mxu0 0
  %317 = vmatpush1.bf16.msra.mxu0 %v241
  %318 = vmatprep.subr.bf16.mxu0 0
  %319 = vmatpush1.bf16.msra.mxu0 %v242
  %320 = vmatprep.subr.bf16.mxu0 0
  %321 = vmatpush1.bf16.msra.mxu0 %v243
  %322 = vmatprep.subr.bf16.mxu0 0
  %323 = vmatpush1.bf16.msra.mxu0 %v244
  %324 = vmatprep.subr.bf16.mxu0 0
  %325 = vmatpush1.bf16.msra.mxu0 %v245
  %326 = vmatprep.mubr.bf16.mxu0 %v95
  %327 = vmatmul.mubr.bf16.gmra.mrb[0].mxu0 %v94
  %v328 = vpop.f32.mrb[0].mxu0
  %v329 = vadd.f32 0.0, %v328
  %v330 = vpop.f32.mrb[0].mxu0
  %v331 = vpop.f32.mrb[0].mxu0
  %v332 = vpop.f32.mrb[0].mxu0
  %333 = vdwg.mxu0
  %334 = vmatprep.subr.bf16.mxu0 0
  %335 = vmatpush1.bf16.msra.mxu0 %v246
  %336 = vmatprep.subr.bf16.mxu0 0
  %337 = vmatpush1.bf16.msra.mxu0 %v247
  %338 = vmatprep.subr.bf16.mxu0 0
  %339 = vmatpush1.bf16.msra.mxu0 %v248
  %340 = vmatprep.subr.bf16.mxu0 0
  %341 = vmatpush1.bf16.msra.mxu0 %v249
  %342 = vmatprep.subr.bf16.mxu0 0
  %343 = vmatpush1.bf16.msra.mxu0 %v250
  %344 = vmatprep.subr.bf16.mxu0 0
  %345 = vmatpush1.bf16.msra.mxu0 %v251
  %346 = vmatprep.subr.bf16.mxu0 0
  %347 = vmatpush1.bf16.msra.mxu0 %v252
  %348 = vmatprep.subr.bf16.mxu0 0
  %349 = vmatpush1.bf16.msra.mxu0 %v253
  %350 = vmatprep.subr.bf16.mxu0 0
  %351 = vmatpush1.bf16.msra.mxu0 %v254
  %352 = vmatprep.subr.bf16.mxu0 0
  %353 = vmatpush1.bf16.msra.mxu0 %v255
  %354 = vmatprep.subr.bf16.mxu0 0
  %355 = vmatpush1.bf16.msra.mxu0 %v256
  %356 = vmatprep.subr.bf16.mxu0 0
  %357 = vmatpush1.bf16.msra.mxu0 %v257
  %358 = vmatprep.subr.bf16.mxu0 0
  %359 = vmatpush1.bf16.msra.mxu0 %v258
  %360 = vmatprep.subr.bf16.mxu0 0
  %361 = vmatpush1.bf16.msra.mxu0 %v259
  %362 = vmatprep.subr.bf16.mxu0 0
  %363 = vmatpush1.bf16.msra.mxu0 %v260
  %364 = vmatprep.subr.bf16.mxu0 0
  %365 = vmatpush1.bf16.msra.mxu0 %v261
  %366 = vmatprep.mubr.bf16.mxu0 %v97
  %367 = vmatmul.mubr.bf16.gmra.mrb[0].mxu0 %v96
  %v368 = vpop.f32.mrb[0].mxu0
  %v369 = vadd.f32 %v329, %v368
  %v370 = vpop.f32.mrb[0].mxu0
  %v371 = vpop.f32.mrb[0].mxu0
  %v372 = vpop.f32.mrb[0].mxu0
  %373 = vdwg.mxu0
  %v374 = vadd.f32 %v21, %v369
  %vm375 = vcmask 261120
  %376 = vst.msk [vmem:[#allocation2] sm:$0xff] %vm375, %v374
  // Predicated region
  $region18: #{m2tr_forward.13} parent=0 // pred_check
    %p377 = pneg %p15
  $region19: #{m2tr_forward.13} parent=0 // pred_check_branch
    %379 = sbr.rel (%p377) target = $region21
  $region20: #{m2tr_forward.13} parent=0 // pred_region
    %v380 = vld [vmem:[#allocation2] sm:$0xff]
    %v381 = vld [vmem:[%s2] sm:$0x1]
    %v383 = vlaneseq
    %v384 = vshrl.u32 %v383, 7
    %v385 = vsub.s32 0, %v384
    %v386 = vrot.slane %v381, %v385
    %v388 = vadd.f32 %v380, %v386
    %v389 = vpack.c.bf16 %v388, %v388
    %vm390 = vcmask 257024
    %391 = vst.msk [vmem:[%s3] sm:$0xf] %vm390, %v389
  $region21: #{m2tr_forward.13} parent=0 // pred_fallthru
    _
  // Predicated region
  $region22: #{m2tr_forward.13} parent=0 // pred_check
    _
  $region23: #{m2tr_forward.13} parent=0 // pred_check_branch
    %393 = sbr.rel (0) target = $region25
  $region24: #{m2tr_forward.13} parent=0 // pred_region
    _
  $region25: #{m2tr_forward.13} parent=0 // pred_fallthru
    _
  // Predicated region
  $region26: #{m2tr_forward.13} parent=0 // pred_check
    _
  $region27: #{m2tr_forward.13} parent=0 // pred_check_branch
    %395 = sbr.rel (0) target = $region29
  $region28: #{m2tr_forward.13} parent=0 // pred_region
    _
  $region29: #{m2tr_forward.13} parent=0 // pred_fallthru
    _

// kernel: m2tr_forward.15
$region0: #{m2tr_forward.15}
  #allocation0 [shape = 'u32[]', space=smem, size = 0x4, offset = 0x4, fixed_abs, tag = 'smem constant byte address 0x4 - core index']
  #allocation1 [shape = 'u32[144,128]{1,0:T(1,128)}', space=vmem, size = 0x12000, scoped, tag = 'internal scratch']
  %s0 = inlined_call_operand.vmem [shape: bf16[8,4,8], index: 0, kind: input, shape index: {}]
  %s1 = inlined_call_operand.vmem [shape: bf16[8,4,8], index: 1, kind: input, shape index: {}]
  %s2 = inlined_call_operand.vmem [shape: bf16[8,4,8], index: 2, kind: input, shape index: {}]
  %s3 = inlined_call_operand.vmem [shape: bf16[8,4,8], index: 3, kind: output, shape index: {}]
  %s4 = sld [smem:[#allocation0]]
  $region45: #{m2tr_forward.15} parent=0
    _
  %s6 = ssub.s32 1, %s4
  %s7 = scalar_select 0, %s6, %s4
  loop: start=0, step=1, limit=10
  $region2: #{m2tr_forward.15} parent=0 // loop_pre_header
    _
  $region3: #{m2tr_forward.15} parent=0 // loop_header
    %s9 = sphi 0, %s13
    %p10 = scmp.ge.s32.totalorder %s9, 10
    %s19 = sphi 0, %s21
    %s22 = sphi 0, %s19
    %s23 = sphi 0, %s22
    %s39 = sphi 0, %s23
    %s45 = sphi 0, %s47
    %s48 = sphi 0, %s45
    %s49 = sphi 0, %s48
    %s65 = sphi 0, %s49
    %s71 = sphi 0, %s73
    %s74 = sphi 0, %s71
    %s75 = sphi 0, %s74
    %s91 = sphi 0, %s75
    %s97 = sphi 0, %s99
    %s100 = sphi 0, %s97
    %s101 = sphi 0, %s100
    %s117 = sphi 0, %s101
  $region4: #{m2tr_forward.15} parent=0 // loop_header_branch
    %12 = sbr.rel (%p10) target = $region8
  $region5: #{m2tr_forward.15} parent=0 // loop_body
    %s14 = ssub.s32 %s9, 1
    %s15 = ssub.s32 %s9, 2
    %s16 = sadd.s32 %s9, 1
    %s17 = ssub.s32 %s9, %s16
    %p18 = scmp.eq.s32.totalorder %s17, 0
    %s20 = sadd.s32 %s19, 1
    %s21 = scalar_select %p18, %s19, %s20
    %p24 = pneg %p18
    %p25 = scmp.eq.s32.totalorder %s9, 7
    %p26 = por %p24, %p25
    %p27 = scmp.ne.s32.totalorder %s19, %s22
    %p28 = scmp.eq.s32.totalorder %s9, 0
    %p29 = por %p27, %p28
    %p30 = scmp.ne.s32.totalorder %s19, %s22
    %p31 = scmp.eq.s32.totalorder %s14, 7
    %p32 = por %p30, %p31
    %p33 = scmp.ne.s32.totalorder %s22, %s23
    %p34 = scmp.eq.s32.totalorder %s14, 0
    %p35 = por %p33, %p34
    %p36 = scmp.ne.s32.totalorder %s22, %s23
    %p37 = scmp.eq.s32.totalorder %s15, 7
    %p38 = por %p36, %p37
    %p40 = scmp.ne.s32.totalorder %s23, %s39
    %p41 = scmp.eq.s32.totalorder %s15, 0
    %p42 = por %p40, %p41
    %s43 = ssub.s32 %s9, %s16
    %p44 = scmp.eq.s32.totalorder %s43, 0
    %s46 = sadd.s32 %s45, 1
    %s47 = scalar_select %p44, %s45, %s46
    %p50 = pneg %p44
    %p51 = scmp.eq.s32.totalorder %s9, 7
    %p52 = por %p50, %p51
    %p53 = scmp.ne.s32.totalorder %s45, %s48
    %p54 = scmp.eq.s32.totalorder %s9, 0
    %p55 = por %p53, %p54
    %p56 = scmp.ne.s32.totalorder %s45, %s48
    %p57 = scmp.eq.s32.totalorder %s14, 7
    %p58 = por %p56, %p57
    %p59 = scmp.ne.s32.totalorder %s48, %s49
    %p60 = scmp.eq.s32.totalorder %s14, 0
    %p61 = por %p59, %p60
    %p62 = scmp.ne.s32.totalorder %s48, %s49
    %p63 = scmp.eq.s32.totalorder %s15, 7
    %p64 = por %p62, %p63
    %p66 = scmp.ne.s32.totalorder %s49, %s65
    %p67 = scmp.eq.s32.totalorder %s15, 0
    %p68 = por %p66, %p67
    %s69 = ssub.s32 %s9, %s16
    %p70 = scmp.eq.s32.totalorder %s69, 0
    %s72 = sadd.s32 %s71, 1
    %s73 = scalar_select %p70, %s71, %s72
    %p76 = pneg %p70
    %p77 = scmp.eq.s32.totalorder %s9, 7
    %p78 = por %p76, %p77
    %p79 = scmp.ne.s32.totalorder %s71, %s74
    %p80 = scmp.eq.s32.totalorder %s9, 0
    %p81 = por %p79, %p80
    %p82 = scmp.ne.s32.totalorder %s71, %s74
    %p83 = scmp.eq.s32.totalorder %s14, 7
    %p84 = por %p82, %p83
    %p85 = scmp.ne.s32.totalorder %s74, %s75
    %p86 = scmp.eq.s32.totalorder %s14, 0
    %p87 = por %p85, %p86
    %p88 = scmp.ne.s32.totalorder %s74, %s75
    %p89 = scmp.eq.s32.totalorder %s15, 7
    %p90 = por %p88, %p89
    %p92 = scmp.ne.s32.totalorder %s75, %s91
    %p93 = scmp.eq.s32.totalorder %s15, 0
    %p94 = por %p92, %p93
    %s95 = ssub.s32 %s9, %s16
    %p96 = scmp.eq.s32.totalorder %s95, 0
    %s98 = sadd.s32 %s97, 1
    %s99 = scalar_select %p96, %s97, %s98
    %p102 = pneg %p96
    %p103 = scmp.eq.s32.totalorder %s9, 7
    %p104 = por %p102, %p103
    %p105 = scmp.ne.s32.totalorder %s97, %s100
    %p106 = scmp.eq.s32.totalorder %s9, 0
    %p107 = por %p105, %p106
    %p108 = scmp.ne.s32.totalorder %s97, %s100
    %p109 = scmp.eq.s32.totalorder %s14, 7
    %p110 = por %p108, %p109
    %p111 = scmp.ne.s32.totalorder %s100, %s101
    %p112 = scmp.eq.s32.totalorder %s14, 0
    %p113 = por %p111, %p112
    %p114 = scmp.ne.s32.totalorder %s100, %s101
    %p115 = scmp.eq.s32.totalorder %s15, 7
    %p116 = por %p114, %p115
    %p118 = scmp.ne.s32.totalorder %s101, %s117
    %p119 = scmp.eq.s32.totalorder %s15, 0
    %p120 = por %p118, %p119
    %p121 = scmp.le.s32.totalorder 1, %s9
    %p122 = scmp.lt.s32.totalorder %s9, 9
    %p123 = pnand %p121, %p122
    %p124 = pneg %p123
    // Predicated region
    $region9: #{m2tr_forward.15} parent=5 // pred_check
      _
    $region10: #{m2tr_forward.15} parent=5 // pred_check_branch
      %126 = sbr.rel (%p123) target = $region12
    $region11: #{m2tr_forward.15} parent=5 // pred_region
      %s127 = ssub.s32 %s9, 1
    $region12: #{m2tr_forward.15} parent=5 // pred_fallthru
      _
    %p128 = scmp.lt.s32.totalorder %s9, 8
    // Predicated region
    $region13: #{m2tr_forward.15} parent=5 // pred_check
      %p129 = pneg %p128
    $region14: #{m2tr_forward.15} parent=5 // pred_check_branch
      %131 = sbr.rel (%p129) target = $region16
    $region15: #{m2tr_forward.15} parent=5 // pred_region
      // Predicated region
      $region17: #{m2tr_forward.15} parent=15 // pred_check
        %p132 = pneg %p29
      $region18: #{m2tr_forward.15} parent=15 // pred_check_branch
        %134 = sbr.rel (%p132) target = $region20
      $region19: #{m2tr_forward.15} parent=15 // pred_region
        %p135 = scmp.lt.s32.totalorder %s9, 7
        %s136 = scalar_select %p135, %s9, 7
        %s137 = smul.addr %s136, 2
        %s138 = scalar_lea.vmem %s0, %s137
      $region20: #{m2tr_forward.15} parent=15 // pred_fallthru
        _
      // Predicated region
      $region21: #{m2tr_forward.15} parent=15 // pred_check
        %p139 = pneg %p55
      $region22: #{m2tr_forward.15} parent=15 // pred_check_branch
        %141 = sbr.rel (%p139) target = $region24
      $region23: #{m2tr_forward.15} parent=15 // pred_region
        %p142 = scmp.lt.s32.totalorder %s9, 7
        %s143 = scalar_select %p142, %s9, 7
        %s144 = smul.addr %s143, 2
        %s145 = scalar_lea.vmem %s1, %s144
      $region24: #{m2tr_forward.15} parent=15 // pred_fallthru
        _
      // Predicated region
      $region25: #{m2tr_forward.15} parent=15 // pred_check
        %p146 = pneg %p81
      $region26: #{m2tr_forward.15} parent=15 // pred_check_branch
        %148 = sbr.rel (%p146) target = $region28
      $region27: #{m2tr_forward.15} parent=15 // pred_region
        %p149 = scmp.lt.s32.totalorder %s9, 7
        %s150 = scalar_select %p149, %s9, 7
        %s151 = smul.addr %s150, 2
        %s152 = scalar_lea.vmem %s2, %s151
      $region28: #{m2tr_forward.15} parent=15 // pred_fallthru
        _
    $region16: #{m2tr_forward.15} parent=5 // pred_fallthru
      _
    %p153 = scmp.le.s32.totalorder 1, %s9
    %p154 = scmp.lt.s32.totalorder %s9, 9
    %p155 = pnand %p153, %p154
    %p156 = pneg %p155
    // Predicated region
    $region29: #{m2tr_forward.15} parent=5 // pred_check
      _
    $region30: #{m2tr_forward.15} parent=5 // pred_check_branch
      %158 = sbr.rel (%p155) target = $region32
    $region31: #{m2tr_forward.15} parent=5 // pred_region
      %s159 = ssub.s32 %s9, 1
      %p160 = scmp.lt.s32.totalorder %s14, 7
      %s161 = scalar_select %p160, %s14, 7
      %s162 = smul.addr %s161, 2
      %s163 = scalar_lea.vmem %s0, %s162
      %p164 = pneg %p35
      %p165 = pneg %p32
      %p166 = scmp.lt.s32.totalorder %s14, 7
      %s167 = scalar_select %p166, %s14, 7
      %s168 = smul.addr %s167, 2
      %s169 = scalar_lea.vmem %s1, %s168
      %p170 = pneg %p61
      %p171 = pneg %p58
      %p172 = scmp.lt.s32.totalorder %s14, 7
      %s173 = scalar_select %p172, %s14, 7
      %s174 = smul.addr %s173, 2
      %s175 = scalar_lea.vmem %s2, %s174
      %p176 = pneg %p87
      %p177 = pneg %p84
      %p178 = pneg %p113
      %p179 = pneg %p110
      %p180 = scmp.lt.s32.totalorder %s14, 7
      %s181 = scalar_select %p180, %s14, 7
      %s182 = smul.addr %s181, 2
      %s183 = scalar_lea.vmem %s3, %s182
      %p184 = scmp.lt.s32.totalorder %s14, 7
      %s185 = scalar_select %p184, %s14, 7
      %s186 = smul.addr %s185, 2
      %s187 = scalar_lea.vmem %s0, %s186
      %p188 = scmp.lt.s32.totalorder %s14, 7
      %s189 = scalar_select %p188, %s14, 7
      %s190 = smul.addr %s189, 2
      %s191 = scalar_lea.vmem %s1, %s190
      %p192 = scmp.lt.s32.totalorder %s14, 7
      %s193 = scalar_select %p192, %s14, 7
      %s194 = smul.addr %s193, 2
      %s195 = scalar_lea.vmem %s2, %s194
      %p196 = scmp.lt.s32.totalorder %s14, 7
      %s197 = scalar_select %p196, %s14, 7
      %s198 = smul.addr %s197, 2
      %s199 = scalar_lea.vmem %s3, %s198
      %v201 = vld [vmem:[%s187] sm:$0x3]
      %v202 = vld [vmem:[%s191] sm:$0x3]
      %vm203 = vcmask 64512
      %v205 = vsel %vm203, %v201, 0
      %v208 = vsel %vm203, %v202, 0
      %210 = vmatprep.subr.bf16.mxu0 0
      %211 = vmatpush1.bf16.xpose.msra.mxu0 %v208
      %212 = vmatprep.subr.bf16.mxu0 0
      %213 = vmatpush1.bf16.xpose.msra.mxu0 0
      %214 = vmatprep.subr.bf16.mxu0 0
      %215 = vmatpush1.bf16.xpose.msra.mxu0 0
      %216 = vmatprep.subr.bf16.mxu0 0
      %217 = vmatpush1.bf16.xpose.msra.mxu0 0
      %218 = vmatprep.subr.bf16.mxu0 0
      %219 = vmatpush1.bf16.xpose.msra.mxu0 0
      %220 = vmatprep.subr.bf16.mxu0 0
      %221 = vmatpush1.bf16.xpose.msra.mxu0 0
      %222 = vmatprep.subr.bf16.mxu0 0
      %223 = vmatpush1.bf16.xpose.msra.mxu0 0
      %224 = vmatprep.subr.bf16.mxu0 0
      %225 = vmatpush1.bf16.xpose.msra.mxu0 0
      %226 = vmatprep.subr.bf16.mxu0 0
      %227 = vmatpush1.bf16.xpose.msra.mxu0 0
      %228 = vmatprep.subr.bf16.mxu0 0
      %229 = vmatpush1.bf16.xpose.msra.mxu0 0
      %230 = vmatprep.subr.bf16.mxu0 0
      %231 = vmatpush1.bf16.xpose.msra.mxu0 0
      %232 = vmatprep.subr.bf16.mxu0 0
      %233 = vmatpush1.bf16.xpose.msra.mxu0 0
      %234 = vmatprep.subr.bf16.mxu0 0
      %235 = vmatpush1.bf16.xpose.msra.mxu0 0
      %236 = vmatprep.subr.bf16.mxu0 0
      %237 = vmatpush1.bf16.xpose.msra.mxu0 0
      %238 = vmatprep.subr.bf16.mxu0 0
      %239 = vmatpush1.bf16.xpose.msra.mxu0 0
      %240 = vmatprep.subr.bf16.mxu0 0
      %241 = vmatpush1.bf16.xpose.msra.mxu0 0
      %242 = vmatprep.mubr.bf16.mxu0 0
      %243 = vmatmul.mubr.bf16.gmra.mrb[0].mxu0 %v205
      %v244 = vpop.f32.mrb[0].mxu0
      %v245 = vadd.f32 0.0, %v244
      %v246 = vpop.f32.mrb[0].mxu0
      %v247 = vpop.f32.mrb[0].mxu0
      %v248 = vpop.f32.mrb[0].mxu0
      %249 = vdwg.mxu0
      %v250 = vmul.f32 %v245, 0.35355338
      %vm251 = vcmask 27648
      %v252 = vsel %vm251, %v250, -inf
      %253 = vmax.xlane.f32.xlu0 %v252
      %v254 = vpop.xlane.xlu0 %253
      %v255 = vsub.f32 %v250, %v254
      %v256 = vmul.f32 %v255, 1.442695
      %v257 = vpow.pop %v256
      %v258 = vsel %vm251, %v257, 0.0
      %259 = vadd.xlane.f32.xlu0 %v258
      %v260 = vpop.xlane.xlu0 %259
      %v261 = vpack.c.bf16 %v257, %v257
      %v262 = vld [vmem:[%s195] sm:$0x3]
      %vm263 = vcmask 31744
      %v265 = vsel %vm263, %v261, 0
      %vm267 = vcmask 1041408
      %v269 = vsel %vm267, %v262, 0
      %271 = vmatprep.subr.bf16.mxu0 0
      %272 = vmatpush1.bf16.msra.mxu0 %v269
      %273 = vmatprep.subr.bf16.mxu0 0
      %274 = vmatpush1.bf16.msra.mxu0 0
      %275 = vmatprep.subr.bf16.mxu0 0
      %276 = vmatpush1.bf16.msra.mxu0 0
      %277 = vmatprep.subr.bf16.mxu0 0
      %278 = vmatpush1.bf16.msra.mxu0 0
      %279 = vmatprep.subr.bf16.mxu0 0
      %280 = vmatpush1.bf16.msra.mxu0 0
      %281 = vmatprep.subr.bf16.mxu0 0
      %282 = vmatpush1.bf16.msra.mxu0 0
      %283 = vmatprep.subr.bf16.mxu0 0
      %284 = vmatpush1.bf16.msra.mxu0 0
      %285 = vmatprep.subr.bf16.mxu0 0
      %286 = vmatpush1.bf16.msra.mxu0 0
      %287 = vmatprep.subr.bf16.mxu0 0
      %288 = vmatpush1.bf16.msra.mxu0 0
      %289 = vmatprep.subr.bf16.mxu0 0
      %290 = vmatpush1.bf16.msra.mxu0 0
      %291 = vmatprep.subr.bf16.mxu0 0
      %292 = vmatpush1.bf16.msra.mxu0 0
      %293 = vmatprep.subr.bf16.mxu0 0
      %294 = vmatpush1.bf16.msra.mxu0 0
      %295 = vmatprep.subr.bf16.mxu0 0
      %296 = vmatpush1.bf16.msra.mxu0 0
      %297 = vmatprep.subr.bf16.mxu0 0
      %298 = vmatpush1.bf16.msra.mxu0 0
      %299 = vmatprep.subr.bf16.mxu0 0
      %300 = vmatpush1.bf16.msra.mxu0 0
      %301 = vmatprep.subr.bf16.mxu0 0
      %302 = vmatpush1.bf16.msra.mxu0 0
      %303 = vmatprep.mubr.bf16.mxu0 0
      %304 = vmatmul.mubr.bf16.gmra.mrb[0].mxu0 %v265
      %v305 = vpop.f32.mrb[0].mxu0
      %v306 = vadd.f32 0.0, %v305
      %v307 = vpop.f32.mrb[0].mxu0
      %v308 = vpop.f32.mrb[0].mxu0
      %v309 = vpop.f32.mrb[0].mxu0
      %310 = vdwg.mxu0
      %v311 = vrcp.pop %v260
      %v312 = vmul.f32 %v306, %v311
      %v313 = vpack.c.bf16 %v312, %v312
      %vm314 = vcmask 58368
      %315 = vst.msk [vmem:[%s199] sm:$0x3] %vm314, %v313
      %p316 = scmp.lt.s32.totalorder %s14, 7
      %s317 = scalar_select %p316, %s14, 7
      %s318 = smul.addr %s317, 2
      %s319 = scalar_lea.vmem %s3, %s318
      // Predicated region
      $region33: #{m2tr_forward.15} parent=31 // pred_check
        %p320 = pneg %p110
      $region34: #{m2tr_forward.15} parent=31 // pred_check_branch
        %322 = sbr.rel (%p320) target = $region36
      $region35: #{m2tr_forward.15} parent=31 // pred_region
        _
      $region36: #{m2tr_forward.15} parent=31 // pred_fallthru
        _
    $region32: #{m2tr_forward.15} parent=5 // pred_fallthru
      _
    %p323 = scmp.le.s32.totalorder 2, %s9
    // Predicated region
    $region37: #{m2tr_forward.15} parent=5 // pred_check
      %p324 = pneg %p323
    $region38: #{m2tr_forward.15} parent=5 // pred_check_branch
      %326 = sbr.rel (%p324) target = $region40
    $region39: #{m2tr_forward.15} parent=5 // pred_region
      %s327 = ssub.s32 %s9, 2
      // Predicated region
      $region41: #{m2tr_forward.15} parent=39 // pred_check
        %p328 = pneg %p116
      $region42: #{m2tr_forward.15} parent=39 // pred_check_branch
        %330 = sbr.rel (%p328) target = $region44
      $region43: #{m2tr_forward.15} parent=39 // pred_region
        %p331 = scmp.lt.s32.totalorder %s15, 7
        %s332 = scalar_select %p331, %s15, 7
        %s333 = smul.addr %s332, 2
        %s334 = scalar_lea.vmem %s3, %s333
      $region44: #{m2tr_forward.15} parent=39 // pred_fallthru
        _
    $region40: #{m2tr_forward.15} parent=5 // pred_fallthru
      _
  $region6: #{m2tr_forward.15} parent=0 // loop_footer
    %s13 = sadd.s32 1, %s9
  $region7: #{m2tr_forward.15} parent=0 // loop_footer_branch
    %8 = sbr.rel target = $region3
  $region8: #{m2tr_forward.15} parent=0 // loop_exit
    _

// kernel: m2tr_forward.16
$region0: #{m2tr_forward.16}
  #allocation0 [shape = 'u32[]', space=smem, size = 0x4, offset = 0x4, fixed_abs, tag = 'smem constant byte address 0x4 - core index']
  #allocation1 [shape = 'u32[144,128]{1,0:T(1,128)}', space=vmem, size = 0x12000, scoped, tag = 'internal scratch']
  #allocation2 [shape = 'f32[8,32]{1,0:T(8,128)}', space=vmem, size = 0x1000, scoped, tag = 'scratch operand']
  %s0 = inlined_call_operand.vmem [shape: bf16[8,32], index: 0, kind: input, shape index: {}]
  %s1 = inlined_call_operand.vmem [shape: bf16[32,32], index: 1, kind: input, shape index: {}]
  %s2 = inlined_call_operand.vmem [shape: f32[1,32], index: 2, kind: input, shape index: {}]
  %s3 = inlined_call_operand.vmem [shape: bf16[8,32], index: 3, kind: input, shape index: {}]
  %s4 = inlined_call_operand.vmem [shape: f32[1,32], index: 4, kind: input, shape index: {}]
  %s5 = inlined_call_operand.vmem [shape: f32[1,32], index: 5, kind: input, shape index: {}]
  %s6 = inlined_call_operand.vmem [shape: bf16[8,32], index: 6, kind: output, shape index: {}]
  %s7 = sld [smem:[#allocation0]]
  $region42: #{m2tr_forward.16} parent=0
    _
  %s9 = ssub.s32 1, %s7
  %s10 = scalar_select 0, %s9, %s7
  // Predicated region
  $region2: #{m2tr_forward.16} parent=0 // pred_check
    _
  $region3: #{m2tr_forward.16} parent=0 // pred_check_branch
    %12 = sbr.rel (0) target = $region5
  $region4: #{m2tr_forward.16} parent=0 // pred_region
    _
  $region5: #{m2tr_forward.16} parent=0 // pred_fallthru
    _
  // Predicated region
  $region6: #{m2tr_forward.16} parent=0 // pred_check
    _
  $region7: #{m2tr_forward.16} parent=0 // pred_check_branch
    %14 = sbr.rel (0) target = $region9
  $region8: #{m2tr_forward.16} parent=0 // pred_region
    _
  $region9: #{m2tr_forward.16} parent=0 // pred_fallthru
    _
  // Predicated region
  $region10: #{m2tr_forward.16} parent=0 // pred_check
    _
  $region11: #{m2tr_forward.16} parent=0 // pred_check_branch
    %16 = sbr.rel (0) target = $region13
  $region12: #{m2tr_forward.16} parent=0 // pred_region
    _
  $region13: #{m2tr_forward.16} parent=0 // pred_fallthru
    _
  // Predicated region
  $region14: #{m2tr_forward.16} parent=0 // pred_check
    _
  $region15: #{m2tr_forward.16} parent=0 // pred_check_branch
    %18 = sbr.rel (0) target = $region17
  $region16: #{m2tr_forward.16} parent=0 // pred_region
    _
  $region17: #{m2tr_forward.16} parent=0 // pred_fallthru
    _
  // Predicated region
  $region18: #{m2tr_forward.16} parent=0 // pred_check
    _
  $region19: #{m2tr_forward.16} parent=0 // pred_check_branch
    %20 = sbr.rel (0) target = $region21
  $region20: #{m2tr_forward.16} parent=0 // pred_region
    _
  $region21: #{m2tr_forward.16} parent=0 // pred_fallthru
    _
  // Predicated region
  $region22: #{m2tr_forward.16} parent=0 // pred_check
    _
  $region23: #{m2tr_forward.16} parent=0 // pred_check_branch
    %22 = sbr.rel (0) target = $region25
  $region24: #{m2tr_forward.16} parent=0 // pred_region
    _
  $region25: #{m2tr_forward.16} parent=0 // pred_fallthru
    _
  %p24 = scmp.eq.s32.totalorder 0, 0
  // Predicated region
  $region26: #{m2tr_forward.16} parent=0 // pred_check
    %p25 = pneg %p24
  $region27: #{m2tr_forward.16} parent=0 // pred_check_branch
    %27 = sbr.rel (%p25) target = $region29
  $region28: #{m2tr_forward.16} parent=0 // pred_region
    %vm28 = vcmask 261120
    %29 = vst.msk [vmem:[#allocation2] sm:$0xff] %vm28, 0.0
  $region29: #{m2tr_forward.16} parent=0 // pred_fallthru
    _
  %v30 = vld [vmem:[#allocation2] sm:$0xff]
  %v31 = vld [vmem:[%s0] sm:$0xf]
  %v32 = vld [vmem:[%s1] sm:$0xf]
  %v33 = vld [vmem:[%s1 + $0x4] sm:$0xf]
  %v34 = vld [vmem:[%s1 + $0x8] sm:$0xf]
  %v35 = vld [vmem:[%s1 + $0xc] sm:$0xf]
  %v40 = vunpack.c.l.b16 %v32
  %v41 = vunpack.c.l.b16 %v33
  %v42 = vunpack.c.l.b16 %v34
  %v43 = vunpack.c.l.b16 %v35
  %v44 = vpack.c.b16 %v41, %v40
  %v45 = vpack.c.b16 %v43, %v42
  %vm48 = vcmask 261120
  %v50 = vsel %vm48, %v31, 0
  %52 = vmatprep.subr.bf16.mxu0 0
  %53 = vmatpush1.bf16.msra.mxu0 %v44
  %54 = vmatprep.subr.bf16.mxu0 0
  %55 = vmatpush1.bf16.msra.mxu0 %v45
  %56 = vmatprep.subr.bf16.mxu0 0
  %57 = vmatpush1.bf16.msra.mxu0 0
  %58 = vmatprep.subr.bf16.mxu0 0
  %59 = vmatpush1.bf16.msra.mxu0 0
  %60 = vmatprep.subr.bf16.mxu0 0
  %61 = vmatpush1.bf16.msra.mxu0 0
  %62 = vmatprep.subr.bf16.mxu0 0
  %63 = vmatpush1.bf16.msra.mxu0 0
  %64 = vmatprep.subr.bf16.mxu0 0
  %65 = vmatpush1.bf16.msra.mxu0 0
  %66 = vmatprep.subr.bf16.mxu0 0
  %67 = vmatpush1.bf16.msra.mxu0 0
  %68 = vmatprep.subr.bf16.mxu0 0
  %69 = vmatpush1.bf16.msra.mxu0 0
  %70 = vmatprep.subr.bf16.mxu0 0
  %71 = vmatpush1.bf16.msra.mxu0 0
  %72 = vmatprep.subr.bf16.mxu0 0
  %73 = vmatpush1.bf16.msra.mxu0 0
  %74 = vmatprep.subr.bf16.mxu0 0
  %75 = vmatpush1.bf16.msra.mxu0 0
  %76 = vmatprep.subr.bf16.mxu0 0
  %77 = vmatpush1.bf16.msra.mxu0 0
  %78 = vmatprep.subr.bf16.mxu0 0
  %79 = vmatpush1.bf16.msra.mxu0 0
  %80 = vmatprep.subr.bf16.mxu0 0
  %81 = vmatpush1.bf16.msra.mxu0 0
  %82 = vmatprep.subr.bf16.mxu0 0
  %83 = vmatpush1.bf16.msra.mxu0 0
  %84 = vmatprep.mubr.bf16.mxu0 0
  %85 = vmatmul.mubr.bf16.gmra.mrb[0].mxu0 %v50
  %v86 = vpop.f32.mrb[0].mxu0
  %v87 = vadd.f32 0.0, %v86
  %v88 = vpop.f32.mrb[0].mxu0
  %v89 = vpop.f32.mrb[0].mxu0
  %v90 = vpop.f32.mrb[0].mxu0
  %91 = vdwg.mxu0
  %v92 = vadd.f32 %v30, %v87
  %93 = vst.msk [vmem:[#allocation2] sm:$0xff] %vm48, %v92
  // Predicated region
  $region30: #{m2tr_forward.16} parent=0 // pred_check
    %p94 = pneg %p24
  $region31: #{m2tr_forward.16} parent=0 // pred_check_branch
    %96 = sbr.rel (%p94) target = $region33
  $region32: #{m2tr_forward.16} parent=0 // pred_region
    %v97 = vld [vmem:[#allocation2] sm:$0xff]
    %v98 = vld [vmem:[%s2] sm:$0x1]
    %v100 = vlaneseq
    %v101 = vshrl.u32 %v100, 7
    %v102 = vsub.s32 0, %v101
    %v103 = vrot.slane %v98, %v102
    %v105 = vadd.f32 %v97, %v103
    %v106 = vld [vmem:[%s3] sm:$0xf]
    %v107 = vunpack.c.l.bf16 %v106
    %v108 = vadd.f32 %v105, %v107
    %v109 = vsel %vm48, %v108, 0.0
    %110 = vadd.xlane.f32.xlu0 %v109
    %v111 = vpop.xlane.xlu0 %110
    %v112 = vrcp.pop 32.0
    %v113 = vmul.f32 %v111, %v112
    %v114 = vsub.f32 %v108, %v113
    %v115 = vmul.f32 %v114, %v114
    %v116 = vsel %vm48, %v115, 0.0
    %117 = vadd.xlane.f32.xlu0 %v116
    %v118 = vpop.xlane.xlu0 %117
    %v119 = vmul.f32 %v118, %v112
    %v120 = vadd.f32 %v119, 1e-05
    %v121 = vrsqrt.pop %v120
    %v122 = vmul.f32 %v114, %v121
    %v123 = vld [vmem:[%s4] sm:$0x1]
    %v125 = vlaneseq
    %v126 = vshrl.u32 %v125, 7
    %v127 = vsub.s32 0, %v126
    %v128 = vrot.slane %v123, %v127
    %v130 = vmul.f32 %v122, %v128
    %v131 = vld [vmem:[%s5] sm:$0x1]
    %v133 = vlaneseq
    %v134 = vshrl.u32 %v133, 7
    %v135 = vsub.s32 0, %v134
    %v136 = vrot.slane %v131, %v135
    %v138 = vadd.f32 %v130, %v136
    %v139 = vpack.c.bf16 %v138, %v138
    %vm140 = vcmask 257024
    %141 = vst.msk [vmem:[%s6] sm:$0xf] %vm140, %v139
  $region33: #{m2tr_forward.16} parent=0 // pred_fallthru
    _
  // Predicated region
  $region34: #{m2tr_forward.16} parent=0 // pred_check
    _
  $region35: #{m2tr_forward.16} parent=0 // pred_check_branch
    %143 = sbr.rel (0) target = $region37
  $region36: #{m2tr_forward.16} parent=0 // pred_region
    _
  $region37: #{m2tr_forward.16} parent=0 // pred_fallthru
    _
  // Predicated region
  $region38: #{m2tr_forward.16} parent=0 // pred_check
    _
  $region39: #{m2tr_forward.16} parent=0 // pred_check_branch
    %145 = sbr.rel (0) target = $region41
  $region40: #{m2tr_forward.16} parent=0 // pred_region
    _
  $region41: #{m2tr_forward.16} parent=0 // pred_fallthru
    _

// kernel: m2tr_forward.17
$region0: #{m2tr_forward.17}
  #allocation0 [shape = 'u32[]', space=smem, size = 0x4, offset = 0x4, fixed_abs, tag = 'smem constant byte address 0x4 - core index']
  #allocation1 [shape = 'u32[144,128]{1,0:T(1,128)}', space=vmem, size = 0x12000, scoped, tag = 'internal scratch']
  #allocation2 [shape = 'f32[8,32]{1,0:T(8,128)}', space=vmem, size = 0x1000, scoped, tag = 'scratch operand']
  %s0 = inlined_call_operand.vmem [shape: bf16[8,32], index: 0, kind: input, shape index: {}]
  %s1 = inlined_call_operand.vmem [shape: bf16[32,2048], index: 1, kind: input, shape index: {}]
  %s2 = inlined_call_operand.vmem [shape: f32[1,2048], index: 2, kind: input, shape index: {}]
  %s3 = inlined_call_operand.vmem [shape: bf16[2048,32], index: 3, kind: input, shape index: {}]
  %s4 = inlined_call_operand.vmem [shape: f32[1,32], index: 4, kind: input, shape index: {}]
  %s5 = inlined_call_operand.vmem [shape: f32[1,32], index: 5, kind: input, shape index: {}]
  %s6 = inlined_call_operand.vmem [shape: f32[1,32], index: 6, kind: input, shape index: {}]
  %s7 = inlined_call_operand.vmem [shape: bf16[8,32], index: 7, kind: output, shape index: {}]
  %s8 = sld [smem:[#allocation0]]
  $region92: #{m2tr_forward.17} parent=0
    _
  %s10 = ssub.s32 1, %s8
  %s11 = scalar_select 0, %s10, %s8
  $region1: #{m2tr_forward.17} parent=0
    #allocation3 [shape = 'u8[65536]{0}', space=vmem, size = 0x10000, scoped, tag = 'input window, operand 1']
    loop: start=0, step=1, limit=6
    $region2: #{m2tr_forward.17} parent=1 // loop_pre_header
      _
    $region3: #{m2tr_forward.17} parent=1 // loop_header
      %s13 = sphi 0, %s17
      %p14 = scmp.ge.s32.totalorder %s13, 6
      %s20 = sphi 0, %s32
      %s21 = sphi 0, %s28
      %s22 = sphi 0, %s20
      %s23 = sphi 0, %s21
      %s24 = sphi 0, %s22
      %s25 = sphi 0, %s23
      %s35 = sphi 0, %s37
      %s38 = sphi 0, %s35
      %s39 = sphi 0, %s38
      %s55 = sphi 0, %s39
      %s61 = sphi 0, %s63
      %s64 = sphi 0, %s61
      %s65 = sphi 0, %s64
      %s81 = sphi 0, %s65
      %s87 = sphi 0, %s89
      %s90 = sphi 0, %s87
      %s91 = sphi 0, %s90
      %s107 = sphi 0, %s91
      %s113 = sphi 0, %s115
      %s116 = sphi 0, %s113
      %s117 = sphi 0, %s116
      %s133 = sphi 0, %s117
      %s137 = sphi 0, %s137
      %s139 = sphi 0, %s137
      %s140 = sphi 0, %s139
      %s154 = sphi 0, %s140
      %s158 = sphi 0, %s158
      %s160 = sphi 0, %s158
      %s161 = sphi 0, %s160
      %s175 = sphi 0, %s161
      %s179 = sphi 0, %s179
      %s181 = sphi 0, %s179
      %s182 = sphi 0, %s181
      %s196 = sphi 0, %s182
      %s202 = sphi 0, %s204
      %s205 = sphi 0, %s202
      %s206 = sphi 0, %s205
      %s222 = sphi 0, %s206
    $region4: #{m2tr_forward.17} parent=1 // loop_header_branch
      %16 = sbr.rel (%p14) target = $region8
    $region5: #{m2tr_forward.17} parent=1 // loop_body
      %s18 = ssub.s32 %s13, 1
      %s19 = ssub.s32 %s13, 2
      %s26 = sadd.s32 1, %s21
      %p27 = scmp.ge.s32.totalorder %s26, 4
      %s28 = scalar_select %p27, 0, %s26
      %s29 = sadd.s32 1, %s20
      %s30 = scalar_select %p27, %s29, %s20
      %p31 = scmp.ge.s32.totalorder %s30, 1
      %s32 = scalar_select %p31, 0, %s30
      %s33 = ssub.s32 %s20, %s32
      %p34 = scmp.eq.s32.totalorder %s33, 0
      %s36 = sadd.s32 %s35, 1
      %s37 = scalar_select %p34, %s35, %s36
      %p40 = pneg %p34
      %p41 = scmp.eq.s32.totalorder %s13, 3
      %p42 = por %p40, %p41
      %p43 = scmp.ne.s32.totalorder %s35, %s38
      %p44 = scmp.eq.s32.totalorder %s13, 0
      %p45 = por %p43, %p44
      %p46 = scmp.ne.s32.totalorder %s35, %s38
      %p47 = scmp.eq.s32.totalorder %s18, 3
      %p48 = por %p46, %p47
      %p49 = scmp.ne.s32.totalorder %s38, %s39
      %p50 = scmp.eq.s32.totalorder %s18, 0
      %p51 = por %p49, %p50
      %p52 = scmp.ne.s32.totalorder %s38, %s39
      %p53 = scmp.eq.s32.totalorder %s19, 3
      %p54 = por %p52, %p53
      %p56 = scmp.ne.s32.totalorder %s39, %s55
      %p57 = scmp.eq.s32.totalorder %s19, 0
      %p58 = por %p56, %p57
      %s59 = ssub.s32 %s21, %s28
      %p60 = scmp.eq.s32.totalorder %s59, 0
      %s62 = sadd.s32 %s61, 1
      %s63 = scalar_select %p60, %s61, %s62
      %p66 = pneg %p60
      %p67 = scmp.eq.s32.totalorder %s13, 3
      %p68 = por %p66, %p67
      %p69 = scmp.ne.s32.totalorder %s61, %s64
      %p70 = scmp.eq.s32.totalorder %s13, 0
      %p71 = por %p69, %p70
      %p72 = scmp.ne.s32.totalorder %s61, %s64
      %p73 = scmp.eq.s32.totalorder %s18, 3
      %p74 = por %p72, %p73
      %p75 = scmp.ne.s32.totalorder %s64, %s65
      %p76 = scmp.eq.s32.totalorder %s18, 0
      %p77 = por %p75, %p76
      %p78 = scmp.ne.s32.totalorder %s64, %s65
      %p79 = scmp.eq.s32.totalorder %s19, 3
      %p80 = por %p78, %p79
      %p82 = scmp.ne.s32.totalorder %s65, %s81
      %p83 = scmp.eq.s32.totalorder %s19, 0
      %p84 = por %p82, %p83
      %s85 = ssub.s32 %s21, %s28
      %p86 = scmp.eq.s32.totalorder %s85, 0
      %s88 = sadd.s32 %s87, 1
      %s89 = scalar_select %p86, %s87, %s88
      %p92 = pneg %p86
      %p93 = scmp.eq.s32.totalorder %s13, 3
      %p94 = por %p92, %p93
      %p95 = scmp.ne.s32.totalorder %s87, %s90
      %p96 = scmp.eq.s32.totalorder %s13, 0
      %p97 = por %p95, %p96
      %p98 = scmp.ne.s32.totalorder %s87, %s90
      %p99 = scmp.eq.s32.totalorder %s18, 3
      %p100 = por %p98, %p99
      %p101 = scmp.ne.s32.totalorder %s90, %s91
      %p102 = scmp.eq.s32.totalorder %s18, 0
      %p103 = por %p101, %p102
      %p104 = scmp.ne.s32.totalorder %s90, %s91
      %p105 = scmp.eq.s32.totalorder %s19, 3
      %p106 = por %p104, %p105
      %p108 = scmp.ne.s32.totalorder %s91, %s107
      %p109 = scmp.eq.s32.totalorder %s19, 0
      %p110 = por %p108, %p109
      %s111 = ssub.s32 %s21, %s28
      %p112 = scmp.eq.s32.totalorder %s111, 0
      %s114 = sadd.s32 %s113, 1
      %s115 = scalar_select %p112, %s113, %s114
      %p118 = pneg %p112
      %p119 = scmp.eq.s32.totalorder %s13, 3
      %p120 = por %p118, %p119
      %p121 = scmp.ne.s32.totalorder %s113, %s116
      %p122 = scmp.eq.s32.totalorder %s13, 0
      %p123 = por %p121, %p122
      %p124 = scmp.ne.s32.totalorder %s113, %s116
      %p125 = scmp.eq.s32.totalorder %s18, 3
      %p126 = por %p124, %p125
      %p127 = scmp.ne.s32.totalorder %s116, %s117
      %p128 = scmp.eq.s32.totalorder %s18, 0
      %p129 = por %p127, %p128
      %p130 = scmp.ne.s32.totalorder %s116, %s117
      %p131 = scmp.eq.s32.totalorder %s19, 3
      %p132 = por %p130, %p131
      %p134 = scmp.ne.s32.totalorder %s117, %s133
      %p135 = scmp.eq.s32.totalorder %s19, 0
      %p136 = por %p134, %p135
      %s138 = sadd.s32 %s137, 1
      %p141 = scmp.eq.s32.totalorder %s13, 3
      %p142 = scmp.ne.s32.totalorder %s137, %s139
      %p143 = scmp.eq.s32.totalorder %s13, 0
      %p144 = por %p142, %p143
      %p145 = scmp.ne.s32.totalorder %s137, %s139
      %p146 = scmp.eq.s32.totalorder %s18, 3
      %p147 = por %p145, %p146
      %p148 = scmp.ne.s32.totalorder %s139, %s140
      %p149 = scmp.eq.s32.totalorder %s18, 0
      %p150 = por %p148, %p149
      %p151 = scmp.ne.s32.totalorder %s139, %s140
      %p152 = scmp.eq.s32.totalorder %s19, 3
      %p153 = por %p151, %p152
      %p155 = scmp.ne.s32.totalorder %s140, %s154
      %p156 = scmp.eq.s32.totalorder %s19, 0
      %p157 = por %p155, %p156
      %s159 = sadd.s32 %s158, 1
      %p162 = scmp.eq.s32.totalorder %s13, 3
      %p163 = scmp.ne.s32.totalorder %s158, %s160
      %p164 = scmp.eq.s32.totalorder %s13, 0
      %p165 = por %p163, %p164
      %p166 = scmp.ne.s32.totalorder %s158, %s160
      %p167 = scmp.eq.s32.totalorder %s18, 3
      %p168 = por %p166, %p167
      %p169 = scmp.ne.s32.totalorder %s160, %s161
      %p170 = scmp.eq.s32.totalorder %s18, 0
      %p171 = por %p169, %p170
      %p172 = scmp.ne.s32.totalorder %s160, %s161
      %p173 = scmp.eq.s32.totalorder %s19, 3
      %p174 = por %p172, %p173
      %p176 = scmp.ne.s32.totalorder %s161, %s175
      %p177 = scmp.eq.s32.totalorder %s19, 0
      %p178 = por %p176, %p177
      %s180 = sadd.s32 %s179, 1
      %p183 = scmp.eq.s32.totalorder %s13, 3
      %p184 = scmp.ne.s32.totalorder %s179, %s181
      %p185 = scmp.eq.s32.totalorder %s13, 0
      %p186 = por %p184, %p185
      %p187 = scmp.ne.s32.totalorder %s179, %s181
      %p188 = scmp.eq.s32.totalorder %s18, 3
      %p189 = por %p187, %p188
      %p190 = scmp.ne.s32.totalorder %s181, %s182
      %p191 = scmp.eq.s32.totalorder %s18, 0
      %p192 = por %p190, %p191
      %p193 = scmp.ne.s32.totalorder %s181, %s182
      %p194 = scmp.eq.s32.totalorder %s19, 3
      %p195 = por %p193, %p194
      %p197 = scmp.ne.s32.totalorder %s182, %s196
      %p198 = scmp.eq.s32.totalorder %s19, 0
      %p199 = por %p197, %p198
      %s200 = ssub.s32 %s20, %s32
      %p201 = scmp.eq.s32.totalorder %s200, 0
      %s203 = sadd.s32 %s202, 1
      %s204 = scalar_select %p201, %s202, %s203
      %p207 = pneg %p201
      %p208 = scmp.eq.s32.totalorder %s13, 3
      %p209 = por %p207, %p208
      %p210 = scmp.ne.s32.totalorder %s202, %s205
      %p211 = scmp.eq.s32.totalorder %s13, 0
      %p212 = por %p210, %p211
      %p213 = scmp.ne.s32.totalorder %s202, %s205
      %p214 = scmp.eq.s32.totalorder %s18, 3
      %p215 = por %p213, %p214
      %p216 = scmp.ne.s32.totalorder %s205, %s206
      %p217 = scmp.eq.s32.totalorder %s18, 0
      %p218 = por %p216, %p217
      %p219 = scmp.ne.s32.totalorder %s205, %s206
      %p220 = scmp.eq.s32.totalorder %s19, 3
      %p221 = por %p219, %p220
      %p223 = scmp.ne.s32.totalorder %s206, %s222
      %p224 = scmp.eq.s32.totalorder %s19, 0
      %p225 = por %p223, %p224
      %p226 = scmp.le.s32.totalorder 1, %s13
      %p227 = scmp.lt.s32.totalorder %s13, 5
      %p228 = pnand %p226, %p227
      %p229 = pneg %p228
      // Predicated region
      $region9: #{m2tr_forward.17} parent=5 // pred_check
        _
      $region10: #{m2tr_forward.17} parent=5 // pred_check_branch
        %231 = sbr.rel (%p228) target = $region12
      $region11: #{m2tr_forward.17} parent=5 // pred_region
        %s232 = ssub.s32 %s13, 1
        // Predicated region
        $region13: #{m2tr_forward.17} parent=11 // pred_check
          %p233 = pneg %p51
        $region14: #{m2tr_forward.17} parent=11 // pred_check_branch
          %235 = sbr.rel (%p233) target = $region16
        $region15: #{m2tr_forward.17} parent=11 // pred_region
          %p236 = scmp.lt.s32.totalorder %s22, 0
          %s237 = scalar_select %p236, %s22, 0
          %s238 = smul.addr %s237, 4
          %s239 = scalar_lea.vmem %s0, %s238
        $region16: #{m2tr_forward.17} parent=11 // pred_fallthru
          _
        // Predicated region
        $region17: #{m2tr_forward.17} parent=11 // pred_check
          %p240 = pneg %p150
        $region18: #{m2tr_forward.17} parent=11 // pred_check_branch
          %242 = sbr.rel (%p240) target = $region20
        $region19: #{m2tr_forward.17} parent=11 // pred_region
          _
        $region20: #{m2tr_forward.17} parent=11 // pred_fallthru
          _
        // Predicated region
        $region21: #{m2tr_forward.17} parent=11 // pred_check
          %p243 = pneg %p171
        $region22: #{m2tr_forward.17} parent=11 // pred_check_branch
          %245 = sbr.rel (%p243) target = $region24
        $region23: #{m2tr_forward.17} parent=11 // pred_region
          _
        $region24: #{m2tr_forward.17} parent=11 // pred_fallthru
          _
        // Predicated region
        $region25: #{m2tr_forward.17} parent=11 // pred_check
          %p246 = pneg %p192
        $region26: #{m2tr_forward.17} parent=11 // pred_check_branch
          %248 = sbr.rel (%p246) target = $region28
        $region27: #{m2tr_forward.17} parent=11 // pred_region
          _
        $region28: #{m2tr_forward.17} parent=11 // pred_fallthru
          _
      $region12: #{m2tr_forward.17} parent=5 // pred_fallthru
        _
      %p249 = scmp.lt.s32.totalorder %s13, 4
      // Predicated region
      $region29: #{m2tr_forward.17} parent=5 // pred_check
        %p250 = pneg %p249
      $region30: #{m2tr_forward.17} parent=5 // pred_check_branch
        %252 = sbr.rel (%p250) target = $region32
      $region31: #{m2tr_forward.17} parent=5 // pred_region
        // Predicated region
        $region33: #{m2tr_forward.17} parent=31 // pred_check
          %p253 = pneg %p71
        $region34: #{m2tr_forward.17} parent=31 // pred_check_branch
          %255 = sbr.rel (%p253) target = $region36
        $region35: #{m2tr_forward.17} parent=31 // pred_region
          %s256 = sand.u32 %s61, 1
          %s257 = sand.u32 %s61, 1
          %s258 = smul.addr %s257, 64
          %s259 = scalar_lea.vmem [#allocation3], %s258
          %s260 = smul.u32 4, %s21
          %s261 = smul.addr %s260, 4
          %s262 = scalar_lea.vmem %s1, %s261
          // Predicated region
          $region37: #{m2tr_forward.17} parent=35 // pred_check
            _
          $region38: #{m2tr_forward.17} parent=35 // pred_check_branch
            %264 = sbr.rel (0) target = $region40
          $region39: #{m2tr_forward.17} parent=35 // pred_region
            // Predicated region
            $region41: #{m2tr_forward.17} parent=39 // pred_check
              _
            $region42: #{m2tr_forward.17} parent=39 // pred_check_branch
              %266 = sbr.rel (0) target = $region44
            $region43: #{m2tr_forward.17} parent=39 // pred_region
              loop: start=0, step=1, limit=1
              $region45: #{m2tr_forward.17} parent=43 // loop_pre_header
                _
              $region46: #{m2tr_forward.17} parent=43 // loop_header
                %s268 = sphi 0, %s272
                %p269 = scmp.ge.s32.totalorder %s268, 1
                %s273 = sphi %s262, %s262
                %s274 = sphi %s259, %s259
              $region47: #{m2tr_forward.17} parent=43 // loop_header_branch
                %271 = sbr.rel (%p269) target = $region51
              $region48: #{m2tr_forward.17} parent=43 // loop_body
                %v275 = vld [vmem:[%s273] sm:$0xff]
                %276 = vst [vmem:[%s274] sm:$0xff] %v275
                %v277 = vld [vmem:[%s273 + $0x8] sm:$0xff]
                %278 = vst [vmem:[%s274 + $0x8] sm:$0xff] %v277
                %v279 = vld [vmem:[%s273 + $0x40] sm:$0xff]
                %280 = vst [vmem:[%s274 + $0x10] sm:$0xff] %v279
                %v281 = vld [vmem:[%s273 + $0x48] sm:$0xff]
                %282 = vst [vmem:[%s274 + $0x18] sm:$0xff] %v281
                %v283 = vld [vmem:[%s273 + $0x80] sm:$0xff]
                %284 = vst [vmem:[%s274 + $0x20] sm:$0xff] %v283
                %v285 = vld [vmem:[%s273 + $0x88] sm:$0xff]
                %286 = vst [vmem:[%s274 + $0x28] sm:$0xff] %v285
                %v287 = vld [vmem:[%s273 + $0xc0] sm:$0xff]
                %288 = vst [vmem:[%s274 + $0x30] sm:$0xff] %v287
                %v289 = vld [vmem:[%s273 + $0xc8] sm:$0xff]
                %290 = vst [vmem:[%s274 + $0x38] sm:$0xff] %v289
              $region49: #{m2tr_forward.17} parent=43 // loop_footer
                %s272 = sadd.s32 1, %s268
              $region50: #{m2tr_forward.17} parent=43 // loop_footer_branch
                %267 = sbr.rel target = $region46
              $region51: #{m2tr_forward.17} parent=43 // loop_exit
                _
            $region44: #{m2tr_forward.17} parent=39 // pred_fallthru
              _
            // Predicated region
            $region52: #{m2tr_forward.17} parent=39 // pred_check
              _
            $region53: #{m2tr_forward.17} parent=39 // pred_check_branch
              %292 = sbr.rel target = $region55
            $region54: #{m2tr_forward.17} parent=39 // pred_region
              _
            $region55: #{m2tr_forward.17} parent=39 // pred_fallthru
              _
          $region40: #{m2tr_forward.17} parent=35 // pred_fallthru
            _
          %293 = vnop
        $region36: #{m2tr_forward.17} parent=31 // pred_fallthru
          _
        // Predicated region
        $region56: #{m2tr_forward.17} parent=31 // pred_check
          %p294 = pneg %p97
        $region57: #{m2tr_forward.17} parent=31 // pred_check_branch
          %296 = sbr.rel (%p294) target = $region59
        $region58: #{m2tr_forward.17} parent=31 // pred_region
          %s297 = smul.u32 4, %s21
          %p298 = scmp.lt.s32.totalorder %s297, 15
          %s299 = scalar_select %p298, %s297, 15
          %s300 = scalar_lea.vmem %s2, %s299
          %s301 = smul.u32 4, %s21
        $region59: #{m2tr_forward.17} parent=31 // pred_fallthru
          _
        // Predicated region
        $region60: #{m2tr_forward.17} parent=31 // pred_check
          %p302 = pneg %p123
        $region61: #{m2tr_forward.17} parent=31 // pred_check_branch
          %304 = sbr.rel (%p302) target = $region63
        $region62: #{m2tr_forward.17} parent=31 // pred_region
          %s305 = smul.u32 64, %s21
          %p306 = scmp.lt.s32.totalorder %s305, 255
          %s307 = scalar_select %p306, %s305, 255
          %s308 = smul.addr %s307, 4
          %s309 = scalar_lea.vmem %s3, %s308
          %s310 = smul.u32 64, %s21
        $region63: #{m2tr_forward.17} parent=31 // pred_fallthru
          _
      $region32: #{m2tr_forward.17} parent=5 // pred_fallthru
        _
      %p311 = scmp.le.s32.totalorder 1, %s13
      %p312 = scmp.lt.s32.totalorder %s13, 5
      %p313 = pnand %p311, %p312
      %p314 = pneg %p313
      // Predicated region
      $region64: #{m2tr_forward.17} parent=5 // pred_check
        _
      $region65: #{m2tr_forward.17} parent=5 // pred_check_branch
        %316 = sbr.rel (%p313) target = $region67
      $region66: #{m2tr_forward.17} parent=5 // pred_region
        %s317 = ssub.s32 %s13, 1
        %s318 = sand.u32 %s64, 1
        %s319 = sand.u32 %s64, 1
        %s320 = smul.addr %s319, 64
        %s321 = scalar_lea.vmem [#allocation3], %s320
        // Predicated region
        $region68: #{m2tr_forward.17} parent=66 // pred_check
          %p322 = pneg %p77
        $region69: #{m2tr_forward.17} parent=66 // pred_check_branch
          %324 = sbr.rel (%p322) target = $region71
        $region70: #{m2tr_forward.17} parent=66 // pred_region
          _
        $region71: #{m2tr_forward.17} parent=66 // pred_fallthru
          _
        %p325 = scmp.lt.s32.totalorder %s22, 0
        %s326 = scalar_select %p325, %s22, 0
        %s327 = smul.addr %s326, 4
        %s328 = scalar_lea.vmem %s0, %s327
        %p329 = pneg %p51
        %p330 = pneg %p48
        %s331 = sand.u32 %s64, 1
        %s332 = sand.u32 %s64, 1
        %s333 = smul.addr %s332, 64
        %s334 = scalar_lea.vmem [#allocation3], %s333
        %p335 = pneg %p77
        %p336 = pneg %p74
        %s337 = smul.u32 4, %s23
        %p338 = scmp.lt.s32.totalorder %s337, 15
        %s339 = scalar_select %p338, %s337, 15
        %s340 = scalar_lea.vmem %s2, %s339
        %p341 = pneg %p103
        %p342 = pneg %p100
        %s343 = smul.u32 64, %s23
        %p344 = scmp.lt.s32.totalorder %s343, 255
        %s345 = scalar_select %p344, %s343, 255
        %s346 = smul.addr %s345, 4
        %s347 = scalar_lea.vmem %s3, %s346
        %p348 = pneg %p129
        %p349 = pneg %p126
        %p350 = pneg %p150
        %p351 = pneg %p147
        %p352 = pneg %p171
        %p353 = pneg %p168
        %p354 = pneg %p192
        %p355 = pneg %p189
        %p356 = pneg %p218
        %p357 = pneg %p215
        %p358 = scmp.lt.s32.totalorder %s22, 0
        %s359 = scalar_select %p358, %s22, 0
        %s360 = smul.addr %s359, 4
        %s361 = scalar_lea.vmem %s7, %s360
        %p362 = scmp.lt.s32.totalorder %s22, 0
        %s363 = scalar_select %p362, %s22, 0
        %s364 = smul.addr %s363, 4
        %s365 = scalar_lea.vmem %s0, %s364
        %s366 = smul.u32 4, %s23
        %s367 = smul.u32 4, %s23
        %p368 = scmp.lt.s32.totalorder %s367, 15
        %s369 = scalar_select %p368, %s367, 15
        %s370 = scalar_lea.vmem %s2, %s369
        %s371 = smul.u32 4, %s23
        %s372 = smul.u32 64, %s23
        %p373 = scmp.lt.s32.totalorder %s372, 255
        %s374 = scalar_select %p373, %s372, 255
        %s375 = smul.addr %s374, 4
        %s376 = scalar_lea.vmem %s3, %s375
        %s377 = smul.u32 64, %s23
        %p378 = scmp.lt.s32.totalorder %s22, 0
        %s379 = scalar_select %p378, %s22, 0
        %s380 = smul.addr %s379, 4
        %s381 = scalar_lea.vmem %s7, %s380
        %p383 = scmp.eq.s32.totalorder %s23, 0
        // Predicated region
        $region72: #{m2tr_forward.17} parent=66 // pred_check
          %p384 = pneg %p383
        $region73: #{m2tr_forward.17} parent=66 // pred_check_branch
          %386 = sbr.rel (%p384) target = $region75
        $region74: #{m2tr_forward.17} parent=66 // pred_region
          %vm387 = vcmask 261120
          %388 = vst.msk [vmem:[#allocation2] sm:$0xff] %vm387, 0.0
        $region75: #{m2tr_forward.17} parent=66 // pred_fallthru
          _
        %v389 = vld [vmem:[%s365] sm:$0xf]
        %v390 = vld [vmem:[%s321] sm:$0xff]
        %v391 = vld [vmem:[%s321 + $0x8] sm:$0xff]
        %v392 = vld [vmem:[%s321 + $0x10] sm:$0xff]
        %v393 = vld [vmem:[%s321 + $0x18] sm:$0xff]
        %v394 = vld [vmem:[%s321 + $0x20] sm:$0xff]
        %v395 = vld [vmem:[%s321 + $0x28] sm:$0xff]
        %v396 = vld [vmem:[%s321 + $0x30] sm:$0xff]
        %v397 = vld [vmem:[%s321 + $0x38] sm:$0xff]
        %v398 = vld [vmem:[%s370] sm:$0xf]
        %v400 = vlaneseq
        %v401 = vshrl.u32 %v400, 7
        %v402 = vsub.s32 0, %v401
        %v403 = vrot.slane %v398, %v402
        %v404 = vlaneseq
        %v405 = vshrl.u32 %v404, 7
        %v406 = vsub.s32 1, %v405
        %v407 = vrot.slane %v398, %v406
        %v408 = vlaneseq
        %v409 = vshrl.u32 %v408, 7
        %v410 = vsub.s32 2, %v409
        %v411 = vrot.slane %v398, %v410
        %v412 = vlaneseq
        %v413 = vshrl.u32 %v412, 7
        %v414 = vsub.s32 3, %v413
        %v415 = vrot.slane %v398, %v414
        %v428 = vunpack.c.l.b16 %v390
        %v429 = vunpack.c.h.b16 %v390
        %v430 = vunpack.c.l.b16 %v391
        %v431 = vunpack.c.h.b16 %v391
        %v432 = vunpack.c.l.b16 %v392
        %v433 = vunpack.c.h.b16 %v392
        %v434 = vunpack.c.l.b16 %v393
        %v435 = vunpack.c.h.b16 %v393
        %v436 = vunpack.c.l.b16 %v394
        %v437 = vunpack.c.h.b16 %v394
        %v438 = vunpack.c.l.b16 %v395
        %v439 = vunpack.c.h.b16 %v395
        %v440 = vunpack.c.l.b16 %v396
        %v441 = vunpack.c.h.b16 %v396
        %v442 = vunpack.c.l.b16 %v397
        %v443 = vunpack.c.h.b16 %v397
        %v444 = vpack.c.b16 %v432, %v428
        %v445 = vpack.c.b16 %v433, %v429
        %v446 = vpack.c.b16 %v434, %v430
        %v447 = vpack.c.b16 %v435, %v431
        %v448 = vpack.c.b16 %v440, %v436
        %v449 = vpack.c.b16 %v441, %v437
        %v450 = vpack.c.b16 %v442, %v438
        %v451 = vpack.c.b16 %v443, %v439
        %vm460 = vcmask 261120
        %v462 = vsel %vm460, %v389, 0
        %464 = vmatprep.subr.bf16.mxu0 %v445
        %465 = vmatpush1.bf16.msra.mxu0 %v444
        %466 = vmatprep.subr.bf16.mxu0 %v449
        %467 = vmatpush1.bf16.msra.mxu0 %v448
        %468 = vmatprep.subr.bf16.mxu0 0
        %469 = vmatpush1.bf16.msra.mxu0 0
        %470 = vmatprep.subr.bf16.mxu0 0
        %471 = vmatpush1.bf16.msra.mxu0 0
        %472 = vmatprep.subr.bf16.mxu0 0
        %473 = vmatpush1.bf16.msra.mxu0 0
        %474 = vmatprep.subr.bf16.mxu0 0
        %475 = vmatpush1.bf16.msra.mxu0 0
        %476 = vmatprep.subr.bf16.mxu0 0
        %477 = vmatpush1.bf16.msra.mxu0 0
        %478 = vmatprep.subr.bf16.mxu0 0
        %479 = vmatpush1.bf16.msra.mxu0 0
        %480 = vmatprep.subr.bf16.mxu0 0
        %481 = vmatpush1.bf16.msra.mxu0 0
        %482 = vmatprep.subr.bf16.mxu0 0
        %483 = vmatpush1.bf16.msra.mxu0 0
        %484 = vmatprep.subr.bf16.mxu0 0
        %485 = vmatpush1.bf16.msra.mxu0 0
        %486 = vmatprep.subr.bf16.mxu0 0
        %487 = vmatpush1.bf16.msra.mxu0 0
        %488 = vmatprep.subr.bf16.mxu0 0
        %489 = vmatpush1.bf16.msra.mxu0 0
        %490 = vmatprep.subr.bf16.mxu0 0
        %491 = vmatpush1.bf16.msra.mxu0 0
        %492 = vmatprep.subr.bf16.mxu0 0
        %493 = vmatpush1.bf16.msra.mxu0 0
        %494 = vmatprep.subr.bf16.mxu0 0
        %495 = vmatpush1.bf16.msra.mxu0 0
        %496 = vmatprep.mubr.bf16.mxu0 0
        %497 = vmatmul.mubr.bf16.gmra.mrb[0].mxu0 %v462
        %v498 = vpop.f32.mrb[0].mxu0
        %v499 = vadd.f32 %v403, %v498
        %v500 = vpop.f32.mrb[0].mxu0
        %v501 = vadd.f32 %v407, %v500
        %v502 = vpop.f32.mrb[0].mxu0
        %v503 = vpop.f32.mrb[0].mxu0
        %504 = vdwg.mxu0
        %505 = vmatprep.subr.bf16.mxu0 %v447
        %506 = vmatpush1.bf16.msra.mxu0 %v446
        %507 = vmatprep.subr.bf16.mxu0 %v451
        %508 = vmatpush1.bf16.msra.mxu0 %v450
        %509 = vmatprep.subr.bf16.mxu0 0
        %510 = vmatpush1.bf16.msra.mxu0 0
        %511 = vmatprep.subr.bf16.mxu0 0
        %512 = vmatpush1.bf16.msra.mxu0 0
        %513 = vmatprep.subr.bf16.mxu0 0
        %514 = vmatpush1.bf16.msra.mxu0 0
        %515 = vmatprep.subr.bf16.mxu0 0
        %516 = vmatpush1.bf16.msra.mxu0 0
        %517 = vmatprep.subr.bf16.mxu0 0
        %518 = vmatpush1.bf16.msra.mxu0 0
        %519 = vmatprep.subr.bf16.mxu0 0
        %520 = vmatpush1.bf16.msra.mxu0 0
        %521 = vmatprep.subr.bf16.mxu0 0
        %522 = vmatpush1.bf16.msra.mxu0 0
        %523 = vmatprep.subr.bf16.mxu0 0
        %524 = vmatpush1.bf16.msra.mxu0 0
        %525 = vmatprep.subr.bf16.mxu0 0
        %526 = vmatpush1.bf16.msra.mxu0 0
        %527 = vmatprep.subr.bf16.mxu0 0
        %528 = vmatpush1.bf16.msra.mxu0 0
        %529 = vmatprep.subr.bf16.mxu0 0
        %530 = vmatpush1.bf16.msra.mxu0 0
        %531 = vmatprep.subr.bf16.mxu0 0
        %532 = vmatpush1.bf16.msra.mxu0 0
        %533 = vmatprep.subr.bf16.mxu0 0
        %534 = vmatpush1.bf16.msra.mxu0 0
        %535 = vmatprep.subr.bf16.mxu0 0
        %536 = vmatpush1.bf16.msra.mxu0 0
        %537 = vmatprep.mubr.bf16.mxu0 0
        %538 = vmatmul.mubr.bf16.gmra.mrb[0].mxu0 %v462
        %v539 = vpop.f32.mrb[0].mxu0
        %v540 = vadd.f32 %v411, %v539
        %v541 = vpop.f32.mrb[0].mxu0
        %v542 = vadd.f32 %v415, %v541
        %v543 = vpop.f32.mrb[0].mxu0
        %v544 = vpop.f32.mrb[0].mxu0
        %545 = vdwg.mxu0
        %v546 = vmax.f32 %v499, 0.0
        %v547 = vmax.f32 %v501, 0.0
        %v548 = vmax.f32 %v540, 0.0
        %v549 = vmax.f32 %v542, 0.0
        %v550 = vpack.c.bf16 %v546, %v546
        %v551 = vpack.c.bf16 %v547, %v547
        %v552 = vpack.c.bf16 %v548, %v548
        %v553 = vpack.c.bf16 %v549, %v549
        %v554 = vld [vmem:[#allocation2] sm:$0xff]
        %v555 = vld [vmem:[%s376] sm:$0xf]
        %v556 = vld [vmem:[%s376 + $0x4] sm:$0xf]
        %v557 = vld [vmem:[%s376 + $0x8] sm:$0xf]
        %v558 = vld [vmem:[%s376 + $0xc] sm:$0xf]
        %v559 = vld [vmem:[%s376 + $0x10] sm:$0xf]
        %v560 = vld [vmem:[%s376 + $0x14] sm:$0xf]
        %v561 = vld [vmem:[%s376 + $0x18] sm:$0xf]
        %v562 = vld [vmem:[%s376 + $0x1c] sm:$0xf]
        %v563 = vld [vmem:[%s376 + $0x20] sm:$0xf]
        %v564 = vld [vmem:[%s376 + $0x24] sm:$0xf]
        %v565 = vld [vmem:[%s376 + $0x28] sm:$0xf]
        %v566 = vld [vmem:[%s376 + $0x2c] sm:$0xf]
        %v567 = vld [vmem:[%s376 + $0x30] sm:$0xf]
        %v568 = vld [vmem:[%s376 + $0x34] sm:$0xf]
        %v569 = vld [vmem:[%s376 + $0x38] sm:$0xf]
        %v570 = vld [vmem:[%s376 + $0x3c] sm:$0xf]
        %v571 = vld [vmem:[%s376 + $0x40] sm:$0xf]
        %v572 = vld [vmem:[%s376 + $0x44] sm:$0xf]
        %v573 = vld [vmem:[%s376 + $0x48] sm:$0xf]
        %v574 = vld [vmem:[%s376 + $0x4c] sm:$0xf]
        %v575 = vld [vmem:[%s376 + $0x50] sm:$0xf]
        %v576 = vld [vmem:[%s376 + $0x54] sm:$0xf]
        %v577 = vld [vmem:[%s376 + $0x58] sm:$0xf]
        %v578 = vld [vmem:[%s376 + $0x5c] sm:$0xf]
        %v579 = vld [vmem:[%s376 + $0x60] sm:$0xf]
        %v580 = vld [vmem:[%s376 + $0x64] sm:$0xf]
        %v581 = vld [vmem:[%s376 + $0x68] sm:$0xf]
        %v582 = vld [vmem:[%s376 + $0x6c] sm:$0xf]
        %v583 = vld [vmem:[%s376 + $0x70] sm:$0xf]
        %v584 = vld [vmem:[%s376 + $0x74] sm:$0xf]
        %v585 = vld [vmem:[%s376 + $0x78] sm:$0xf]
        %v586 = vld [vmem:[%s376 + $0x7c] sm:$0xf]
        %v587 = vld [vmem:[%s376 + $0x80] sm:$0xf]
        %v588 = vld [vmem:[%s376 + $0x84] sm:$0xf]
        %v589 = vld [vmem:[%s376 + $0x88] sm:$0xf]
        %v590 = vld [vmem:[%s376 + $0x8c] sm:$0xf]
        %v591 = vld [vmem:[%s376 + $0x90] sm:$0xf]
        %v592 = vld [vmem:[%s376 + $0x94] sm:$0xf]
        %v593 = vld [vmem:[%s376 + $0x98] sm:$0xf]
        %v594 = vld [vmem:[%s376 + $0x9c] sm:$0xf]
        %v595 = vld [vmem:[%s376 + $0xa0] sm:$0xf]
        %v596 = vld [vmem:[%s376 + $0xa4] sm:$0xf]
        %v597 = vld [vmem:[%s376 + $0xa8] sm:$0xf]
        %v598 = vld [vmem:[%s376 + $0xac] sm:$0xf]
        %v599 = vld [vmem:[%s376 + $0xb0] sm:$0xf]
        %v600 = vld [vmem:[%s376 + $0xb4] sm:$0xf]
        %v601 = vld [vmem:[%s376 + $0xb8] sm:$0xf]
        %v602 = vld [vmem:[%s376 + $0xbc] sm:$0xf]
        %v603 = vld [vmem:[%s376 + $0xc0] sm:$0xf]
        %v604 = vld [vmem:[%s376 + $0xc4] sm:$0xf]
        %v605 = vld [vmem:[%s376 + $0xc8] sm:$0xf]
        %v606 = vld [vmem:[%s376 + $0xcc] sm:$0xf]
        %v607 = vld [vmem:[%s376 + $0xd0] sm:$0xf]
        %v608 = vld [vmem:[%s376 + $0xd4] sm:$0xf]
        %v609 = vld [vmem:[%s376 + $0xd8] sm:$0xf]
        %v610 = vld [vmem:[%s376 + $0xdc] sm:$0xf]
        %v611 = vld [vmem:[%s376 + $0xe0] sm:$0xf]
        %v612 = vld [vmem:[%s376 + $0xe4] sm:$0xf]
        %v613 = vld [vmem:[%s376 + $0xe8] sm:$0xf]
        %v614 = vld [vmem:[%s376 + $0xec] sm:$0xf]
        %v615 = vld [vmem:[%s376 + $0xf0] sm:$0xf]
        %v616 = vld [vmem:[%s376 + $0xf4] sm:$0xf]
        %v617 = vld [vmem:[%s376 + $0xf8] sm:$0xf]
        %v618 = vld [vmem:[%s376 + $0xfc] sm:$0xf]
        %v683 = vunpack.c.l.b16 %v555
        %v684 = vunpack.c.l.b16 %v556
        %v685 = vunpack.c.l.b16 %v557
        %v686 = vunpack.c.l.b16 %v558
        %v687 = vunpack.c.l.b16 %v559
        %v688 = vunpack.c.l.b16 %v560
        %v689 = vunpack.c.l.b16 %v561
        %v690 = vunpack.c.l.b16 %v562
        %v691 = vunpack.c.l.b16 %v563
        %v692 = vunpack.c.l.b16 %v564
        %v693 = vunpack.c.l.b16 %v565
        %v694 = vunpack.c.l.b16 %v566
        %v695 = vunpack.c.l.b16 %v567
        %v696 = vunpack.c.l.b16 %v568
        %v697 = vunpack.c.l.b16 %v569
        %v698 = vunpack.c.l.b16 %v570
        %v699 = vunpack.c.l.b16 %v571
        %v700 = vunpack.c.l.b16 %v572
        %v701 = vunpack.c.l.b16 %v573
        %v702 = vunpack.c.l.b16 %v574
        %v703 = vunpack.c.l.b16 %v575
        %v704 = vunpack.c.l.b16 %v576
        %v705 = vunpack.c.l.b16 %v577
        %v706 = vunpack.c.l.b16 %v578
        %v707 = vunpack.c.l.b16 %v579
        %v708 = vunpack.c.l.b16 %v580
        %v709 = vunpack.c.l.b16 %v581
        %v710 = vunpack.c.l.b16 %v582
        %v711 = vunpack.c.l.b16 %v583
        %v712 = vunpack.c.l.b16 %v584
        %v713 = vunpack.c.l.b16 %v585
        %v714 = vunpack.c.l.b16 %v586
        %v715 = vunpack.c.l.b16 %v587
        %v716 = vunpack.c.l.b16 %v588
        %v717 = vunpack.c.l.b16 %v589
        %v718 = vunpack.c.l.b16 %v590
        %v719 = vunpack.c.l.b16 %v591
        %v720 = vunpack.c.l.b16 %v592
        %v721 = vunpack.c.l.b16 %v593
        %v722 = vunpack.c.l.b16 %v594
        %v723 = vunpack.c.l.b16 %v595
        %v724 = vunpack.c.l.b16 %v596
        %v725 = vunpack.c.l.b16 %v597
        %v726 = vunpack.c.l.b16 %v598
        %v727 = vunpack.c.l.b16 %v599
        %v728 = vunpack.c.l.b16 %v600
        %v729 = vunpack.c.l.b16 %v601
        %v730 = vunpack.c.l.b16 %v602
        %v731 = vunpack.c.l.b16 %v603
        %v732 = vunpack.c.l.b16 %v604
        %v733 = vunpack.c.l.b16 %v605
        %v734 = vunpack.c.l.b16 %v606
        %v735 = vunpack.c.l.b16 %v607
        %v736 = vunpack.c.l.b16 %v608
        %v737 = vunpack.c.l.b16 %v609
        %v738 = vunpack.c.l.b16 %v610
        %v739 = vunpack.c.l.b16 %v611
        %v740 = vunpack.c.l.b16 %v612
        %v741 = vunpack.c.l.b16 %v613
        %v742 = vunpack.c.l.b16 %v614
        %v743 = vunpack.c.l.b16 %v615
        %v744 = vunpack.c.l.b16 %v616
        %v745 = vunpack.c.l.b16 %v617
        %v746 = vunpack.c.l.b16 %v618
        %v747 = vpack.c.b16 %v684, %v683
        %v748 = vpack.c.b16 %v686, %v685
        %v749 = vpack.c.b16 %v688, %v687
        %v750 = vpack.c.b16 %v690, %v689
        %v751 = vpack.c.b16 %v692, %v691
        %v752 = vpack.c.b16 %v694, %v693
        %v753 = vpack.c.b16 %v696, %v695
        %v754 = vpack.c.b16 %v698, %v697
        %v755 = vpack.c.b16 %v700, %v699
        %v756 = vpack.c.b16 %v702, %v701
        %v757 = vpack.c.b16 %v704, %v703
        %v758 = vpack.c.b16 %v706, %v705
        %v759 = vpack.c.b16 %v708, %v707
        %v760 = vpack.c.b16 %v710, %v709
        %v761 = vpack.c.b16 %v712, %v711
        %v762 = vpack.c.b16 %v714, %v713
        %v763 = vpack.c.b16 %v716, %v715
        %v764 = vpack.c.b16 %v718, %v717
        %v765 = vpack.c.b16 %v720, %v719
        %v766 = vpack.c.b16 %v722, %v721
        %v767 = vpack.c.b16 %v724, %v723
        %v768 = vpack.c.b16 %v726, %v725
        %v769 = vpack.c.b16 %v728, %v727
        %v770 = vpack.c.b16 %v730, %v729
        %v771 = vpack.c.b16 %v732, %v731
        %v772 = vpack.c.b16 %v734, %v733
        %v773 = vpack.c.b16 %v736, %v735
        %v774 = vpack.c.b16 %v738, %v737
        %v775 = vpack.c.b16 %v740, %v739
        %v776 = vpack.c.b16 %v742, %v741
        %v777 = vpack.c.b16 %v744, %v743
        %v778 = vpack.c.b16 %v746, %v745
        %811 = vmatprep.subr.bf16.mxu0 0
        %812 = vmatpush1.bf16.msra.mxu0 %v747
        %813 = vmatprep.subr.bf16.mxu0 0
        %814 = vmatpush1.bf16.msra.mxu0 %v748
        %815 = vmatprep.subr.bf16.mxu0 0
        %816 = vmatpush1.bf16.msra.mxu0 %v749
        %817 = vmatprep.subr.bf16.mxu0 0
        %818 = vmatpush1.bf16.msra.mxu0 %v750
        %819 = vmatprep.subr.bf16.mxu0 0
        %820 = vmatpush1.bf16.msra.mxu0 %v751
        %821 = vmatprep.subr.bf16.mxu0 0
        %822 = vmatpush1.bf16.msra.mxu0 %v752
        %823 = vmatprep.subr.bf16.mxu0 0
        %824 = vmatpush1.bf16.msra.mxu0 %v753
        %825 = vmatprep.subr.bf16.mxu0 0
        %826 = vmatpush1.bf16.msra.mxu0 %v754
        %827 = vmatprep.subr.bf16.mxu0 0
        %828 = vmatpush1.bf16.msra.mxu0 %v755
        %829 = vmatprep.subr.bf16.mxu0 0
        %830 = vmatpush1.bf16.msra.mxu0 %v756
        %831 = vmatprep.subr.bf16.mxu0 0
        %832 = vmatpush1.bf16.msra.mxu0 %v757
        %833 = vmatprep.subr.bf16.mxu0 0
        %834 = vmatpush1.bf16.msra.mxu0 %v758
        %835 = vmatprep.subr.bf16.mxu0 0
        %836 = vmatpush1.bf16.msra.mxu0 %v759
        %837 = vmatprep.subr.bf16.mxu0 0
        %838 = vmatpush1.bf16.msra.mxu0 %v760
        %839 = vmatprep.subr.bf16.mxu0 0
        %840 = vmatpush1.bf16.msra.mxu0 %v761
        %841 = vmatprep.subr.bf16.mxu0 0
        %842 = vmatpush1.bf16.msra.mxu0 %v762
        %843 = vmatprep.mubr.bf16.mxu0 %v551
        %844 = vmatmul.mubr.bf16.gmra.mrb[0].mxu0 %v550
        %v845 = vpop.f32.mrb[0].mxu0
        %v846 = vadd.f32 0.0, %v845
        %v847 = vpop.f32.mrb[0].mxu0
        %v848 = vpop.f32.mrb[0].mxu0
        %v849 = vpop.f32.mrb[0].mxu0
        %850 = vdwg.mxu0
        %851 = vmatprep.subr.bf16.mxu0 0
        %852 = vmatpush1.bf16.msra.mxu0 %v763
        %853 = vmatprep.subr.bf16.mxu0 0
        %854 = vmatpush1.bf16.msra.mxu0 %v764
        %855 = vmatprep.subr.bf16.mxu0 0
        %856 = vmatpush1.bf16.msra.mxu0 %v765
        %857 = vmatprep.subr.bf16.mxu0 0
        %858 = vmatpush1.bf16.msra.mxu0 %v766
        %859 = vmatprep.subr.bf16.mxu0 0
        %860 = vmatpush1.bf16.msra.mxu0 %v767
        %861 = vmatprep.subr.bf16.mxu0 0
        %862 = vmatpush1.bf16.msra.mxu0 %v768
        %863 = vmatprep.subr.bf16.mxu0 0
        %864 = vmatpush1.bf16.msra.mxu0 %v769
        %865 = vmatprep.subr.bf16.mxu0 0
        %866 = vmatpush1.bf16.msra.mxu0 %v770
        %867 = vmatprep.subr.bf16.mxu0 0
        %868 = vmatpush1.bf16.msra.mxu0 %v771
        %869 = vmatprep.subr.bf16.mxu0 0
        %870 = vmatpush1.bf16.msra.mxu0 %v772
        %871 = vmatprep.subr.bf16.mxu0 0
        %872 = vmatpush1.bf16.msra.mxu0 %v773
        %873 = vmatprep.subr.bf16.mxu0 0
        %874 = vmatpush1.bf16.msra.mxu0 %v774
        %875 = vmatprep.subr.bf16.mxu0 0
        %876 = vmatpush1.bf16.msra.mxu0 %v775
        %877 = vmatprep.subr.bf16.mxu0 0
        %878 = vmatpush1.bf16.msra.mxu0 %v776
        %879 = vmatprep.subr.bf16.mxu0 0
        %880 = vmatpush1.bf16.msra.mxu0 %v777
        %881 = vmatprep.subr.bf16.mxu0 0
        %882 = vmatpush1.bf16.msra.mxu0 %v778
        %883 = vmatprep.mubr.bf16.mxu0 %v553
        %884 = vmatmul.mubr.bf16.gmra.mrb[0].mxu0 %v552
        %v885 = vpop.f32.mrb[0].mxu0
        %v886 = vadd.f32 %v846, %v885
        %v887 = vpop.f32.mrb[0].mxu0
        %v888 = vpop.f32.mrb[0].mxu0
        %v889 = vpop.f32.mrb[0].mxu0
        %890 = vdwg.mxu0
        %v891 = vadd.f32 %v554, %v886
        %892 = vst.msk [vmem:[#allocation2] sm:$0xff] %vm460, %v891
        %p893 = scmp.eq.s32.totalorder %s23, 3
        // Predicated region
        $region76: #{m2tr_forward.17} parent=66 // pred_check
          %p894 = pneg %p893
        $region77: #{m2tr_forward.17} parent=66 // pred_check_branch
          %896 = sbr.rel (%p894) target = $region79
        $region78: #{m2tr_forward.17} parent=66 // pred_region
          %v897 = vld [vmem:[#allocation2] sm:$0xff]
          %v898 = vld [vmem:[%s4] sm:$0x1]
          %v900 = vlaneseq
          %v901 = vshrl.u32 %v900, 7
          %v902 = vsub.s32 0, %v901
          %v903 = vrot.slane %v898, %v902
          %v905 = vadd.f32 %v897, %v903
          %v906 = vld [vmem:[%s365] sm:$0xf]
          %v907 = vunpack.c.l.bf16 %v906
          %v908 = vadd.f32 %v905, %v907
          %v909 = vsel %vm460, %v908, 0.0
          %910 = vadd.xlane.f32.xlu0 %v909
          %v911 = vpop.xlane.xlu0 %910
          %v912 = vrcp.pop 32.0
          %v913 = vmul.f32 %v911, %v912
          %v914 = vsub.f32 %v908, %v913
          %v915 = vmul.f32 %v914, %v914
          %v916 = vsel %vm460, %v915, 0.0
          %917 = vadd.xlane.f32.xlu0 %v916
          %v918 = vpop.xlane.xlu0 %917
          %v919 = vmul.f32 %v918, %v912
          %v920 = vadd.f32 %v919, 1e-05
          %v921 = vrsqrt.pop %v920
          %v922 = vmul.f32 %v914, %v921
          %v923 = vld [vmem:[%s5] sm:$0x1]
          %v925 = vlaneseq
          %v926 = vshrl.u32 %v925, 7
          %v927 = vsub.s32 0, %v926
          %v928 = vrot.slane %v923, %v927
          %v930 = vmul.f32 %v922, %v928
          %v931 = vld [vmem:[%s6] sm:$0x1]
          %v933 = vlaneseq
          %v934 = vshrl.u32 %v933, 7
          %v935 = vsub.s32 0, %v934
          %v936 = vrot.slane %v931, %v935
          %v938 = vadd.f32 %v930, %v936
          %v939 = vpack.c.bf16 %v938, %v938
          %vm940 = vcmask 257024
          %941 = vst.msk [vmem:[%s381] sm:$0xf] %vm940, %v939
        $region79: #{m2tr_forward.17} parent=66 // pred_fallthru
          _
        %p942 = scmp.lt.s32.totalorder %s22, 0
        %s943 = scalar_select %p942, %s22, 0
        %s944 = smul.addr %s943, 4
        %s945 = scalar_lea.vmem %s7, %s944
        // Predicated region
        $region80: #{m2tr_forward.17} parent=66 // pred_check
          %p946 = pneg %p215
        $region81: #{m2tr_forward.17} parent=66 // pred_check_branch
          %948 = sbr.rel (%p946) target = $region83
        $region82: #{m2tr_forward.17} parent=66 // pred_region
          _
        $region83: #{m2tr_forward.17} parent=66 // pred_fallthru
          _
        // Predicated region
        $region84: #{m2tr_forward.17} parent=66 // pred_check
          %p949 = pneg %p215
        $region85: #{m2tr_forward.17} parent=66 // pred_check_branch
          %951 = sbr.rel (%p949) target = $region87
        $region86: #{m2tr_forward.17} parent=66 // pred_region
          %p952 = scmp.lt.s32.totalorder %s22, 0
          %s953 = scalar_select %p952, %s22, 0
          %s954 = smul.addr %s953, 4
          %s955 = scalar_lea.vmem %s7, %s954
        $region87: #{m2tr_forward.17} parent=66 // pred_fallthru
          _
      $region67: #{m2tr_forward.17} parent=5 // pred_fallthru
        _
      %p956 = scmp.le.s32.totalorder 2, %s13
      // Predicated region
      $region88: #{m2tr_forward.17} parent=5 // pred_check
        %p957 = pneg %p956
      $region89: #{m2tr_forward.17} parent=5 // pred_check_branch
        %959 = sbr.rel (%p957) target = $region91
      $region90: #{m2tr_forward.17} parent=5 // pred_region
        %s960 = ssub.s32 %s13, 2
      $region91: #{m2tr_forward.17} parent=5 // pred_fallthru
        _
    $region6: #{m2tr_forward.17} parent=1 // loop_footer
      %s17 = sadd.s32 1, %s13
    $region7: #{m2tr_forward.17} parent=1 // loop_footer_branch
      %12 = sbr.rel target = $region3
    $region8: #{m2tr_forward.17} parent=1 // loop_exit
      _

</llo_original>
